<compile_context>
chip_gen: v5e
topology: v5e:2x2
jax: 0.10.0
libtpu: 0.0.40
codegen_flags: <defaults>
</compile_context>

<pallas_src>
import math

import jax
import jax.numpy as jnp
from jax.experimental import pallas as pl
from jax.experimental.pallas import tpu as pltpu

C_IN = 257     # fixed by the module definition
K = 3          # conv kernel size
CP = 384       # channels padded to the next multiple of 128


def _make_kernel(L):
    """Kernel closure over the static per-sample time length L."""

    def kernel(x_ref, w1_ref, b1_ref, w2_ref, b2_ref, o_ref):
        # x_ref : (R, Cp) bf16, R = B*L rows = B whole samples, channels on lanes
        # wK_ref: (3, Cp, Cp) bf16 per-tap weights, layout (in, out)
        # bK_ref: (1, Cp)  f32 bias
        # o_ref : (R, Cp) bf16 output
        R, Cp = o_ref.shape

        # Row-within-sample boundary masks (computed once, reused by both layers).
        t = jax.lax.broadcasted_iota(jnp.int32, (R, 1), 0) % L
        not_first = t != 0          # tap x[t-1] is the zero padding at t == 0
        not_last = t != (L - 1)     # tap x[t+1] is the zero padding at t == L-1

        def conv3_relu(a2d, w_ref, b_ref):
            # Taps k=0/1/2 use x[t-1]/x[t]/x[t+1].  Each tap is one contiguous
            # (R,Cp)x(Cp,Cp) MXU matmul with f32 accumulation; the time shift is
            # applied to the f32 products with an XLU roll + boundary mask, so
            # no non-contiguous slices / relayout copies are ever materialized.
            acc = jnp.dot(a2d, w_ref[1], preferred_element_type=jnp.float32)
            p0 = jnp.dot(a2d, w_ref[0], preferred_element_type=jnp.float32)
            acc = acc + jnp.where(not_first,
                                  pltpu.roll(p0, shift=1, axis=0), 0.0)
            p2 = jnp.dot(a2d, w_ref[2], preferred_element_type=jnp.float32)
            # shift by R-1 == -1 (mod R); the wrapped rows are masked out.
            acc = acc + jnp.where(not_last,
                                  pltpu.roll(p2, shift=R - 1, axis=0), 0.0)
            return jnp.maximum(acc + b_ref[...], 0.0)            # (R, Cp) f32

        h = conv3_relu(x_ref[...], w1_ref, b1_ref)               # conv1 + ReLU
        y = conv3_relu(h.astype(jnp.bfloat16), w2_ref, b2_ref)   # conv2 + ReLU
        o_ref[...] = y.astype(o_ref.dtype)

    return kernel


def _pick_batch_block(n, l):
    """Whole samples per grid step.

    Targets ~2K MXU rows/step (amortizes the ~0.35us fixed grid-step cost and
    gives long MXU bursts), caps B at ceil(N/2) so there are >=2 grid steps for
    v7x's two TensorCores, and rounds B*L up to a multiple of 16 so the bf16
    (16,128)-tiled (B*L, 384) blocks satisfy the tiling constraint.  N is then
    padded on the host up to a multiple of B, so awkward N never collapses to
    B=1 (no 16-row-matmul perf cliff).
    """
    target_rows = 2048
    b = max(1, target_rows // l)
    b = min(b, max(1, -(-n // 2)))          # keep >=2 grid steps when possible
    b *= 16 // math.gcd(b * l, 16)          # B*L % 16 == 0
    # TODO(synk): add an L-tile grid axis with a 2-row halo for very long L so
    #             the (B*L,384) f32 intermediates stay inside v7x's 64 MiB VMEM.
    return b


def denoising_autoencoder_pallas(x_ncl, w1, b1, w2, b2):
    """x_ncl: (N, 257, L) float32; weights in PyTorch layout (out, in, k)."""
    N, C, L = x_ncl.shape
    assert C == C_IN
    Cp = CP
    B = _pick_batch_block(N, L)
    n_pad = -(-N // B) * B                  # pad batch so every grid step is full
    R = B * L

    # NOTE: the transpose/pad/cast below (and the slice/transpose/cast on the
    # way out) are HBM passes outside the kernel; if the surrounding model can
    # keep activations in (rows, Cp) bf16 layout they should be dropped or
    # fused into the producer/consumer.
    x_nlc = jnp.transpose(x_ncl, (0, 2, 1))
    x_pad = jnp.pad(x_nlc, ((0, n_pad - N), (0, 0), (0, Cp - C)))
    x2d = x_pad.astype(jnp.bfloat16).reshape(n_pad * L, Cp)

    def prep_w(w):
        # PyTorch Conv1d weight (out, in, k) -> (k, in, out); padded channel
        # columns AND padded bias entries are zero, so padded lanes stay 0.
        wk = jnp.transpose(w, (2, 1, 0))
        return jnp.pad(wk, ((0, 0), (0, Cp - C), (0, Cp - C))).astype(jnp.bfloat16)

    def prep_b(b):
        return jnp.pad(b, (0, Cp - C)).reshape(1, Cp).astype(jnp.float32)

    w1_p, w2_p = prep_w(w1), prep_w(w2)
    b1_p, b2_p = prep_b(b1), prep_b(b2)

    # Weight/bias blocks have constant index maps (fetched once); they are still
    # double-buffered by default (~1.7 MiB) — switch to pipeline_mode=
    # pl.Buffered(1) only if VMEM ever gets tight after enlarging B.
    out2d = pl.pallas_call(
        _make_kernel(L),
        out_shape=jax.ShapeDtypeStruct((n_pad * L, Cp), jnp.bfloat16),
        grid_spec=pltpu.PrefetchScalarGridSpec(
            num_scalar_prefetch=0,
            grid=(n_pad // B,),
            in_specs=[
                pl.BlockSpec((R, Cp), lambda g: (g, 0)),
                pl.BlockSpec((K, Cp, Cp), lambda g: (0, 0, 0)),
                pl.BlockSpec((1, Cp), lambda g: (0, 0)),
                pl.BlockSpec((K, Cp, Cp), lambda g: (0, 0, 0)),
                pl.BlockSpec((1, Cp), lambda g: (0, 0)),
            ],
            out_specs=pl.BlockSpec((R, Cp), lambda g: (g, 0)),
        ),
        compiler_params=pltpu.CompilerParams(
            dimension_semantics=("parallel",),
            # ~20-25 MiB working set at 2K rows: above the v5e 16 MiB scoped
            # default, comfortably under v7x's 64 MiB/TC physical VMEM.
            vmem_limit_bytes=48 * 1024 * 1024,
        ),
    )(x2d, w1_p, b1_p, w2_p, b2_p)

    # Drop batch/channel padding, return to PyTorch NCL layout in f32.
    out = out2d.reshape(n_pad, L, Cp)[:N, :, :C]
    return jnp.transpose(out, (0, 2, 1)).astype(jnp.float32)


def _reference(x_ncl, w1, b1, w2, b2):
    """Plain-JAX f32 reference matching torch.nn.Conv1d semantics (NCL)."""
    def conv1d(x, w, b):
        y = jax.lax.conv_general_dilated(
            x, w, window_strides=(1,), padding=((1, 1),),
            dimension_numbers=("NCH", "OIH", "NCH"))
        return y + b[None, :, None]

    h = jax.nn.relu(conv1d(x_ncl, w1, b1))
    return jax.nn.relu(conv1d(h, w2, b2))


if __name__ == "__main__":
    C = C_IN
    key = jax.random.PRNGKey(0)
    kx, kw1, kb1, kw2, kb2 = jax.random.split(key, 5)

    # Deterministic init mimicking PyTorch Conv1d default (uniform +-1/sqrt(fan_in*k)).
    bound = 1.0 / jnp.sqrt(float(C * K))
    w1 = jax.random.uniform(kw1, (C, C, K), jnp.float32, -bound, bound)
    b1 = jax.random.uniform(kb1, (C,), jnp.float32, -bound, bound)
    w2 = jax.random.uniform(kw2, (C, C, K), jnp.float32, -bound, bound)
    b2 = jax.random.uniform(kb2, (C,), jnp.float32, -bound, bound)

    fn = jax.jit(denoising_autoencoder_pallas)

    # Primary small test, plus a ragged case (N not divisible by the batch
    # block, L not a multiple of 16) to exercise host-side batch padding and
    # the sample-boundary row masks.
    for (N, L) in [(2, 16), (5, 40)]:
        x = jax.random.normal(jax.random.fold_in(kx, L), (N, C, L), jnp.float32)
        out = jax.block_until_ready(fn(x, w1, b1, w2, b2))
        ref = jax.block_until_ready(_reference(x, w1, b1, w2, b2))
        assert out.shape == (N, C, L)
        # bf16 MXU operands, bf16 inter-layer & output (f32 accumulation).
        assert jnp.allclose(out, ref, atol=5e-2, rtol=5e-2), \
            f"mismatch vs reference for N={N}, L={L}"

    print("KERNEL_OK")
</pallas_src>

<mosaic_0001>
module attributes {stable_mosaic.version = 11 : i64} {
  func.func @kernel(%arg0: i32, %arg1: memref<16x384xbf16, #tpu.memory_space<vmem>>, %arg2: memref<3x384x384xbf16, #tpu.memory_space<vmem>>, %arg3: memref<1x384xf32, #tpu.memory_space<vmem>>, %arg4: memref<3x384x384xbf16, #tpu.memory_space<vmem>>, %arg5: memref<1x384xf32, #tpu.memory_space<vmem>>, %arg6: memref<16x384xbf16, #tpu.memory_space<vmem>>) attributes {dimension_semantics = [#tpu.dimension_semantics<parallel>], iteration_bounds = array<i64: 2>, scalar_prefetch = 0 : i64, scratch_operands = 0 : i64, tpu.core_type = #tpu.core_type<tc>, window_params = [{transform_indices = @transform_0, window_bounds = array<i64: 16, 384>}, {pipeline_mode = #tpu.pipeline_mode<synchronous>, transform_indices = @transform_1, window_bounds = array<i64: 3, 384, 384>}, {pipeline_mode = #tpu.pipeline_mode<synchronous>, transform_indices = @transform_2, window_bounds = array<i64: 1, 384>}, {pipeline_mode = #tpu.pipeline_mode<synchronous>, transform_indices = @transform_3, window_bounds = array<i64: 3, 384, 384>}, {pipeline_mode = #tpu.pipeline_mode<synchronous>, transform_indices = @transform_4, window_bounds = array<i64: 1, 384>}, {transform_indices = @transform_5, window_bounds = array<i64: 16, 384>}]} {
    %0 = tpu.iota {dimensions = array<i32: 0>} : vector<16x1xi32>
    %c16_i32 = arith.constant 16 : i32
    %c0_i32 = arith.constant 0 : i32
    %1 = arith.cmpi eq, %c16_i32, %c0_i32 : i32
    %c1_i32 = arith.constant 1 : i32
    %2 = arith.select %1, %c1_i32, %c16_i32 : i32
    %3 = vector.broadcast %2 : i32 to vector<16x1xi32>
    %4 = arith.remsi %0, %3 : vector<16x1xi32>
    %c0_i32_0 = arith.constant 0 : i32
    %5 = vector.broadcast %c0_i32_0 : i32 to vector<16x1xi32>
    %6 = arith.cmpi ne, %4, %5 : vector<16x1xi32>
    %c0_i32_1 = arith.constant 0 : i32
    %7 = vector.broadcast %c0_i32_1 : i32 to vector<16x1xi32>
    %8 = arith.cmpi slt, %4, %7 : vector<16x1xi32>
    %c0_i32_2 = arith.constant 0 : i32
    %9 = arith.cmpi slt, %2, %c0_i32_2 : i32
    %10 = vector.broadcast %9 : i1 to vector<16x1xi1>
    %11 = vector.broadcast %10 : vector<16x1xi1> to vector<16x1xi1>
    %12 = arith.xori %8, %11 : vector<16x1xi1>
    %13 = arith.andi %12, %6 : vector<16x1xi1>
    %14 = vector.broadcast %2 : i32 to vector<16x1xi32>
    %15 = arith.addi %4, %14 : vector<16x1xi32>
    %16 = arith.select %13, %15, %4 : vector<16x1xi1>, vector<16x1xi32>
    %c0_i32_3 = arith.constant 0 : i32
    %17 = vector.broadcast %c0_i32_3 : i32 to vector<16x1xi32>
    %18 = arith.cmpi ne, %16, %17 : vector<16x1xi32>
    %c15_i32 = arith.constant 15 : i32
    %19 = vector.broadcast %c15_i32 : i32 to vector<16x1xi32>
    %20 = arith.cmpi ne, %16, %19 : vector<16x1xi32>
    %c0 = arith.constant 0 : index
    %c0_4 = arith.constant 0 : index
    %21 = vector.load %arg1[%c0, %c0_4] : memref<16x384xbf16, #tpu.memory_space<vmem>>, vector<16x384xbf16>
    %c1 = arith.constant 1 : index
    %c0_5 = arith.constant 0 : index
    %c0_6 = arith.constant 0 : index
    %22 = vector.load %arg2[%c1, %c0_5, %c0_6] : memref<3x384x384xbf16, #tpu.memory_space<vmem>>, vector<1x384x384xbf16>
    %23 = vector.shape_cast %22 : vector<1x384x384xbf16> to vector<384x384xbf16>
    %cst = arith.constant dense<0.000000e+00> : vector<16x384xf32>
    %24 = tpu.matmul %21, %23, %cst {dimension_numbers = #tpu.dot_dimension_numbers<[1], [0], [0], [1], [0, 0, 1, 1], [], []>} : vector<16x384xbf16>, vector<384x384xbf16>, vector<16x384xf32> -> vector<16x384xf32>
    %c0_7 = arith.constant 0 : index
    %c0_8 = arith.constant 0 : index
    %c0_9 = arith.constant 0 : index
    %25 = vector.load %arg2[%c0_7, %c0_8, %c0_9] : memref<3x384x384xbf16, #tpu.memory_space<vmem>>, vector<1x384x384xbf16>
    %26 = vector.shape_cast %25 : vector<1x384x384xbf16> to vector<384x384xbf16>
    %cst_10 = arith.constant dense<0.000000e+00> : vector<16x384xf32>
    %27 = tpu.matmul %21, %26, %cst_10 {dimension_numbers = #tpu.dot_dimension_numbers<[1], [0], [0], [1], [0, 0, 1, 1], [], []>} : vector<16x384xbf16>, vector<384x384xbf16>, vector<16x384xf32> -> vector<16x384xf32>
    %c1_i32_11 = arith.constant 1 : i32
    %28 = tpu.dynamic_rotate %27 by %c1_i32_11 dim 0 : vector<16x384xf32>, i32 -> vector<16x384xf32>
    %cst_12 = arith.constant 0.000000e+00 : f32
    %29 = vector.shape_cast %18 : vector<16x1xi1> to vector<16x1xi1>
    %30 = vector.broadcast %29 : vector<16x1xi1> to vector<16x384xi1>
    %31 = vector.broadcast %cst_12 : f32 to vector<16x384xf32>
    %32 = arith.select %30, %28, %31 : vector<16x384xi1>, vector<16x384xf32>
    %33 = arith.addf %24, %32 : vector<16x384xf32>
    %c2 = arith.constant 2 : index
    %c0_13 = arith.constant 0 : index
    %c0_14 = arith.constant 0 : index
    %34 = vector.load %arg2[%c2, %c0_13, %c0_14] : memref<3x384x384xbf16, #tpu.memory_space<vmem>>, vector<1x384x384xbf16>
    %35 = vector.shape_cast %34 : vector<1x384x384xbf16> to vector<384x384xbf16>
    %cst_15 = arith.constant dense<0.000000e+00> : vector<16x384xf32>
    %36 = tpu.matmul %21, %35, %cst_15 {dimension_numbers = #tpu.dot_dimension_numbers<[1], [0], [0], [1], [0, 0, 1, 1], [], []>} : vector<16x384xbf16>, vector<384x384xbf16>, vector<16x384xf32> -> vector<16x384xf32>
    %c15_i32_16 = arith.constant 15 : i32
    %37 = tpu.dynamic_rotate %36 by %c15_i32_16 dim 0 : vector<16x384xf32>, i32 -> vector<16x384xf32>
    %cst_17 = arith.constant 0.000000e+00 : f32
    %38 = vector.shape_cast %20 : vector<16x1xi1> to vector<16x1xi1>
    %39 = vector.broadcast %38 : vector<16x1xi1> to vector<16x384xi1>
    %40 = vector.broadcast %cst_17 : f32 to vector<16x384xf32>
    %41 = arith.select %39, %37, %40 : vector<16x384xi1>, vector<16x384xf32>
    %42 = arith.addf %33, %41 : vector<16x384xf32>
    %c0_18 = arith.constant 0 : index
    %c0_19 = arith.constant 0 : index
    %43 = vector.load %arg3[%c0_18, %c0_19] : memref<1x384xf32, #tpu.memory_space<vmem>>, vector<1x384xf32>
    %44 = vector.broadcast %43 : vector<1x384xf32> to vector<16x384xf32>
    %45 = arith.addf %42, %44 : vector<16x384xf32>
    %cst_20 = arith.constant 0.000000e+00 : f32
    %46 = vector.broadcast %cst_20 : f32 to vector<16x384xf32>
    %47 = arith.maximumf %45, %46 : vector<16x384xf32>
    %48 = arith.truncf %47 : vector<16x384xf32> to vector<16x384xbf16>
    %c1_21 = arith.constant 1 : index
    %c0_22 = arith.constant 0 : index
    %c0_23 = arith.constant 0 : index
    %49 = vector.load %arg4[%c1_21, %c0_22, %c0_23] : memref<3x384x384xbf16, #tpu.memory_space<vmem>>, vector<1x384x384xbf16>
    %50 = vector.shape_cast %49 : vector<1x384x384xbf16> to vector<384x384xbf16>
    %cst_24 = arith.constant dense<0.000000e+00> : vector<16x384xf32>
    %51 = tpu.matmul %48, %50, %cst_24 {dimension_numbers = #tpu.dot_dimension_numbers<[1], [0], [0], [1], [0, 0, 1, 1], [], []>} : vector<16x384xbf16>, vector<384x384xbf16>, vector<16x384xf32> -> vector<16x384xf32>
    %c0_25 = arith.constant 0 : index
    %c0_26 = arith.constant 0 : index
    %c0_27 = arith.constant 0 : index
    %52 = vector.load %arg4[%c0_25, %c0_26, %c0_27] : memref<3x384x384xbf16, #tpu.memory_space<vmem>>, vector<1x384x384xbf16>
    %53 = vector.shape_cast %52 : vector<1x384x384xbf16> to vector<384x384xbf16>
    %cst_28 = arith.constant dense<0.000000e+00> : vector<16x384xf32>
    %54 = tpu.matmul %48, %53, %cst_28 {dimension_numbers = #tpu.dot_dimension_numbers<[1], [0], [0], [1], [0, 0, 1, 1], [], []>} : vector<16x384xbf16>, vector<384x384xbf16>, vector<16x384xf32> -> vector<16x384xf32>
    %c1_i32_29 = arith.constant 1 : i32
    %55 = tpu.dynamic_rotate %54 by %c1_i32_29 dim 0 : vector<16x384xf32>, i32 -> vector<16x384xf32>
    %cst_30 = arith.constant 0.000000e+00 : f32
    %56 = vector.shape_cast %18 : vector<16x1xi1> to vector<16x1xi1>
    %57 = vector.broadcast %56 : vector<16x1xi1> to vector<16x384xi1>
    %58 = vector.broadcast %cst_30 : f32 to vector<16x384xf32>
    %59 = arith.select %57, %55, %58 : vector<16x384xi1>, vector<16x384xf32>
    %60 = arith.addf %51, %59 : vector<16x384xf32>
    %c2_31 = arith.constant 2 : index
    %c0_32 = arith.constant 0 : index
    %c0_33 = arith.constant 0 : index
    %61 = vector.load %arg4[%c2_31, %c0_32, %c0_33] : memref<3x384x384xbf16, #tpu.memory_space<vmem>>, vector<1x384x384xbf16>
    %62 = vector.shape_cast %61 : vector<1x384x384xbf16> to vector<384x384xbf16>
    %cst_34 = arith.constant dense<0.000000e+00> : vector<16x384xf32>
    %63 = tpu.matmul %48, %62, %cst_34 {dimension_numbers = #tpu.dot_dimension_numbers<[1], [0], [0], [1], [0, 0, 1, 1], [], []>} : vector<16x384xbf16>, vector<384x384xbf16>, vector<16x384xf32> -> vector<16x384xf32>
    %c15_i32_35 = arith.constant 15 : i32
    %64 = tpu.dynamic_rotate %63 by %c15_i32_35 dim 0 : vector<16x384xf32>, i32 -> vector<16x384xf32>
    %cst_36 = arith.constant 0.000000e+00 : f32
    %65 = vector.shape_cast %20 : vector<16x1xi1> to vector<16x1xi1>
    %66 = vector.broadcast %65 : vector<16x1xi1> to vector<16x384xi1>
    %67 = vector.broadcast %cst_36 : f32 to vector<16x384xf32>
    %68 = arith.select %66, %64, %67 : vector<16x384xi1>, vector<16x384xf32>
    %69 = arith.addf %60, %68 : vector<16x384xf32>
    %c0_37 = arith.constant 0 : index
    %c0_38 = arith.constant 0 : index
    %70 = vector.load %arg5[%c0_37, %c0_38] : memref<1x384xf32, #tpu.memory_space<vmem>>, vector<1x384xf32>
    %71 = vector.broadcast %70 : vector<1x384xf32> to vector<16x384xf32>
    %72 = arith.addf %69, %71 : vector<16x384xf32>
    %cst_39 = arith.constant 0.000000e+00 : f32
    %73 = vector.broadcast %cst_39 : f32 to vector<16x384xf32>
    %74 = arith.maximumf %72, %73 : vector<16x384xf32>
    %75 = arith.truncf %74 : vector<16x384xf32> to vector<16x384xbf16>
    %c0_40 = arith.constant 0 : index
    %c0_41 = arith.constant 0 : index
    %76 = vector.load %arg6[%c0_40, %c0_41] : memref<16x384xbf16, #tpu.memory_space<vmem>>, vector<16x384xbf16>
    tpu.vector_store %arg6[%c0_40, %c0_41], %75 {strides = array<i32>} : memref<16x384xbf16, #tpu.memory_space<vmem>>, vector<16x384xbf16>,
    return
  }
  func.func @transform_0(%arg0: i32) -> (i32, i32) {
    %c0_i32 = arith.constant 0 : i32
    %c0_i32_0 = arith.constant 0 : i32
    return %arg0, %c0_i32 : i32, i32
  }
  func.func @transform_1(%arg0: i32) -> (i32, i32, i32) {
    %c0_i32 = arith.constant 0 : i32
    %c0_i32_0 = arith.constant 0 : i32
    %c0_i32_1 = arith.constant 0 : i32
    %c0_i32_2 = arith.constant 0 : i32
    return %c0_i32, %c0_i32_0, %c0_i32_1 : i32, i32, i32
  }
  func.func @transform_2(%arg0: i32) -> (i32, i32) {
    %c0_i32 = arith.constant 0 : i32
    %c0_i32_0 = arith.constant 0 : i32
    %c0_i32_1 = arith.constant 0 : i32
    return %c0_i32, %c0_i32_0 : i32, i32
  }
  func.func @transform_3(%arg0: i32) -> (i32, i32, i32) {
    %c0_i32 = arith.constant 0 : i32
    %c0_i32_0 = arith.constant 0 : i32
    %c0_i32_1 = arith.constant 0 : i32
    %c0_i32_2 = arith.constant 0 : i32
    return %c0_i32, %c0_i32_0, %c0_i32_1 : i32, i32, i32
  }
  func.func @transform_4(%arg0: i32) -> (i32, i32) {
    %c0_i32 = arith.constant 0 : i32
    %c0_i32_0 = arith.constant 0 : i32
    %c0_i32_1 = arith.constant 0 : i32
    return %c0_i32, %c0_i32_0 : i32, i32
  }
  func.func @transform_5(%arg0: i32) -> (i32, i32) {
    %c0_i32 = arith.constant 0 : i32
    %c0_i32_0 = arith.constant 0 : i32
    return %arg0, %c0_i32 : i32, i32
  }
}

</mosaic_0001>

<llo_original>
// kernel: denoising_autoencoder_pallas.1
$region0: #{denoising_autoencoder_pallas.1}
  #allocation0 [shape = 'u32[]', space=smem, size = 0x4, offset = 0x4, fixed_abs, tag = 'smem constant byte address 0x4 - core index']
  #allocation1 [shape = 'u32[72,128]{1,0:T(1,128)}', space=vmem, size = 0x9000, scoped, tag = 'internal scratch']
  %s0 = inlined_call_operand.vmem [shape: bf16[32,384], index: 0, kind: input, shape index: {}]
  %s1 = inlined_call_operand.vmem [shape: bf16[3,384,384], index: 1, kind: input, shape index: {}]
  %s2 = inlined_call_operand.vmem [shape: f32[1,384], index: 2, kind: input, shape index: {}]
  %s3 = inlined_call_operand.vmem [shape: bf16[3,384,384], index: 3, kind: input, shape index: {}]
  %s4 = inlined_call_operand.vmem [shape: f32[1,384], index: 4, kind: input, shape index: {}]
  %s5 = inlined_call_operand.vmem [shape: bf16[32,384], index: 5, kind: output, shape index: {}]
  %s6 = sld [smem:[#allocation0]]
  $region53: #{denoising_autoencoder_pallas.1} parent=0
    _
  %s8 = ssub.s32 1, %s6
  %s9 = scalar_select 0, %s8, %s6
  loop: start=0, step=1, limit=4
  $region2: #{denoising_autoencoder_pallas.1} parent=0 // loop_pre_header
    _
  $region3: #{denoising_autoencoder_pallas.1} parent=0 // loop_header
    %s11 = sphi 0, %s15
    %p12 = scmp.ge.s32.totalorder %s11, 4
    %s21 = sphi 0, %s23
    %s24 = sphi 0, %s21
    %s25 = sphi 0, %s24
    %s41 = sphi 0, %s25
    %s45 = sphi 0, %s45
    %s47 = sphi 0, %s45
    %s48 = sphi 0, %s47
    %s62 = sphi 0, %s48
    %s66 = sphi 0, %s66
    %s68 = sphi 0, %s66
    %s69 = sphi 0, %s68
    %s83 = sphi 0, %s69
    %s87 = sphi 0, %s87
    %s89 = sphi 0, %s87
    %s90 = sphi 0, %s89
    %s104 = sphi 0, %s90
    %s108 = sphi 0, %s108
    %s110 = sphi 0, %s108
    %s111 = sphi 0, %s110
    %s125 = sphi 0, %s111
    %s131 = sphi 0, %s133
    %s134 = sphi 0, %s131
    %s135 = sphi 0, %s134
    %s151 = sphi 0, %s135
  $region4: #{denoising_autoencoder_pallas.1} parent=0 // loop_header_branch
    %14 = sbr.rel (%p12) target = $region8
  $region5: #{denoising_autoencoder_pallas.1} parent=0 // loop_body
    %s16 = ssub.s32 %s11, 1
    %s17 = ssub.s32 %s11, 2
    %s18 = sadd.s32 %s11, 1
    %s19 = ssub.s32 %s11, %s18
    %p20 = scmp.eq.s32.totalorder %s19, 0
    %s22 = sadd.s32 %s21, 1
    %s23 = scalar_select %p20, %s21, %s22
    %p26 = pneg %p20
    %p27 = scmp.eq.s32.totalorder %s11, 1
    %p28 = por %p26, %p27
    %p29 = scmp.ne.s32.totalorder %s21, %s24
    %p30 = scmp.eq.s32.totalorder %s11, 0
    %p31 = por %p29, %p30
    %p32 = scmp.ne.s32.totalorder %s21, %s24
    %p33 = scmp.eq.s32.totalorder %s16, 1
    %p34 = por %p32, %p33
    %p35 = scmp.ne.s32.totalorder %s24, %s25
    %p36 = scmp.eq.s32.totalorder %s16, 0
    %p37 = por %p35, %p36
    %p38 = scmp.ne.s32.totalorder %s24, %s25
    %p39 = scmp.eq.s32.totalorder %s17, 1
    %p40 = por %p38, %p39
    %p42 = scmp.ne.s32.totalorder %s25, %s41
    %p43 = scmp.eq.s32.totalorder %s17, 0
    %p44 = por %p42, %p43
    %s46 = sadd.s32 %s45, 1
    %p49 = scmp.eq.s32.totalorder %s11, 1
    %p50 = scmp.ne.s32.totalorder %s45, %s47
    %p51 = scmp.eq.s32.totalorder %s11, 0
    %p52 = por %p50, %p51
    %p53 = scmp.ne.s32.totalorder %s45, %s47
    %p54 = scmp.eq.s32.totalorder %s16, 1
    %p55 = por %p53, %p54
    %p56 = scmp.ne.s32.totalorder %s47, %s48
    %p57 = scmp.eq.s32.totalorder %s16, 0
    %p58 = por %p56, %p57
    %p59 = scmp.ne.s32.totalorder %s47, %s48
    %p60 = scmp.eq.s32.totalorder %s17, 1
    %p61 = por %p59, %p60
    %p63 = scmp.ne.s32.totalorder %s48, %s62
    %p64 = scmp.eq.s32.totalorder %s17, 0
    %p65 = por %p63, %p64
    %s67 = sadd.s32 %s66, 1
    %p70 = scmp.eq.s32.totalorder %s11, 1
    %p71 = scmp.ne.s32.totalorder %s66, %s68
    %p72 = scmp.eq.s32.totalorder %s11, 0
    %p73 = por %p71, %p72
    %p74 = scmp.ne.s32.totalorder %s66, %s68
    %p75 = scmp.eq.s32.totalorder %s16, 1
    %p76 = por %p74, %p75
    %p77 = scmp.ne.s32.totalorder %s68, %s69
    %p78 = scmp.eq.s32.totalorder %s16, 0
    %p79 = por %p77, %p78
    %p80 = scmp.ne.s32.totalorder %s68, %s69
    %p81 = scmp.eq.s32.totalorder %s17, 1
    %p82 = por %p80, %p81
    %p84 = scmp.ne.s32.totalorder %s69, %s83
    %p85 = scmp.eq.s32.totalorder %s17, 0
    %p86 = por %p84, %p85
    %s88 = sadd.s32 %s87, 1
    %p91 = scmp.eq.s32.totalorder %s11, 1
    %p92 = scmp.ne.s32.totalorder %s87, %s89
    %p93 = scmp.eq.s32.totalorder %s11, 0
    %p94 = por %p92, %p93
    %p95 = scmp.ne.s32.totalorder %s87, %s89
    %p96 = scmp.eq.s32.totalorder %s16, 1
    %p97 = por %p95, %p96
    %p98 = scmp.ne.s32.totalorder %s89, %s90
    %p99 = scmp.eq.s32.totalorder %s16, 0
    %p100 = por %p98, %p99
    %p101 = scmp.ne.s32.totalorder %s89, %s90
    %p102 = scmp.eq.s32.totalorder %s17, 1
    %p103 = por %p101, %p102
    %p105 = scmp.ne.s32.totalorder %s90, %s104
    %p106 = scmp.eq.s32.totalorder %s17, 0
    %p107 = por %p105, %p106
    %s109 = sadd.s32 %s108, 1
    %p112 = scmp.eq.s32.totalorder %s11, 1
    %p113 = scmp.ne.s32.totalorder %s108, %s110
    %p114 = scmp.eq.s32.totalorder %s11, 0
    %p115 = por %p113, %p114
    %p116 = scmp.ne.s32.totalorder %s108, %s110
    %p117 = scmp.eq.s32.totalorder %s16, 1
    %p118 = por %p116, %p117
    %p119 = scmp.ne.s32.totalorder %s110, %s111
    %p120 = scmp.eq.s32.totalorder %s16, 0
    %p121 = por %p119, %p120
    %p122 = scmp.ne.s32.totalorder %s110, %s111
    %p123 = scmp.eq.s32.totalorder %s17, 1
    %p124 = por %p122, %p123
    %p126 = scmp.ne.s32.totalorder %s111, %s125
    %p127 = scmp.eq.s32.totalorder %s17, 0
    %p128 = por %p126, %p127
    %s129 = ssub.s32 %s11, %s18
    %p130 = scmp.eq.s32.totalorder %s129, 0
    %s132 = sadd.s32 %s131, 1
    %s133 = scalar_select %p130, %s131, %s132
    %p136 = pneg %p130
    %p137 = scmp.eq.s32.totalorder %s11, 1
    %p138 = por %p136, %p137
    %p139 = scmp.ne.s32.totalorder %s131, %s134
    %p140 = scmp.eq.s32.totalorder %s11, 0
    %p141 = por %p139, %p140
    %p142 = scmp.ne.s32.totalorder %s131, %s134
    %p143 = scmp.eq.s32.totalorder %s16, 1
    %p144 = por %p142, %p143
    %p145 = scmp.ne.s32.totalorder %s134, %s135
    %p146 = scmp.eq.s32.totalorder %s16, 0
    %p147 = por %p145, %p146
    %p148 = scmp.ne.s32.totalorder %s134, %s135
    %p149 = scmp.eq.s32.totalorder %s17, 1
    %p150 = por %p148, %p149
    %p152 = scmp.ne.s32.totalorder %s135, %s151
    %p153 = scmp.eq.s32.totalorder %s17, 0
    %p154 = por %p152, %p153
    %p155 = scmp.le.s32.totalorder 1, %s11
    %p156 = scmp.lt.s32.totalorder %s11, 3
    %p157 = pnand %p155, %p156
    %p158 = pneg %p157
    // Predicated region
    $region9: #{denoising_autoencoder_pallas.1} parent=5 // pred_check
      _
    $region10: #{denoising_autoencoder_pallas.1} parent=5 // pred_check_branch
      %160 = sbr.rel (%p157) target = $region12
    $region11: #{denoising_autoencoder_pallas.1} parent=5 // pred_region
      %s161 = ssub.s32 %s11, 1
      // Predicated region
      $region13: #{denoising_autoencoder_pallas.1} parent=11 // pred_check
        %p162 = pneg %p58
      $region14: #{denoising_autoencoder_pallas.1} parent=11 // pred_check_branch
        %164 = sbr.rel (%p162) target = $region16
      $region15: #{denoising_autoencoder_pallas.1} parent=11 // pred_region
        _
      $region16: #{denoising_autoencoder_pallas.1} parent=11 // pred_fallthru
        _
      // Predicated region
      $region17: #{denoising_autoencoder_pallas.1} parent=11 // pred_check
        %p165 = pneg %p79
      $region18: #{denoising_autoencoder_pallas.1} parent=11 // pred_check_branch
        %167 = sbr.rel (%p165) target = $region20
      $region19: #{denoising_autoencoder_pallas.1} parent=11 // pred_region
        _
      $region20: #{denoising_autoencoder_pallas.1} parent=11 // pred_fallthru
        _
      // Predicated region
      $region21: #{denoising_autoencoder_pallas.1} parent=11 // pred_check
        %p168 = pneg %p100
      $region22: #{denoising_autoencoder_pallas.1} parent=11 // pred_check_branch
        %170 = sbr.rel (%p168) target = $region24
      $region23: #{denoising_autoencoder_pallas.1} parent=11 // pred_region
        _
      $region24: #{denoising_autoencoder_pallas.1} parent=11 // pred_fallthru
        _
      // Predicated region
      $region25: #{denoising_autoencoder_pallas.1} parent=11 // pred_check
        %p171 = pneg %p121
      $region26: #{denoising_autoencoder_pallas.1} parent=11 // pred_check_branch
        %173 = sbr.rel (%p171) target = $region28
      $region27: #{denoising_autoencoder_pallas.1} parent=11 // pred_region
        _
      $region28: #{denoising_autoencoder_pallas.1} parent=11 // pred_fallthru
        _
    $region12: #{denoising_autoencoder_pallas.1} parent=5 // pred_fallthru
      _
    %p174 = scmp.lt.s32.totalorder %s11, 2
    // Predicated region
    $region29: #{denoising_autoencoder_pallas.1} parent=5 // pred_check
      %p175 = pneg %p174
    $region30: #{denoising_autoencoder_pallas.1} parent=5 // pred_check_branch
      %177 = sbr.rel (%p175) target = $region32
    $region31: #{denoising_autoencoder_pallas.1} parent=5 // pred_region
      // Predicated region
      $region33: #{denoising_autoencoder_pallas.1} parent=31 // pred_check
        %p178 = pneg %p31
      $region34: #{denoising_autoencoder_pallas.1} parent=31 // pred_check_branch
        %180 = sbr.rel (%p178) target = $region36
      $region35: #{denoising_autoencoder_pallas.1} parent=31 // pred_region
        %s181 = smul.u32 2, %s11
        %p182 = scmp.lt.s32.totalorder %s181, 3
        %s183 = scalar_select %p182, %s181, 3
        %s184 = smul.addr %s183, 3
        %s185 = smul.addr %s184, 4
        %s186 = scalar_lea.vmem %s0, %s185
        %s187 = smul.u32 2, %s11
      $region36: #{denoising_autoencoder_pallas.1} parent=31 // pred_fallthru
        _
    $region32: #{denoising_autoencoder_pallas.1} parent=5 // pred_fallthru
      _
    %p188 = scmp.le.s32.totalorder 1, %s11
    %p189 = scmp.lt.s32.totalorder %s11, 3
    %p190 = pnand %p188, %p189
    %p191 = pneg %p190
    // Predicated region
    $region37: #{denoising_autoencoder_pallas.1} parent=5 // pred_check
      _
    $region38: #{denoising_autoencoder_pallas.1} parent=5 // pred_check_branch
      %193 = sbr.rel (%p190) target = $region40
    $region39: #{denoising_autoencoder_pallas.1} parent=5 // pred_region
      %s194 = ssub.s32 %s11, 1
      %s195 = smul.u32 2, %s16
      %p196 = scmp.lt.s32.totalorder %s195, 3
      %s197 = scalar_select %p196, %s195, 3
      %s198 = smul.addr %s197, 3
      %s199 = smul.addr %s198, 4
      %s200 = scalar_lea.vmem %s0, %s199
      %p201 = pneg %p37
      %p202 = pneg %p34
      %p203 = pneg %p58
      %p204 = pneg %p55
      %p205 = pneg %p79
      %p206 = pneg %p76
      %p207 = pneg %p100
      %p208 = pneg %p97
      %p209 = pneg %p121
      %p210 = pneg %p118
      %p211 = pneg %p147
      %p212 = pneg %p144
      %s213 = smul.u32 2, %s16
      %p214 = scmp.lt.s32.totalorder %s213, 3
      %s215 = scalar_select %p214, %s213, 3
      %s216 = smul.addr %s215, 3
      %s217 = smul.addr %s216, 4
      %s218 = scalar_lea.vmem %s5, %s217
      %s219 = smul.u32 2, %s16
      %p220 = scmp.lt.s32.totalorder %s219, 3
      %s221 = scalar_select %p220, %s219, 3
      %s222 = smul.addr %s221, 3
      %s223 = smul.addr %s222, 4
      %s224 = scalar_lea.vmem %s0, %s223
      %s225 = smul.u32 2, %s16
      %s226 = smul.u32 2, %s16
      %p227 = scmp.lt.s32.totalorder %s226, 3
      %s228 = scalar_select %p227, %s226, 3
      %s229 = smul.addr %s228, 3
      %s230 = smul.addr %s229, 4
      %s231 = scalar_lea.vmem %s5, %s230
      %s232 = smul.u32 2, %s16
      %v233 = vlaneseq
      %v234 = vshrl.u32 %v233, 7
      %v235 = vadd.s32 %v234, 8
      %vm236 = vcmp.lt.s32.totalorder %v234, 0
      %v237 = vsub.s32 0, %v234
      %v238 = vsel %vm236, %v237, %v234
      %v239 = vshrl.u32 %v238, 4
      %v240 = vand.u32 %v238, 15
      %v241 = vsub.s32 0, %v240
      %v242 = vsel %vm236, %v241, %v240
      %vm243 = vcmp.lt.s32.totalorder %v235, 0
      %v244 = vsub.s32 0, %v235
      %v245 = vsel %vm243, %v244, %v235
      %v246 = vshrl.u32 %v245, 4
      %v247 = vand.u32 %v245, 15
      %v248 = vsub.s32 0, %v247
      %v249 = vsel %vm243, %v248, %v247
      %vm250 = vcmp.ne.s32.totalorder %v242, 0
      %vm251 = vcmp.ne.s32.totalorder %v249, 0
      %vm252 = vcmp.lt.s32.totalorder %v242, 0
      %vm253 = vcmp.lt.s32.totalorder %v249, 0
      %vm254 = vmand %vm252, %vm250
      %vm255 = vmand %vm253, %vm251
      %v256 = vadd.s32 %v242, 16
      %v257 = vadd.s32 %v249, 16
      %v258 = vsel %vm254, %v256, %v242
      %v259 = vsel %vm255, %v257, %v249
      %vm260 = vcmp.ne.s32.totalorder %v258, 0
      %vm261 = vcmp.ne.s32.totalorder %v259, 0
      %vm262 = vcmp.ne.s32.totalorder %v258, 15
      %vm263 = vcmp.ne.s32.totalorder %v259, 15
      %v264 = vld [vmem:[%s224] sm:$0xff]
      %v265 = vld [vmem:[%s224 + $0x8] sm:$0xf]
      %v266 = vld [vmem:[%s224 + $0xc] sm:$0xff]
      %v267 = vld [vmem:[%s224 + $0x14] sm:$0xf]
      %s268 = scalar_lea.vmem %s1, 576
      %v269 = vld [vmem:[%s268] sm:$0xff]
      %v270 = vld [vmem:[%s268 + $0x8] sm:$0xf]
      %v271 = vld [vmem:[%s268 + $0xc] sm:$0xff]
      %v272 = vld [vmem:[%s268 + $0x14] sm:$0xf]
      %v273 = vld [vmem:[%s268 + $0x18] sm:$0xff]
      %v274 = vld [vmem:[%s268 + $0x20] sm:$0xf]
      %v275 = vld [vmem:[%s268 + $0x24] sm:$0xff]
      %v276 = vld [vmem:[%s268 + $0x2c] sm:$0xf]
      %v277 = vld [vmem:[%s268 + $0x30] sm:$0xff]
      %v278 = vld [vmem:[%s268 + $0x38] sm:$0xf]
      %v279 = vld [vmem:[%s268 + $0x3c] sm:$0xff]
      %v280 = vld [vmem:[%s268 + $0x44] sm:$0xf]
      %v281 = vld [vmem:[%s268 + $0x48] sm:$0xff]
      %v282 = vld [vmem:[%s268 + $0x50] sm:$0xf]
      %v283 = vld [vmem:[%s268 + $0x54] sm:$0xff]
      %v284 = vld [vmem:[%s268 + $0x5c] sm:$0xf]
      %v285 = vld [vmem:[%s268 + $0x60] sm:$0xff]
      %v286 = vld [vmem:[%s268 + $0x68] sm:$0xf]
      %v287 = vld [vmem:[%s268 + $0x6c] sm:$0xff]
      %v288 = vld [vmem:[%s268 + $0x74] sm:$0xf]
      %v289 = vld [vmem:[%s268 + $0x78] sm:$0xff]
      %v290 = vld [vmem:[%s268 + $0x80] sm:$0xf]
      %v291 = vld [vmem:[%s268 + $0x84] sm:$0xff]
      %v292 = vld [vmem:[%s268 + $0x8c] sm:$0xf]
      %v293 = vld [vmem:[%s268 + $0x90] sm:$0xff]
      %v294 = vld [vmem:[%s268 + $0x98] sm:$0xf]
      %v295 = vld [vmem:[%s268 + $0x9c] sm:$0xff]
      %v296 = vld [vmem:[%s268 + $0xa4] sm:$0xf]
      %v297 = vld [vmem:[%s268 + $0xa8] sm:$0xff]
      %v298 = vld [vmem:[%s268 + $0xb0] sm:$0xf]
      %v299 = vld [vmem:[%s268 + $0xb4] sm:$0xff]
      %v300 = vld [vmem:[%s268 + $0xbc] sm:$0xf]
      %v301 = vld [vmem:[%s268 + $0xc0] sm:$0xff]
      %v302 = vld [vmem:[%s268 + $0xc8] sm:$0xf]
      %v303 = vld [vmem:[%s268 + $0xcc] sm:$0xff]
      %v304 = vld [vmem:[%s268 + $0xd4] sm:$0xf]
      %v305 = vld [vmem:[%s268 + $0xd8] sm:$0xff]
      %v306 = vld [vmem:[%s268 + $0xe0] sm:$0xf]
      %v307 = vld [vmem:[%s268 + $0xe4] sm:$0xff]
      %v308 = vld [vmem:[%s268 + $0xec] sm:$0xf]
      %v309 = vld [vmem:[%s268 + $0xf0] sm:$0xff]
      %v310 = vld [vmem:[%s268 + $0xf8] sm:$0xf]
      %v311 = vld [vmem:[%s268 + $0xfc] sm:$0xff]
      %v312 = vld [vmem:[%s268 + $0x104] sm:$0xf]
      %v313 = vld [vmem:[%s268 + $0x108] sm:$0xff]
      %v314 = vld [vmem:[%s268 + $0x110] sm:$0xf]
      %v315 = vld [vmem:[%s268 + $0x114] sm:$0xff]
      %v316 = vld [vmem:[%s268 + $0x11c] sm:$0xf]
      %v317 = vld [vmem:[%s268 + $0x120] sm:$0xff]
      %v318 = vld [vmem:[%s268 + $0x128] sm:$0xf]
      %v319 = vld [vmem:[%s268 + $0x12c] sm:$0xff]
      %v320 = vld [vmem:[%s268 + $0x134] sm:$0xf]
      %v321 = vld [vmem:[%s268 + $0x138] sm:$0xff]
      %v322 = vld [vmem:[%s268 + $0x140] sm:$0xf]
      %v323 = vld [vmem:[%s268 + $0x144] sm:$0xff]
      %v324 = vld [vmem:[%s268 + $0x14c] sm:$0xf]
      %v325 = vld [vmem:[%s268 + $0x150] sm:$0xff]
      %v326 = vld [vmem:[%s268 + $0x158] sm:$0xf]
      %v327 = vld [vmem:[%s268 + $0x15c] sm:$0xff]
      %v328 = vld [vmem:[%s268 + $0x164] sm:$0xf]
      %v329 = vld [vmem:[%s268 + $0x168] sm:$0xff]
      %v330 = vld [vmem:[%s268 + $0x170] sm:$0xf]
      %v331 = vld [vmem:[%s268 + $0x174] sm:$0xff]
      %v332 = vld [vmem:[%s268 + $0x17c] sm:$0xf]
      %v333 = vld [vmem:[%s268 + $0x180] sm:$0xff]
      %v334 = vld [vmem:[%s268 + $0x188] sm:$0xf]
      %v335 = vld [vmem:[%s268 + $0x18c] sm:$0xff]
      %v336 = vld [vmem:[%s268 + $0x194] sm:$0xf]
      %v337 = vld [vmem:[%s268 + $0x198] sm:$0xff]
      %v338 = vld [vmem:[%s268 + $0x1a0] sm:$0xf]
      %v339 = vld [vmem:[%s268 + $0x1a4] sm:$0xff]
      %v340 = vld [vmem:[%s268 + $0x1ac] sm:$0xf]
      %v341 = vld [vmem:[%s268 + $0x1b0] sm:$0xff]
      %v342 = vld [vmem:[%s268 + $0x1b8] sm:$0xf]
      %v343 = vld [vmem:[%s268 + $0x1bc] sm:$0xff]
      %v344 = vld [vmem:[%s268 + $0x1c4] sm:$0xf]
      %v345 = vld [vmem:[%s268 + $0x1c8] sm:$0xff]
      %v346 = vld [vmem:[%s268 + $0x1d0] sm:$0xf]
      %v347 = vld [vmem:[%s268 + $0x1d4] sm:$0xff]
      %v348 = vld [vmem:[%s268 + $0x1dc] sm:$0xf]
      %v349 = vld [vmem:[%s268 + $0x1e0] sm:$0xff]
      %v350 = vld [vmem:[%s268 + $0x1e8] sm:$0xf]
      %v351 = vld [vmem:[%s268 + $0x1ec] sm:$0xff]
      %v352 = vld [vmem:[%s268 + $0x1f4] sm:$0xf]
      %v353 = vld [vmem:[%s268 + $0x1f8] sm:$0xff]
      %v354 = vld [vmem:[%s268 + $0x200] sm:$0xf]
      %v355 = vld [vmem:[%s268 + $0x204] sm:$0xff]
      %v356 = vld [vmem:[%s268 + $0x20c] sm:$0xf]
      %v357 = vld [vmem:[%s268 + $0x210] sm:$0xff]
      %v358 = vld [vmem:[%s268 + $0x218] sm:$0xf]
      %v359 = vld [vmem:[%s268 + $0x21c] sm:$0xff]
      %v360 = vld [vmem:[%s268 + $0x224] sm:$0xf]
      %v361 = vld [vmem:[%s268 + $0x228] sm:$0xff]
      %v362 = vld [vmem:[%s268 + $0x230] sm:$0xf]
      %v363 = vld [vmem:[%s268 + $0x234] sm:$0xff]
      %v364 = vld [vmem:[%s268 + $0x23c] sm:$0xf]
      %v365 = vld [vmem:[%s1] sm:$0xff]
      %v366 = vld [vmem:[%s1 + $0x8] sm:$0xf]
      %v367 = vld [vmem:[%s1 + $0xc] sm:$0xff]
      %v368 = vld [vmem:[%s1 + $0x14] sm:$0xf]
      %v369 = vld [vmem:[%s1 + $0x18] sm:$0xff]
      %v370 = vld [vmem:[%s1 + $0x20] sm:$0xf]
      %v371 = vld [vmem:[%s1 + $0x24] sm:$0xff]
      %v372 = vld [vmem:[%s1 + $0x2c] sm:$0xf]
      %v373 = vld [vmem:[%s1 + $0x30] sm:$0xff]
      %v374 = vld [vmem:[%s1 + $0x38] sm:$0xf]
      %v375 = vld [vmem:[%s1 + $0x3c] sm:$0xff]
      %v376 = vld [vmem:[%s1 + $0x44] sm:$0xf]
      %v377 = vld [vmem:[%s1 + $0x48] sm:$0xff]
      %v378 = vld [vmem:[%s1 + $0x50] sm:$0xf]
      %v379 = vld [vmem:[%s1 + $0x54] sm:$0xff]
      %v380 = vld [vmem:[%s1 + $0x5c] sm:$0xf]
      %v381 = vld [vmem:[%s1 + $0x60] sm:$0xff]
      %v382 = vld [vmem:[%s1 + $0x68] sm:$0xf]
      %v383 = vld [vmem:[%s1 + $0x6c] sm:$0xff]
      %v384 = vld [vmem:[%s1 + $0x74] sm:$0xf]
      %v385 = vld [vmem:[%s1 + $0x78] sm:$0xff]
      %v386 = vld [vmem:[%s1 + $0x80] sm:$0xf]
      %v387 = vld [vmem:[%s1 + $0x84] sm:$0xff]
      %v388 = vld [vmem:[%s1 + $0x8c] sm:$0xf]
      %v389 = vld [vmem:[%s1 + $0x90] sm:$0xff]
      %v390 = vld [vmem:[%s1 + $0x98] sm:$0xf]
      %v391 = vld [vmem:[%s1 + $0x9c] sm:$0xff]
      %v392 = vld [vmem:[%s1 + $0xa4] sm:$0xf]
      %v393 = vld [vmem:[%s1 + $0xa8] sm:$0xff]
      %v394 = vld [vmem:[%s1 + $0xb0] sm:$0xf]
      %v395 = vld [vmem:[%s1 + $0xb4] sm:$0xff]
      %v396 = vld [vmem:[%s1 + $0xbc] sm:$0xf]
      %v397 = vld [vmem:[%s1 + $0xc0] sm:$0xff]
      %v398 = vld [vmem:[%s1 + $0xc8] sm:$0xf]
      %v399 = vld [vmem:[%s1 + $0xcc] sm:$0xff]
      %v400 = vld [vmem:[%s1 + $0xd4] sm:$0xf]
      %v401 = vld [vmem:[%s1 + $0xd8] sm:$0xff]
      %v402 = vld [vmem:[%s1 + $0xe0] sm:$0xf]
      %v403 = vld [vmem:[%s1 + $0xe4] sm:$0xff]
      %v404 = vld [vmem:[%s1 + $0xec] sm:$0xf]
      %v405 = vld [vmem:[%s1 + $0xf0] sm:$0xff]
      %v406 = vld [vmem:[%s1 + $0xf8] sm:$0xf]
      %v407 = vld [vmem:[%s1 + $0xfc] sm:$0xff]
      %v408 = vld [vmem:[%s1 + $0x104] sm:$0xf]
      %v409 = vld [vmem:[%s1 + $0x108] sm:$0xff]
      %v410 = vld [vmem:[%s1 + $0x110] sm:$0xf]
      %v411 = vld [vmem:[%s1 + $0x114] sm:$0xff]
      %v412 = vld [vmem:[%s1 + $0x11c] sm:$0xf]
      %v413 = vld [vmem:[%s1 + $0x120] sm:$0xff]
      %v414 = vld [vmem:[%s1 + $0x128] sm:$0xf]
      %v415 = vld [vmem:[%s1 + $0x12c] sm:$0xff]
      %v416 = vld [vmem:[%s1 + $0x134] sm:$0xf]
      %v417 = vld [vmem:[%s1 + $0x138] sm:$0xff]
      %v418 = vld [vmem:[%s1 + $0x140] sm:$0xf]
      %v419 = vld [vmem:[%s1 + $0x144] sm:$0xff]
      %v420 = vld [vmem:[%s1 + $0x14c] sm:$0xf]
      %v421 = vld [vmem:[%s1 + $0x150] sm:$0xff]
      %v422 = vld [vmem:[%s1 + $0x158] sm:$0xf]
      %v423 = vld [vmem:[%s1 + $0x15c] sm:$0xff]
      %v424 = vld [vmem:[%s1 + $0x164] sm:$0xf]
      %v425 = vld [vmem:[%s1 + $0x168] sm:$0xff]
      %v426 = vld [vmem:[%s1 + $0x170] sm:$0xf]
      %v427 = vld [vmem:[%s1 + $0x174] sm:$0xff]
      %v428 = vld [vmem:[%s1 + $0x17c] sm:$0xf]
      %v429 = vld [vmem:[%s1 + $0x180] sm:$0xff]
      %v430 = vld [vmem:[%s1 + $0x188] sm:$0xf]
      %v431 = vld [vmem:[%s1 + $0x18c] sm:$0xff]
      %v432 = vld [vmem:[%s1 + $0x194] sm:$0xf]
      %v433 = vld [vmem:[%s1 + $0x198] sm:$0xff]
      %v434 = vld [vmem:[%s1 + $0x1a0] sm:$0xf]
      %v435 = vld [vmem:[%s1 + $0x1a4] sm:$0xff]
      %v436 = vld [vmem:[%s1 + $0x1ac] sm:$0xf]
      %v437 = vld [vmem:[%s1 + $0x1b0] sm:$0xff]
      %v438 = vld [vmem:[%s1 + $0x1b8] sm:$0xf]
      %v439 = vld [vmem:[%s1 + $0x1bc] sm:$0xff]
      %v440 = vld [vmem:[%s1 + $0x1c4] sm:$0xf]
      %v441 = vld [vmem:[%s1 + $0x1c8] sm:$0xff]
      %v442 = vld [vmem:[%s1 + $0x1d0] sm:$0xf]
      %v443 = vld [vmem:[%s1 + $0x1d4] sm:$0xff]
      %v444 = vld [vmem:[%s1 + $0x1dc] sm:$0xf]
      %v445 = vld [vmem:[%s1 + $0x1e0] sm:$0xff]
      %v446 = vld [vmem:[%s1 + $0x1e8] sm:$0xf]
      %v447 = vld [vmem:[%s1 + $0x1ec] sm:$0xff]
      %v448 = vld [vmem:[%s1 + $0x1f4] sm:$0xf]
      %v449 = vld [vmem:[%s1 + $0x1f8] sm:$0xff]
      %v450 = vld [vmem:[%s1 + $0x200] sm:$0xf]
      %v451 = vld [vmem:[%s1 + $0x204] sm:$0xff]
      %v452 = vld [vmem:[%s1 + $0x20c] sm:$0xf]
      %v453 = vld [vmem:[%s1 + $0x210] sm:$0xff]
      %v454 = vld [vmem:[%s1 + $0x218] sm:$0xf]
      %v455 = vld [vmem:[%s1 + $0x21c] sm:$0xff]
      %v456 = vld [vmem:[%s1 + $0x224] sm:$0xf]
      %v457 = vld [vmem:[%s1 + $0x228] sm:$0xff]
      %v458 = vld [vmem:[%s1 + $0x230] sm:$0xf]
      %v459 = vld [vmem:[%s1 + $0x234] sm:$0xff]
      %v460 = vld [vmem:[%s1 + $0x23c] sm:$0xf]
      %v465 = vunpack.c.l.b16 %v264
      %v466 = vunpack.c.h.b16 %v264
      %v467 = vunpack.c.l.b16 %v265
      %v468 = vunpack.c.l.b16 %v266
      %v469 = vunpack.c.h.b16 %v266
      %v470 = vunpack.c.l.b16 %v267
      %v471 = vpack.c.b16 %v468, %v465
      %v472 = vpack.c.b16 %v469, %v466
      %v473 = vpack.c.b16 %v470, %v467
      %v573 = vunpack.c.l.b16 %v365
      %v574 = vunpack.c.h.b16 %v365
      %v575 = vunpack.c.l.b16 %v366
      %v576 = vunpack.c.l.b16 %v367
      %v577 = vunpack.c.h.b16 %v367
      %v578 = vunpack.c.l.b16 %v368
      %v579 = vunpack.c.l.b16 %v369
      %v580 = vunpack.c.h.b16 %v369
      %v581 = vunpack.c.l.b16 %v370
      %v582 = vunpack.c.l.b16 %v371
      %v583 = vunpack.c.h.b16 %v371
      %v584 = vunpack.c.l.b16 %v372
      %v585 = vunpack.c.l.b16 %v373
      %v586 = vunpack.c.h.b16 %v373
      %v587 = vunpack.c.l.b16 %v374
      %v588 = vunpack.c.l.b16 %v375
      %v589 = vunpack.c.h.b16 %v375
      %v590 = vunpack.c.l.b16 %v376
      %v591 = vunpack.c.l.b16 %v377
      %v592 = vunpack.c.h.b16 %v377
      %v593 = vunpack.c.l.b16 %v378
      %v594 = vunpack.c.l.b16 %v379
      %v595 = vunpack.c.h.b16 %v379
      %v596 = vunpack.c.l.b16 %v380
      %v597 = vunpack.c.l.b16 %v381
      %v598 = vunpack.c.h.b16 %v381
      %v599 = vunpack.c.l.b16 %v382
      %v600 = vunpack.c.l.b16 %v383
      %v601 = vunpack.c.h.b16 %v383
      %v602 = vunpack.c.l.b16 %v384
      %v603 = vunpack.c.l.b16 %v385
      %v604 = vunpack.c.h.b16 %v385
      %v605 = vunpack.c.l.b16 %v386
      %v606 = vunpack.c.l.b16 %v387
      %v607 = vunpack.c.h.b16 %v387
      %v608 = vunpack.c.l.b16 %v388
      %v609 = vunpack.c.l.b16 %v389
      %v610 = vunpack.c.h.b16 %v389
      %v611 = vunpack.c.l.b16 %v390
      %v612 = vunpack.c.l.b16 %v391
      %v613 = vunpack.c.h.b16 %v391
      %v614 = vunpack.c.l.b16 %v392
      %v615 = vunpack.c.l.b16 %v393
      %v616 = vunpack.c.h.b16 %v393
      %v617 = vunpack.c.l.b16 %v394
      %v618 = vunpack.c.l.b16 %v395
      %v619 = vunpack.c.h.b16 %v395
      %v620 = vunpack.c.l.b16 %v396
      %v621 = vunpack.c.l.b16 %v397
      %v622 = vunpack.c.h.b16 %v397
      %v623 = vunpack.c.l.b16 %v398
      %v624 = vunpack.c.l.b16 %v399
      %v625 = vunpack.c.h.b16 %v399
      %v626 = vunpack.c.l.b16 %v400
      %v627 = vunpack.c.l.b16 %v401
      %v628 = vunpack.c.h.b16 %v401
      %v629 = vunpack.c.l.b16 %v402
      %v630 = vunpack.c.l.b16 %v403
      %v631 = vunpack.c.h.b16 %v403
      %v632 = vunpack.c.l.b16 %v404
      %v633 = vunpack.c.l.b16 %v405
      %v634 = vunpack.c.h.b16 %v405
      %v635 = vunpack.c.l.b16 %v406
      %v636 = vunpack.c.l.b16 %v407
      %v637 = vunpack.c.h.b16 %v407
      %v638 = vunpack.c.l.b16 %v408
      %v639 = vunpack.c.l.b16 %v409
      %v640 = vunpack.c.h.b16 %v409
      %v641 = vunpack.c.l.b16 %v410
      %v642 = vunpack.c.l.b16 %v411
      %v643 = vunpack.c.h.b16 %v411
      %v644 = vunpack.c.l.b16 %v412
      %v645 = vunpack.c.l.b16 %v413
      %v646 = vunpack.c.h.b16 %v413
      %v647 = vunpack.c.l.b16 %v414
      %v648 = vunpack.c.l.b16 %v415
      %v649 = vunpack.c.h.b16 %v415
      %v650 = vunpack.c.l.b16 %v416
      %v651 = vunpack.c.l.b16 %v417
      %v652 = vunpack.c.h.b16 %v417
      %v653 = vunpack.c.l.b16 %v418
      %v654 = vunpack.c.l.b16 %v419
      %v655 = vunpack.c.h.b16 %v419
      %v656 = vunpack.c.l.b16 %v420
      %v657 = vunpack.c.l.b16 %v421
      %v658 = vunpack.c.h.b16 %v421
      %v659 = vunpack.c.l.b16 %v422
      %v660 = vunpack.c.l.b16 %v423
      %v661 = vunpack.c.h.b16 %v423
      %v662 = vunpack.c.l.b16 %v424
      %v663 = vunpack.c.l.b16 %v425
      %v664 = vunpack.c.h.b16 %v425
      %v665 = vunpack.c.l.b16 %v426
      %v666 = vunpack.c.l.b16 %v427
      %v667 = vunpack.c.h.b16 %v427
      %v668 = vunpack.c.l.b16 %v428
      %v669 = vunpack.c.l.b16 %v429
      %v670 = vunpack.c.h.b16 %v429
      %v671 = vunpack.c.l.b16 %v430
      %v672 = vunpack.c.l.b16 %v431
      %v673 = vunpack.c.h.b16 %v431
      %v674 = vunpack.c.l.b16 %v432
      %v675 = vunpack.c.l.b16 %v433
      %v676 = vunpack.c.h.b16 %v433
      %v677 = vunpack.c.l.b16 %v434
      %v678 = vunpack.c.l.b16 %v435
      %v679 = vunpack.c.h.b16 %v435
      %v680 = vunpack.c.l.b16 %v436
      %v681 = vunpack.c.l.b16 %v437
      %v682 = vunpack.c.h.b16 %v437
      %v683 = vunpack.c.l.b16 %v438
      %v684 = vunpack.c.l.b16 %v439
      %v685 = vunpack.c.h.b16 %v439
      %v686 = vunpack.c.l.b16 %v440
      %v687 = vunpack.c.l.b16 %v441
      %v688 = vunpack.c.h.b16 %v441
      %v689 = vunpack.c.l.b16 %v442
      %v690 = vunpack.c.l.b16 %v443
      %v691 = vunpack.c.h.b16 %v443
      %v692 = vunpack.c.l.b16 %v444
      %v693 = vunpack.c.l.b16 %v445
      %v694 = vunpack.c.h.b16 %v445
      %v695 = vunpack.c.l.b16 %v446
      %v696 = vunpack.c.l.b16 %v447
      %v697 = vunpack.c.h.b16 %v447
      %v698 = vunpack.c.l.b16 %v448
      %v699 = vunpack.c.l.b16 %v449
      %v700 = vunpack.c.h.b16 %v449
      %v701 = vunpack.c.l.b16 %v450
      %v702 = vunpack.c.l.b16 %v451
      %v703 = vunpack.c.h.b16 %v451
      %v704 = vunpack.c.l.b16 %v452
      %v705 = vunpack.c.l.b16 %v453
      %v706 = vunpack.c.h.b16 %v453
      %v707 = vunpack.c.l.b16 %v454
      %v708 = vunpack.c.l.b16 %v455
      %v709 = vunpack.c.h.b16 %v455
      %v710 = vunpack.c.l.b16 %v456
      %v711 = vunpack.c.l.b16 %v457
      %v712 = vunpack.c.h.b16 %v457
      %v713 = vunpack.c.l.b16 %v458
      %v714 = vunpack.c.l.b16 %v459
      %v715 = vunpack.c.h.b16 %v459
      %v716 = vunpack.c.l.b16 %v460
      %v717 = vpack.c.b16 %v576, %v573
      %v718 = vpack.c.b16 %v577, %v574
      %v719 = vpack.c.b16 %v578, %v575
      %v720 = vpack.c.b16 %v582, %v579
      %v721 = vpack.c.b16 %v583, %v580
      %v722 = vpack.c.b16 %v584, %v581
      %v723 = vpack.c.b16 %v588, %v585
      %v724 = vpack.c.b16 %v589, %v586
      %v725 = vpack.c.b16 %v590, %v587
      %v726 = vpack.c.b16 %v594, %v591
      %v727 = vpack.c.b16 %v595, %v592
      %v728 = vpack.c.b16 %v596, %v593
      %v729 = vpack.c.b16 %v600, %v597
      %v730 = vpack.c.b16 %v601, %v598
      %v731 = vpack.c.b16 %v602, %v599
      %v732 = vpack.c.b16 %v606, %v603
      %v733 = vpack.c.b16 %v607, %v604
      %v734 = vpack.c.b16 %v608, %v605
      %v735 = vpack.c.b16 %v612, %v609
      %v736 = vpack.c.b16 %v613, %v610
      %v737 = vpack.c.b16 %v614, %v611
      %v738 = vpack.c.b16 %v618, %v615
      %v739 = vpack.c.b16 %v619, %v616
      %v740 = vpack.c.b16 %v620, %v617
      %v741 = vpack.c.b16 %v624, %v621
      %v742 = vpack.c.b16 %v625, %v622
      %v743 = vpack.c.b16 %v626, %v623
      %v744 = vpack.c.b16 %v630, %v627
      %v745 = vpack.c.b16 %v631, %v628
      %v746 = vpack.c.b16 %v632, %v629
      %v747 = vpack.c.b16 %v636, %v633
      %v748 = vpack.c.b16 %v637, %v634
      %v749 = vpack.c.b16 %v638, %v635
      %v750 = vpack.c.b16 %v642, %v639
      %v751 = vpack.c.b16 %v643, %v640
      %v752 = vpack.c.b16 %v644, %v641
      %v753 = vpack.c.b16 %v648, %v645
      %v754 = vpack.c.b16 %v649, %v646
      %v755 = vpack.c.b16 %v650, %v647
      %v756 = vpack.c.b16 %v654, %v651
      %v757 = vpack.c.b16 %v655, %v652
      %v758 = vpack.c.b16 %v656, %v653
      %v759 = vpack.c.b16 %v660, %v657
      %v760 = vpack.c.b16 %v661, %v658
      %v761 = vpack.c.b16 %v662, %v659
      %v762 = vpack.c.b16 %v666, %v663
      %v763 = vpack.c.b16 %v667, %v664
      %v764 = vpack.c.b16 %v668, %v665
      %v765 = vpack.c.b16 %v672, %v669
      %v766 = vpack.c.b16 %v673, %v670
      %v767 = vpack.c.b16 %v674, %v671
      %v768 = vpack.c.b16 %v678, %v675
      %v769 = vpack.c.b16 %v679, %v676
      %v770 = vpack.c.b16 %v680, %v677
      %v771 = vpack.c.b16 %v684, %v681
      %v772 = vpack.c.b16 %v685, %v682
      %v773 = vpack.c.b16 %v686, %v683
      %v774 = vpack.c.b16 %v690, %v687
      %v775 = vpack.c.b16 %v691, %v688
      %v776 = vpack.c.b16 %v692, %v689
      %v777 = vpack.c.b16 %v696, %v693
      %v778 = vpack.c.b16 %v697, %v694
      %v779 = vpack.c.b16 %v698, %v695
      %v780 = vpack.c.b16 %v702, %v699
      %v781 = vpack.c.b16 %v703, %v700
      %v782 = vpack.c.b16 %v704, %v701
      %v783 = vpack.c.b16 %v708, %v705
      %v784 = vpack.c.b16 %v709, %v706
      %v785 = vpack.c.b16 %v710, %v707
      %v786 = vpack.c.b16 %v714, %v711
      %v787 = vpack.c.b16 %v715, %v712
      %v788 = vpack.c.b16 %v716, %v713
      %861 = vmatpush.bf16.msra.mxu0 %v738
      %862 = vmatpush.bf16.msra.mxu0 %v735
      %863 = vmatpush.bf16.msra.mxu0 %v732
      %864 = vmatpush.bf16.msra.mxu0 %v729
      %865 = vmatpush.bf16.msra.mxu0 %v726
      %866 = vmatpush.bf16.msra.mxu0 %v723
      %867 = vmatpush.bf16.msra.mxu0 %v720
      %868 = vmatpush.bf16.msra.mxu0 %v717
      %869 = vmatmul.bf16.gmra.mxu0 %v471
      %v870 = vpop.f32.mrf.mxu0
      %v871 = vadd.f32 0.0, %v870
      %v872 = vpop.f32.mrf.mxu0
      %v873 = vadd.f32 0.0, %v872
      %874 = vdwg.mxu0
      %875 = vmatpush.bf16.msra.mxu0 %v762
      %876 = vmatpush.bf16.msra.mxu0 %v759
      %877 = vmatpush.bf16.msra.mxu0 %v756
      %878 = vmatpush.bf16.msra.mxu0 %v753
      %879 = vmatpush.bf16.msra.mxu0 %v750
      %880 = vmatpush.bf16.msra.mxu0 %v747
      %881 = vmatpush.bf16.msra.mxu0 %v744
      %882 = vmatpush.bf16.msra.mxu0 %v741
      %883 = vmatmul.bf16.gmra.mxu0 %v472
      %v884 = vpop.f32.mrf.mxu0
      %v885 = vadd.f32 %v871, %v884
      %v886 = vpop.f32.mrf.mxu0
      %v887 = vadd.f32 %v873, %v886
      %888 = vdwg.mxu0
      %889 = vmatpush.bf16.msra.mxu0 %v786
      %890 = vmatpush.bf16.msra.mxu0 %v783
      %891 = vmatpush.bf16.msra.mxu0 %v780
      %892 = vmatpush.bf16.msra.mxu0 %v777
      %893 = vmatpush.bf16.msra.mxu0 %v774
      %894 = vmatpush.bf16.msra.mxu0 %v771
      %895 = vmatpush.bf16.msra.mxu0 %v768
      %896 = vmatpush.bf16.msra.mxu0 %v765
      %897 = vmatmul.bf16.gmra.mxu0 %v473
      %v898 = vpop.f32.mrf.mxu0
      %v899 = vadd.f32 %v885, %v898
      %v900 = vpop.f32.mrf.mxu0
      %v901 = vadd.f32 %v887, %v900
      %902 = vdwg.mxu0
      %903 = vmatpush.bf16.msra.mxu0 %v739
      %904 = vmatpush.bf16.msra.mxu0 %v736
      %905 = vmatpush.bf16.msra.mxu0 %v733
      %906 = vmatpush.bf16.msra.mxu0 %v730
      %907 = vmatpush.bf16.msra.mxu0 %v727
      %908 = vmatpush.bf16.msra.mxu0 %v724
      %909 = vmatpush.bf16.msra.mxu0 %v721
      %910 = vmatpush.bf16.msra.mxu0 %v718
      %911 = vmatmul.bf16.gmra.mxu0 %v471
      %v912 = vpop.f32.mrf.mxu0
      %v913 = vadd.f32 0.0, %v912
      %v914 = vpop.f32.mrf.mxu0
      %v915 = vadd.f32 0.0, %v914
      %916 = vdwg.mxu0
      %917 = vmatpush.bf16.msra.mxu0 %v763
      %918 = vmatpush.bf16.msra.mxu0 %v760
      %919 = vmatpush.bf16.msra.mxu0 %v757
      %920 = vmatpush.bf16.msra.mxu0 %v754
      %921 = vmatpush.bf16.msra.mxu0 %v751
      %922 = vmatpush.bf16.msra.mxu0 %v748
      %923 = vmatpush.bf16.msra.mxu0 %v745
      %924 = vmatpush.bf16.msra.mxu0 %v742
      %925 = vmatmul.bf16.gmra.mxu0 %v472
      %v926 = vpop.f32.mrf.mxu0
      %v927 = vadd.f32 %v913, %v926
      %v928 = vpop.f32.mrf.mxu0
      %v929 = vadd.f32 %v915, %v928
      %930 = vdwg.mxu0
      %931 = vmatpush.bf16.msra.mxu0 %v787
      %932 = vmatpush.bf16.msra.mxu0 %v784
      %933 = vmatpush.bf16.msra.mxu0 %v781
      %934 = vmatpush.bf16.msra.mxu0 %v778
      %935 = vmatpush.bf16.msra.mxu0 %v775
      %936 = vmatpush.bf16.msra.mxu0 %v772
      %937 = vmatpush.bf16.msra.mxu0 %v769
      %938 = vmatpush.bf16.msra.mxu0 %v766
      %939 = vmatmul.bf16.gmra.mxu0 %v473
      %v940 = vpop.f32.mrf.mxu0
      %v941 = vadd.f32 %v927, %v940
      %v942 = vpop.f32.mrf.mxu0
      %v943 = vadd.f32 %v929, %v942
      %944 = vdwg.mxu0
      %945 = vmatpush.bf16.msra.mxu0 %v740
      %946 = vmatpush.bf16.msra.mxu0 %v737
      %947 = vmatpush.bf16.msra.mxu0 %v734
      %948 = vmatpush.bf16.msra.mxu0 %v731
      %949 = vmatpush.bf16.msra.mxu0 %v728
      %950 = vmatpush.bf16.msra.mxu0 %v725
      %951 = vmatpush.bf16.msra.mxu0 %v722
      %952 = vmatpush.bf16.msra.mxu0 %v719
      %953 = vmatmul.bf16.gmra.mxu0 %v471
      %v954 = vpop.f32.mrf.mxu0
      %v955 = vadd.f32 0.0, %v954
      %v956 = vpop.f32.mrf.mxu0
      %v957 = vadd.f32 0.0, %v956
      %958 = vdwg.mxu0
      %959 = vmatpush.bf16.msra.mxu0 %v764
      %960 = vmatpush.bf16.msra.mxu0 %v761
      %961 = vmatpush.bf16.msra.mxu0 %v758
      %962 = vmatpush.bf16.msra.mxu0 %v755
      %963 = vmatpush.bf16.msra.mxu0 %v752
      %964 = vmatpush.bf16.msra.mxu0 %v749
      %965 = vmatpush.bf16.msra.mxu0 %v746
      %966 = vmatpush.bf16.msra.mxu0 %v743
      %967 = vmatmul.bf16.gmra.mxu0 %v472
      %v968 = vpop.f32.mrf.mxu0
      %v969 = vadd.f32 %v955, %v968
      %v970 = vpop.f32.mrf.mxu0
      %v971 = vadd.f32 %v957, %v970
      %972 = vdwg.mxu0
      %973 = vmatpush.bf16.msra.mxu0 %v788
      %974 = vmatpush.bf16.msra.mxu0 %v785
      %975 = vmatpush.bf16.msra.mxu0 %v782
      %976 = vmatpush.bf16.msra.mxu0 %v779
      %977 = vmatpush.bf16.msra.mxu0 %v776
      %978 = vmatpush.bf16.msra.mxu0 %v773
      %979 = vmatpush.bf16.msra.mxu0 %v770
      %980 = vmatpush.bf16.msra.mxu0 %v767
      %981 = vmatmul.bf16.gmra.mxu0 %v473
      %v982 = vpop.f32.mrf.mxu0
      %v983 = vadd.f32 %v969, %v982
      %v984 = vpop.f32.mrf.mxu0
      %v985 = vadd.f32 %v971, %v984
      %986 = vdwg.mxu0
      %v987 = vrot.slane %v899, 7
      %v988 = vrot.slane %v941, 7
      %v989 = vrot.slane %v983, 7
      %v990 = vrot.slane %v901, 7
      %v991 = vrot.slane %v943, 7
      %v992 = vrot.slane %v985, 7
      %vm993 = vcmp.lt.s32.totalorder %v234, 1
      %v994 = vsel %vm993, %v987, %v990
      %v995 = vsel %vm993, %v988, %v991
      %v996 = vsel %vm993, %v989, %v992
      %v997 = vsel %vm993, %v990, %v987
      %v998 = vsel %vm993, %v991, %v988
      %v999 = vsel %vm993, %v992, %v989
      %v1000 = vsel %vm260, 1, 0
      %v1001 = vsel %vm261, 1, 0
      %vm1002 = vcmp.eq.s32.totalorder %v1000, 1
      %vm1003 = vcmp.eq.s32.totalorder %v1001, 1
      %v1004 = vsel %vm1002, %v997, 0.0
      %v1005 = vsel %vm1002, %v998, 0.0
      %v1006 = vsel %vm1002, %v999, 0.0
      %v1007 = vsel %vm1003, %v994, 0.0
      %v1008 = vsel %vm1003, %v995, 0.0
      %v1009 = vsel %vm1003, %v996, 0.0
      %v1106 = vunpack.c.l.b16 %v269
      %v1107 = vunpack.c.h.b16 %v269
      %v1108 = vunpack.c.l.b16 %v270
      %v1109 = vunpack.c.l.b16 %v271
      %v1110 = vunpack.c.h.b16 %v271
      %v1111 = vunpack.c.l.b16 %v272
      %v1112 = vunpack.c.l.b16 %v273
      %v1113 = vunpack.c.h.b16 %v273
      %v1114 = vunpack.c.l.b16 %v274
      %v1115 = vunpack.c.l.b16 %v275
      %v1116 = vunpack.c.h.b16 %v275
      %v1117 = vunpack.c.l.b16 %v276
      %v1118 = vunpack.c.l.b16 %v277
      %v1119 = vunpack.c.h.b16 %v277
      %v1120 = vunpack.c.l.b16 %v278
      %v1121 = vunpack.c.l.b16 %v279
      %v1122 = vunpack.c.h.b16 %v279
      %v1123 = vunpack.c.l.b16 %v280
      %v1124 = vunpack.c.l.b16 %v281
      %v1125 = vunpack.c.h.b16 %v281
      %v1126 = vunpack.c.l.b16 %v282
      %v1127 = vunpack.c.l.b16 %v283
      %v1128 = vunpack.c.h.b16 %v283
      %v1129 = vunpack.c.l.b16 %v284
      %v1130 = vunpack.c.l.b16 %v285
      %v1131 = vunpack.c.h.b16 %v285
      %v1132 = vunpack.c.l.b16 %v286
      %v1133 = vunpack.c.l.b16 %v287
      %v1134 = vunpack.c.h.b16 %v287
      %v1135 = vunpack.c.l.b16 %v288
      %v1136 = vunpack.c.l.b16 %v289
      %v1137 = vunpack.c.h.b16 %v289
      %v1138 = vunpack.c.l.b16 %v290
      %v1139 = vunpack.c.l.b16 %v291
      %v1140 = vunpack.c.h.b16 %v291
      %v1141 = vunpack.c.l.b16 %v292
      %v1142 = vunpack.c.l.b16 %v293
      %v1143 = vunpack.c.h.b16 %v293
      %v1144 = vunpack.c.l.b16 %v294
      %v1145 = vunpack.c.l.b16 %v295
      %v1146 = vunpack.c.h.b16 %v295
      %v1147 = vunpack.c.l.b16 %v296
      %v1148 = vunpack.c.l.b16 %v297
      %v1149 = vunpack.c.h.b16 %v297
      %v1150 = vunpack.c.l.b16 %v298
      %v1151 = vunpack.c.l.b16 %v299
      %v1152 = vunpack.c.h.b16 %v299
      %v1153 = vunpack.c.l.b16 %v300
      %v1154 = vunpack.c.l.b16 %v301
      %v1155 = vunpack.c.h.b16 %v301
      %v1156 = vunpack.c.l.b16 %v302
      %v1157 = vunpack.c.l.b16 %v303
      %v1158 = vunpack.c.h.b16 %v303
      %v1159 = vunpack.c.l.b16 %v304
      %v1160 = vunpack.c.l.b16 %v305
      %v1161 = vunpack.c.h.b16 %v305
      %v1162 = vunpack.c.l.b16 %v306
      %v1163 = vunpack.c.l.b16 %v307
      %v1164 = vunpack.c.h.b16 %v307
      %v1165 = vunpack.c.l.b16 %v308
      %v1166 = vunpack.c.l.b16 %v309
      %v1167 = vunpack.c.h.b16 %v309
      %v1168 = vunpack.c.l.b16 %v310
      %v1169 = vunpack.c.l.b16 %v311
      %v1170 = vunpack.c.h.b16 %v311
      %v1171 = vunpack.c.l.b16 %v312
      %v1172 = vunpack.c.l.b16 %v313
      %v1173 = vunpack.c.h.b16 %v313
      %v1174 = vunpack.c.l.b16 %v314
      %v1175 = vunpack.c.l.b16 %v315
      %v1176 = vunpack.c.h.b16 %v315
      %v1177 = vunpack.c.l.b16 %v316
      %v1178 = vunpack.c.l.b16 %v317
      %v1179 = vunpack.c.h.b16 %v317
      %v1180 = vunpack.c.l.b16 %v318
      %v1181 = vunpack.c.l.b16 %v319
      %v1182 = vunpack.c.h.b16 %v319
      %v1183 = vunpack.c.l.b16 %v320
      %v1184 = vunpack.c.l.b16 %v321
      %v1185 = vunpack.c.h.b16 %v321
      %v1186 = vunpack.c.l.b16 %v322
      %v1187 = vunpack.c.l.b16 %v323
      %v1188 = vunpack.c.h.b16 %v323
      %v1189 = vunpack.c.l.b16 %v324
      %v1190 = vunpack.c.l.b16 %v325
      %v1191 = vunpack.c.h.b16 %v325
      %v1192 = vunpack.c.l.b16 %v326
      %v1193 = vunpack.c.l.b16 %v327
      %v1194 = vunpack.c.h.b16 %v327
      %v1195 = vunpack.c.l.b16 %v328
      %v1196 = vunpack.c.l.b16 %v329
      %v1197 = vunpack.c.h.b16 %v329
      %v1198 = vunpack.c.l.b16 %v330
      %v1199 = vunpack.c.l.b16 %v331
      %v1200 = vunpack.c.h.b16 %v331
      %v1201 = vunpack.c.l.b16 %v332
      %v1202 = vunpack.c.l.b16 %v333
      %v1203 = vunpack.c.h.b16 %v333
      %v1204 = vunpack.c.l.b16 %v334
      %v1205 = vunpack.c.l.b16 %v335
      %v1206 = vunpack.c.h.b16 %v335
      %v1207 = vunpack.c.l.b16 %v336
      %v1208 = vunpack.c.l.b16 %v337
      %v1209 = vunpack.c.h.b16 %v337
      %v1210 = vunpack.c.l.b16 %v338
      %v1211 = vunpack.c.l.b16 %v339
      %v1212 = vunpack.c.h.b16 %v339
      %v1213 = vunpack.c.l.b16 %v340
      %v1214 = vunpack.c.l.b16 %v341
      %v1215 = vunpack.c.h.b16 %v341
      %v1216 = vunpack.c.l.b16 %v342
      %v1217 = vunpack.c.l.b16 %v343
      %v1218 = vunpack.c.h.b16 %v343
      %v1219 = vunpack.c.l.b16 %v344
      %v1220 = vunpack.c.l.b16 %v345
      %v1221 = vunpack.c.h.b16 %v345
      %v1222 = vunpack.c.l.b16 %v346
      %v1223 = vunpack.c.l.b16 %v347
      %v1224 = vunpack.c.h.b16 %v347
      %v1225 = vunpack.c.l.b16 %v348
      %v1226 = vunpack.c.l.b16 %v349
      %v1227 = vunpack.c.h.b16 %v349
      %v1228 = vunpack.c.l.b16 %v350
      %v1229 = vunpack.c.l.b16 %v351
      %v1230 = vunpack.c.h.b16 %v351
      %v1231 = vunpack.c.l.b16 %v352
      %v1232 = vunpack.c.l.b16 %v353
      %v1233 = vunpack.c.h.b16 %v353
      %v1234 = vunpack.c.l.b16 %v354
      %v1235 = vunpack.c.l.b16 %v355
      %v1236 = vunpack.c.h.b16 %v355
      %v1237 = vunpack.c.l.b16 %v356
      %v1238 = vunpack.c.l.b16 %v357
      %v1239 = vunpack.c.h.b16 %v357
      %v1240 = vunpack.c.l.b16 %v358
      %v1241 = vunpack.c.l.b16 %v359
      %v1242 = vunpack.c.h.b16 %v359
      %v1243 = vunpack.c.l.b16 %v360
      %v1244 = vunpack.c.l.b16 %v361
      %v1245 = vunpack.c.h.b16 %v361
      %v1246 = vunpack.c.l.b16 %v362
      %v1247 = vunpack.c.l.b16 %v363
      %v1248 = vunpack.c.h.b16 %v363
      %v1249 = vunpack.c.l.b16 %v364
      %v1250 = vpack.c.b16 %v1109, %v1106
      %v1251 = vpack.c.b16 %v1110, %v1107
      %v1252 = vpack.c.b16 %v1111, %v1108
      %v1253 = vpack.c.b16 %v1115, %v1112
      %v1254 = vpack.c.b16 %v1116, %v1113
      %v1255 = vpack.c.b16 %v1117, %v1114
      %v1256 = vpack.c.b16 %v1121, %v1118
      %v1257 = vpack.c.b16 %v1122, %v1119
      %v1258 = vpack.c.b16 %v1123, %v1120
      %v1259 = vpack.c.b16 %v1127, %v1124
      %v1260 = vpack.c.b16 %v1128, %v1125
      %v1261 = vpack.c.b16 %v1129, %v1126
      %v1262 = vpack.c.b16 %v1133, %v1130
      %v1263 = vpack.c.b16 %v1134, %v1131
      %v1264 = vpack.c.b16 %v1135, %v1132
      %v1265 = vpack.c.b16 %v1139, %v1136
      %v1266 = vpack.c.b16 %v1140, %v1137
      %v1267 = vpack.c.b16 %v1141, %v1138
      %v1268 = vpack.c.b16 %v1145, %v1142
      %v1269 = vpack.c.b16 %v1146, %v1143
      %v1270 = vpack.c.b16 %v1147, %v1144
      %v1271 = vpack.c.b16 %v1151, %v1148
      %v1272 = vpack.c.b16 %v1152, %v1149
      %v1273 = vpack.c.b16 %v1153, %v1150
      %v1274 = vpack.c.b16 %v1157, %v1154
      %v1275 = vpack.c.b16 %v1158, %v1155
      %v1276 = vpack.c.b16 %v1159, %v1156
      %v1277 = vpack.c.b16 %v1163, %v1160
      %v1278 = vpack.c.b16 %v1164, %v1161
      %v1279 = vpack.c.b16 %v1165, %v1162
      %v1280 = vpack.c.b16 %v1169, %v1166
      %v1281 = vpack.c.b16 %v1170, %v1167
      %v1282 = vpack.c.b16 %v1171, %v1168
      %v1283 = vpack.c.b16 %v1175, %v1172
      %v1284 = vpack.c.b16 %v1176, %v1173
      %v1285 = vpack.c.b16 %v1177, %v1174
      %v1286 = vpack.c.b16 %v1181, %v1178
      %v1287 = vpack.c.b16 %v1182, %v1179
      %v1288 = vpack.c.b16 %v1183, %v1180
      %v1289 = vpack.c.b16 %v1187, %v1184
      %v1290 = vpack.c.b16 %v1188, %v1185
      %v1291 = vpack.c.b16 %v1189, %v1186
      %v1292 = vpack.c.b16 %v1193, %v1190
      %v1293 = vpack.c.b16 %v1194, %v1191
      %v1294 = vpack.c.b16 %v1195, %v1192
      %v1295 = vpack.c.b16 %v1199, %v1196
      %v1296 = vpack.c.b16 %v1200, %v1197
      %v1297 = vpack.c.b16 %v1201, %v1198
      %v1298 = vpack.c.b16 %v1205, %v1202
      %v1299 = vpack.c.b16 %v1206, %v1203
      %v1300 = vpack.c.b16 %v1207, %v1204
      %v1301 = vpack.c.b16 %v1211, %v1208
      %v1302 = vpack.c.b16 %v1212, %v1209
      %v1303 = vpack.c.b16 %v1213, %v1210
      %v1304 = vpack.c.b16 %v1217, %v1214
      %v1305 = vpack.c.b16 %v1218, %v1215
      %v1306 = vpack.c.b16 %v1219, %v1216
      %v1307 = vpack.c.b16 %v1223, %v1220
      %v1308 = vpack.c.b16 %v1224, %v1221
      %v1309 = vpack.c.b16 %v1225, %v1222
      %v1310 = vpack.c.b16 %v1229, %v1226
      %v1311 = vpack.c.b16 %v1230, %v1227
      %v1312 = vpack.c.b16 %v1231, %v1228
      %v1313 = vpack.c.b16 %v1235, %v1232
      %v1314 = vpack.c.b16 %v1236, %v1233
      %v1315 = vpack.c.b16 %v1237, %v1234
      %v1316 = vpack.c.b16 %v1241, %v1238
      %v1317 = vpack.c.b16 %v1242, %v1239
      %v1318 = vpack.c.b16 %v1243, %v1240
      %v1319 = vpack.c.b16 %v1247, %v1244
      %v1320 = vpack.c.b16 %v1248, %v1245
      %v1321 = vpack.c.b16 %v1249, %v1246
      %1394 = vmatpush.bf16.msra.mxu0 %v1271
      %1395 = vmatpush.bf16.msra.mxu0 %v1268
      %1396 = vmatpush.bf16.msra.mxu0 %v1265
      %1397 = vmatpush.bf16.msra.mxu0 %v1262
      %1398 = vmatpush.bf16.msra.mxu0 %v1259
      %1399 = vmatpush.bf16.msra.mxu0 %v1256
      %1400 = vmatpush.bf16.msra.mxu0 %v1253
      %1401 = vmatpush.bf16.msra.mxu0 %v1250
      %1402 = vmatmul.bf16.gmra.mxu0 %v471
      %v1403 = vpop.f32.mrf.mxu0
      %v1404 = vadd.f32 %v1004, %v1403
      %v1405 = vpop.f32.mrf.mxu0
      %v1406 = vadd.f32 %v1007, %v1405
      %1407 = vdwg.mxu0
      %1408 = vmatpush.bf16.msra.mxu0 %v1295
      %1409 = vmatpush.bf16.msra.mxu0 %v1292
      %1410 = vmatpush.bf16.msra.mxu0 %v1289
      %1411 = vmatpush.bf16.msra.mxu0 %v1286
      %1412 = vmatpush.bf16.msra.mxu0 %v1283
      %1413 = vmatpush.bf16.msra.mxu0 %v1280
      %1414 = vmatpush.bf16.msra.mxu0 %v1277
      %1415 = vmatpush.bf16.msra.mxu0 %v1274
      %1416 = vmatmul.bf16.gmra.mxu0 %v472
      %v1417 = vpop.f32.mrf.mxu0
      %v1418 = vadd.f32 %v1404, %v1417
      %v1419 = vpop.f32.mrf.mxu0
      %v1420 = vadd.f32 %v1406, %v1419
      %1421 = vdwg.mxu0
      %1422 = vmatpush.bf16.msra.mxu0 %v1319
      %1423 = vmatpush.bf16.msra.mxu0 %v1316
      %1424 = vmatpush.bf16.msra.mxu0 %v1313
      %1425 = vmatpush.bf16.msra.mxu0 %v1310
      %1426 = vmatpush.bf16.msra.mxu0 %v1307
      %1427 = vmatpush.bf16.msra.mxu0 %v1304
      %1428 = vmatpush.bf16.msra.mxu0 %v1301
      %1429 = vmatpush.bf16.msra.mxu0 %v1298
      %1430 = vmatmul.bf16.gmra.mxu0 %v473
      %v1431 = vpop.f32.mrf.mxu0
      %v1432 = vadd.f32 %v1418, %v1431
      %v1433 = vpop.f32.mrf.mxu0
      %v1434 = vadd.f32 %v1420, %v1433
      %1435 = vdwg.mxu0
      %1436 = vmatpush.bf16.msra.mxu0 %v1272
      %1437 = vmatpush.bf16.msra.mxu0 %v1269
      %1438 = vmatpush.bf16.msra.mxu0 %v1266
      %1439 = vmatpush.bf16.msra.mxu0 %v1263
      %1440 = vmatpush.bf16.msra.mxu0 %v1260
      %1441 = vmatpush.bf16.msra.mxu0 %v1257
      %1442 = vmatpush.bf16.msra.mxu0 %v1254
      %1443 = vmatpush.bf16.msra.mxu0 %v1251
      %1444 = vmatmul.bf16.gmra.mxu0 %v471
      %v1445 = vpop.f32.mrf.mxu0
      %v1446 = vadd.f32 %v1005, %v1445
      %v1447 = vpop.f32.mrf.mxu0
      %v1448 = vadd.f32 %v1008, %v1447
      %1449 = vdwg.mxu0
      %1450 = vmatpush.bf16.msra.mxu0 %v1296
      %1451 = vmatpush.bf16.msra.mxu0 %v1293
      %1452 = vmatpush.bf16.msra.mxu0 %v1290
      %1453 = vmatpush.bf16.msra.mxu0 %v1287
      %1454 = vmatpush.bf16.msra.mxu0 %v1284
      %1455 = vmatpush.bf16.msra.mxu0 %v1281
      %1456 = vmatpush.bf16.msra.mxu0 %v1278
      %1457 = vmatpush.bf16.msra.mxu0 %v1275
      %1458 = vmatmul.bf16.gmra.mxu0 %v472
      %v1459 = vpop.f32.mrf.mxu0
      %v1460 = vadd.f32 %v1446, %v1459
      %v1461 = vpop.f32.mrf.mxu0
      %v1462 = vadd.f32 %v1448, %v1461
      %1463 = vdwg.mxu0
      %1464 = vmatpush.bf16.msra.mxu0 %v1320
      %1465 = vmatpush.bf16.msra.mxu0 %v1317
      %1466 = vmatpush.bf16.msra.mxu0 %v1314
      %1467 = vmatpush.bf16.msra.mxu0 %v1311
      %1468 = vmatpush.bf16.msra.mxu0 %v1308
      %1469 = vmatpush.bf16.msra.mxu0 %v1305
      %1470 = vmatpush.bf16.msra.mxu0 %v1302
      %1471 = vmatpush.bf16.msra.mxu0 %v1299
      %1472 = vmatmul.bf16.gmra.mxu0 %v473
      %v1473 = vpop.f32.mrf.mxu0
      %v1474 = vadd.f32 %v1460, %v1473
      %v1475 = vpop.f32.mrf.mxu0
      %v1476 = vadd.f32 %v1462, %v1475
      %1477 = vdwg.mxu0
      %1478 = vmatpush.bf16.msra.mxu0 %v1273
      %1479 = vmatpush.bf16.msra.mxu0 %v1270
      %1480 = vmatpush.bf16.msra.mxu0 %v1267
      %1481 = vmatpush.bf16.msra.mxu0 %v1264
      %1482 = vmatpush.bf16.msra.mxu0 %v1261
      %1483 = vmatpush.bf16.msra.mxu0 %v1258
      %1484 = vmatpush.bf16.msra.mxu0 %v1255
      %1485 = vmatpush.bf16.msra.mxu0 %v1252
      %1486 = vmatmul.bf16.gmra.mxu0 %v471
      %v1487 = vpop.f32.mrf.mxu0
      %v1488 = vadd.f32 %v1006, %v1487
      %v1489 = vpop.f32.mrf.mxu0
      %v1490 = vadd.f32 %v1009, %v1489
      %1491 = vdwg.mxu0
      %1492 = vmatpush.bf16.msra.mxu0 %v1297
      %1493 = vmatpush.bf16.msra.mxu0 %v1294
      %1494 = vmatpush.bf16.msra.mxu0 %v1291
      %1495 = vmatpush.bf16.msra.mxu0 %v1288
      %1496 = vmatpush.bf16.msra.mxu0 %v1285
      %1497 = vmatpush.bf16.msra.mxu0 %v1282
      %1498 = vmatpush.bf16.msra.mxu0 %v1279
      %1499 = vmatpush.bf16.msra.mxu0 %v1276
      %1500 = vmatmul.bf16.gmra.mxu0 %v472
      %v1501 = vpop.f32.mrf.mxu0
      %v1502 = vadd.f32 %v1488, %v1501
      %v1503 = vpop.f32.mrf.mxu0
      %v1504 = vadd.f32 %v1490, %v1503
      %1505 = vdwg.mxu0
      %1506 = vmatpush.bf16.msra.mxu0 %v1321
      %1507 = vmatpush.bf16.msra.mxu0 %v1318
      %1508 = vmatpush.bf16.msra.mxu0 %v1315
      %1509 = vmatpush.bf16.msra.mxu0 %v1312
      %1510 = vmatpush.bf16.msra.mxu0 %v1309
      %1511 = vmatpush.bf16.msra.mxu0 %v1306
      %1512 = vmatpush.bf16.msra.mxu0 %v1303
      %1513 = vmatpush.bf16.msra.mxu0 %v1300
      %1514 = vmatmul.bf16.gmra.mxu0 %v473
      %v1515 = vpop.f32.mrf.mxu0
      %v1516 = vadd.f32 %v1502, %v1515
      %v1517 = vpop.f32.mrf.mxu0
      %v1518 = vadd.f32 %v1504, %v1517
      %1519 = vdwg.mxu0
      %s1520 = scalar_lea.vmem %s1, 1152
      %v1521 = vld [vmem:[%s1520] sm:$0xff]
      %v1522 = vld [vmem:[%s1520 + $0x8] sm:$0xf]
      %v1523 = vld [vmem:[%s1520 + $0xc] sm:$0xff]
      %v1524 = vld [vmem:[%s1520 + $0x14] sm:$0xf]
      %v1525 = vld [vmem:[%s1520 + $0x18] sm:$0xff]
      %v1526 = vld [vmem:[%s1520 + $0x20] sm:$0xf]
      %v1527 = vld [vmem:[%s1520 + $0x24] sm:$0xff]
      %v1528 = vld [vmem:[%s1520 + $0x2c] sm:$0xf]
      %v1529 = vld [vmem:[%s1520 + $0x30] sm:$0xff]
      %v1530 = vld [vmem:[%s1520 + $0x38] sm:$0xf]
      %v1531 = vld [vmem:[%s1520 + $0x3c] sm:$0xff]
      %v1532 = vld [vmem:[%s1520 + $0x44] sm:$0xf]
      %v1533 = vld [vmem:[%s1520 + $0x48] sm:$0xff]
      %v1534 = vld [vmem:[%s1520 + $0x50] sm:$0xf]
      %v1535 = vld [vmem:[%s1520 + $0x54] sm:$0xff]
      %v1536 = vld [vmem:[%s1520 + $0x5c] sm:$0xf]
      %v1537 = vld [vmem:[%s1520 + $0x60] sm:$0xff]
      %v1538 = vld [vmem:[%s1520 + $0x68] sm:$0xf]
      %v1539 = vld [vmem:[%s1520 + $0x6c] sm:$0xff]
      %v1540 = vld [vmem:[%s1520 + $0x74] sm:$0xf]
      %v1541 = vld [vmem:[%s1520 + $0x78] sm:$0xff]
      %v1542 = vld [vmem:[%s1520 + $0x80] sm:$0xf]
      %v1543 = vld [vmem:[%s1520 + $0x84] sm:$0xff]
      %v1544 = vld [vmem:[%s1520 + $0x8c] sm:$0xf]
      %v1545 = vld [vmem:[%s1520 + $0x90] sm:$0xff]
      %v1546 = vld [vmem:[%s1520 + $0x98] sm:$0xf]
      %v1547 = vld [vmem:[%s1520 + $0x9c] sm:$0xff]
      %v1548 = vld [vmem:[%s1520 + $0xa4] sm:$0xf]
      %v1549 = vld [vmem:[%s1520 + $0xa8] sm:$0xff]
      %v1550 = vld [vmem:[%s1520 + $0xb0] sm:$0xf]
      %v1551 = vld [vmem:[%s1520 + $0xb4] sm:$0xff]
      %v1552 = vld [vmem:[%s1520 + $0xbc] sm:$0xf]
      %v1553 = vld [vmem:[%s1520 + $0xc0] sm:$0xff]
      %v1554 = vld [vmem:[%s1520 + $0xc8] sm:$0xf]
      %v1555 = vld [vmem:[%s1520 + $0xcc] sm:$0xff]
      %v1556 = vld [vmem:[%s1520 + $0xd4] sm:$0xf]
      %v1557 = vld [vmem:[%s1520 + $0xd8] sm:$0xff]
      %v1558 = vld [vmem:[%s1520 + $0xe0] sm:$0xf]
      %v1559 = vld [vmem:[%s1520 + $0xe4] sm:$0xff]
      %v1560 = vld [vmem:[%s1520 + $0xec] sm:$0xf]
      %v1561 = vld [vmem:[%s1520 + $0xf0] sm:$0xff]
      %v1562 = vld [vmem:[%s1520 + $0xf8] sm:$0xf]
      %v1563 = vld [vmem:[%s1520 + $0xfc] sm:$0xff]
      %v1564 = vld [vmem:[%s1520 + $0x104] sm:$0xf]
      %v1565 = vld [vmem:[%s1520 + $0x108] sm:$0xff]
      %v1566 = vld [vmem:[%s1520 + $0x110] sm:$0xf]
      %v1567 = vld [vmem:[%s1520 + $0x114] sm:$0xff]
      %v1568 = vld [vmem:[%s1520 + $0x11c] sm:$0xf]
      %v1569 = vld [vmem:[%s1520 + $0x120] sm:$0xff]
      %v1570 = vld [vmem:[%s1520 + $0x128] sm:$0xf]
      %v1571 = vld [vmem:[%s1520 + $0x12c] sm:$0xff]
      %v1572 = vld [vmem:[%s1520 + $0x134] sm:$0xf]
      %v1573 = vld [vmem:[%s1520 + $0x138] sm:$0xff]
      %v1574 = vld [vmem:[%s1520 + $0x140] sm:$0xf]
      %v1575 = vld [vmem:[%s1520 + $0x144] sm:$0xff]
      %v1576 = vld [vmem:[%s1520 + $0x14c] sm:$0xf]
      %v1577 = vld [vmem:[%s1520 + $0x150] sm:$0xff]
      %v1578 = vld [vmem:[%s1520 + $0x158] sm:$0xf]
      %v1579 = vld [vmem:[%s1520 + $0x15c] sm:$0xff]
      %v1580 = vld [vmem:[%s1520 + $0x164] sm:$0xf]
      %v1581 = vld [vmem:[%s1520 + $0x168] sm:$0xff]
      %v1582 = vld [vmem:[%s1520 + $0x170] sm:$0xf]
      %v1583 = vld [vmem:[%s1520 + $0x174] sm:$0xff]
      %v1584 = vld [vmem:[%s1520 + $0x17c] sm:$0xf]
      %v1585 = vld [vmem:[%s1520 + $0x180] sm:$0xff]
      %v1586 = vld [vmem:[%s1520 + $0x188] sm:$0xf]
      %v1587 = vld [vmem:[%s1520 + $0x18c] sm:$0xff]
      %v1588 = vld [vmem:[%s1520 + $0x194] sm:$0xf]
      %v1589 = vld [vmem:[%s1520 + $0x198] sm:$0xff]
      %v1590 = vld [vmem:[%s1520 + $0x1a0] sm:$0xf]
      %v1591 = vld [vmem:[%s1520 + $0x1a4] sm:$0xff]
      %v1592 = vld [vmem:[%s1520 + $0x1ac] sm:$0xf]
      %v1593 = vld [vmem:[%s1520 + $0x1b0] sm:$0xff]
      %v1594 = vld [vmem:[%s1520 + $0x1b8] sm:$0xf]
      %v1595 = vld [vmem:[%s1520 + $0x1bc] sm:$0xff]
      %v1596 = vld [vmem:[%s1520 + $0x1c4] sm:$0xf]
      %v1597 = vld [vmem:[%s1520 + $0x1c8] sm:$0xff]
      %v1598 = vld [vmem:[%s1520 + $0x1d0] sm:$0xf]
      %v1599 = vld [vmem:[%s1520 + $0x1d4] sm:$0xff]
      %v1600 = vld [vmem:[%s1520 + $0x1dc] sm:$0xf]
      %v1601 = vld [vmem:[%s1520 + $0x1e0] sm:$0xff]
      %v1602 = vld [vmem:[%s1520 + $0x1e8] sm:$0xf]
      %v1603 = vld [vmem:[%s1520 + $0x1ec] sm:$0xff]
      %v1604 = vld [vmem:[%s1520 + $0x1f4] sm:$0xf]
      %v1605 = vld [vmem:[%s1520 + $0x1f8] sm:$0xff]
      %v1606 = vld [vmem:[%s1520 + $0x200] sm:$0xf]
      %v1607 = vld [vmem:[%s1520 + $0x204] sm:$0xff]
      %v1608 = vld [vmem:[%s1520 + $0x20c] sm:$0xf]
      %v1609 = vld [vmem:[%s1520 + $0x210] sm:$0xff]
      %v1610 = vld [vmem:[%s1520 + $0x218] sm:$0xf]
      %v1611 = vld [vmem:[%s1520 + $0x21c] sm:$0xff]
      %v1612 = vld [vmem:[%s1520 + $0x224] sm:$0xf]
      %v1613 = vld [vmem:[%s1520 + $0x228] sm:$0xff]
      %v1614 = vld [vmem:[%s1520 + $0x230] sm:$0xf]
      %v1615 = vld [vmem:[%s1520 + $0x234] sm:$0xff]
      %v1616 = vld [vmem:[%s1520 + $0x23c] sm:$0xf]
      %v1713 = vunpack.c.l.b16 %v1521
      %v1714 = vunpack.c.h.b16 %v1521
      %v1715 = vunpack.c.l.b16 %v1522
      %v1716 = vunpack.c.l.b16 %v1523
      %v1717 = vunpack.c.h.b16 %v1523
      %v1718 = vunpack.c.l.b16 %v1524
      %v1719 = vunpack.c.l.b16 %v1525
      %v1720 = vunpack.c.h.b16 %v1525
      %v1721 = vunpack.c.l.b16 %v1526
      %v1722 = vunpack.c.l.b16 %v1527
      %v1723 = vunpack.c.h.b16 %v1527
      %v1724 = vunpack.c.l.b16 %v1528
      %v1725 = vunpack.c.l.b16 %v1529
      %v1726 = vunpack.c.h.b16 %v1529
      %v1727 = vunpack.c.l.b16 %v1530
      %v1728 = vunpack.c.l.b16 %v1531
      %v1729 = vunpack.c.h.b16 %v1531
      %v1730 = vunpack.c.l.b16 %v1532
      %v1731 = vunpack.c.l.b16 %v1533
      %v1732 = vunpack.c.h.b16 %v1533
      %v1733 = vunpack.c.l.b16 %v1534
      %v1734 = vunpack.c.l.b16 %v1535
      %v1735 = vunpack.c.h.b16 %v1535
      %v1736 = vunpack.c.l.b16 %v1536
      %v1737 = vunpack.c.l.b16 %v1537
      %v1738 = vunpack.c.h.b16 %v1537
      %v1739 = vunpack.c.l.b16 %v1538
      %v1740 = vunpack.c.l.b16 %v1539
      %v1741 = vunpack.c.h.b16 %v1539
      %v1742 = vunpack.c.l.b16 %v1540
      %v1743 = vunpack.c.l.b16 %v1541
      %v1744 = vunpack.c.h.b16 %v1541
      %v1745 = vunpack.c.l.b16 %v1542
      %v1746 = vunpack.c.l.b16 %v1543
      %v1747 = vunpack.c.h.b16 %v1543
      %v1748 = vunpack.c.l.b16 %v1544
      %v1749 = vunpack.c.l.b16 %v1545
      %v1750 = vunpack.c.h.b16 %v1545
      %v1751 = vunpack.c.l.b16 %v1546
      %v1752 = vunpack.c.l.b16 %v1547
      %v1753 = vunpack.c.h.b16 %v1547
      %v1754 = vunpack.c.l.b16 %v1548
      %v1755 = vunpack.c.l.b16 %v1549
      %v1756 = vunpack.c.h.b16 %v1549
      %v1757 = vunpack.c.l.b16 %v1550
      %v1758 = vunpack.c.l.b16 %v1551
      %v1759 = vunpack.c.h.b16 %v1551
      %v1760 = vunpack.c.l.b16 %v1552
      %v1761 = vunpack.c.l.b16 %v1553
      %v1762 = vunpack.c.h.b16 %v1553
      %v1763 = vunpack.c.l.b16 %v1554
      %v1764 = vunpack.c.l.b16 %v1555
      %v1765 = vunpack.c.h.b16 %v1555
      %v1766 = vunpack.c.l.b16 %v1556
      %v1767 = vunpack.c.l.b16 %v1557
      %v1768 = vunpack.c.h.b16 %v1557
      %v1769 = vunpack.c.l.b16 %v1558
      %v1770 = vunpack.c.l.b16 %v1559
      %v1771 = vunpack.c.h.b16 %v1559
      %v1772 = vunpack.c.l.b16 %v1560
      %v1773 = vunpack.c.l.b16 %v1561
      %v1774 = vunpack.c.h.b16 %v1561
      %v1775 = vunpack.c.l.b16 %v1562
      %v1776 = vunpack.c.l.b16 %v1563
      %v1777 = vunpack.c.h.b16 %v1563
      %v1778 = vunpack.c.l.b16 %v1564
      %v1779 = vunpack.c.l.b16 %v1565
      %v1780 = vunpack.c.h.b16 %v1565
      %v1781 = vunpack.c.l.b16 %v1566
      %v1782 = vunpack.c.l.b16 %v1567
      %v1783 = vunpack.c.h.b16 %v1567
      %v1784 = vunpack.c.l.b16 %v1568
      %v1785 = vunpack.c.l.b16 %v1569
      %v1786 = vunpack.c.h.b16 %v1569
      %v1787 = vunpack.c.l.b16 %v1570
      %v1788 = vunpack.c.l.b16 %v1571
      %v1789 = vunpack.c.h.b16 %v1571
      %v1790 = vunpack.c.l.b16 %v1572
      %v1791 = vunpack.c.l.b16 %v1573
      %v1792 = vunpack.c.h.b16 %v1573
      %v1793 = vunpack.c.l.b16 %v1574
      %v1794 = vunpack.c.l.b16 %v1575
      %v1795 = vunpack.c.h.b16 %v1575
      %v1796 = vunpack.c.l.b16 %v1576
      %v1797 = vunpack.c.l.b16 %v1577
      %v1798 = vunpack.c.h.b16 %v1577
      %v1799 = vunpack.c.l.b16 %v1578
      %v1800 = vunpack.c.l.b16 %v1579
      %v1801 = vunpack.c.h.b16 %v1579
      %v1802 = vunpack.c.l.b16 %v1580
      %v1803 = vunpack.c.l.b16 %v1581
      %v1804 = vunpack.c.h.b16 %v1581
      %v1805 = vunpack.c.l.b16 %v1582
      %v1806 = vunpack.c.l.b16 %v1583
      %v1807 = vunpack.c.h.b16 %v1583
      %v1808 = vunpack.c.l.b16 %v1584
      %v1809 = vunpack.c.l.b16 %v1585
      %v1810 = vunpack.c.h.b16 %v1585
      %v1811 = vunpack.c.l.b16 %v1586
      %v1812 = vunpack.c.l.b16 %v1587
      %v1813 = vunpack.c.h.b16 %v1587
      %v1814 = vunpack.c.l.b16 %v1588
      %v1815 = vunpack.c.l.b16 %v1589
      %v1816 = vunpack.c.h.b16 %v1589
      %v1817 = vunpack.c.l.b16 %v1590
      %v1818 = vunpack.c.l.b16 %v1591
      %v1819 = vunpack.c.h.b16 %v1591
      %v1820 = vunpack.c.l.b16 %v1592
      %v1821 = vunpack.c.l.b16 %v1593
      %v1822 = vunpack.c.h.b16 %v1593
      %v1823 = vunpack.c.l.b16 %v1594
      %v1824 = vunpack.c.l.b16 %v1595
      %v1825 = vunpack.c.h.b16 %v1595
      %v1826 = vunpack.c.l.b16 %v1596
      %v1827 = vunpack.c.l.b16 %v1597
      %v1828 = vunpack.c.h.b16 %v1597
      %v1829 = vunpack.c.l.b16 %v1598
      %v1830 = vunpack.c.l.b16 %v1599
      %v1831 = vunpack.c.h.b16 %v1599
      %v1832 = vunpack.c.l.b16 %v1600
      %v1833 = vunpack.c.l.b16 %v1601
      %v1834 = vunpack.c.h.b16 %v1601
      %v1835 = vunpack.c.l.b16 %v1602
      %v1836 = vunpack.c.l.b16 %v1603
      %v1837 = vunpack.c.h.b16 %v1603
      %v1838 = vunpack.c.l.b16 %v1604
      %v1839 = vunpack.c.l.b16 %v1605
      %v1840 = vunpack.c.h.b16 %v1605
      %v1841 = vunpack.c.l.b16 %v1606
      %v1842 = vunpack.c.l.b16 %v1607
      %v1843 = vunpack.c.h.b16 %v1607
      %v1844 = vunpack.c.l.b16 %v1608
      %v1845 = vunpack.c.l.b16 %v1609
      %v1846 = vunpack.c.h.b16 %v1609
      %v1847 = vunpack.c.l.b16 %v1610
      %v1848 = vunpack.c.l.b16 %v1611
      %v1849 = vunpack.c.h.b16 %v1611
      %v1850 = vunpack.c.l.b16 %v1612
      %v1851 = vunpack.c.l.b16 %v1613
      %v1852 = vunpack.c.h.b16 %v1613
      %v1853 = vunpack.c.l.b16 %v1614
      %v1854 = vunpack.c.l.b16 %v1615
      %v1855 = vunpack.c.h.b16 %v1615
      %v1856 = vunpack.c.l.b16 %v1616
      %v1857 = vpack.c.b16 %v1716, %v1713
      %v1858 = vpack.c.b16 %v1717, %v1714
      %v1859 = vpack.c.b16 %v1718, %v1715
      %v1860 = vpack.c.b16 %v1722, %v1719
      %v1861 = vpack.c.b16 %v1723, %v1720
      %v1862 = vpack.c.b16 %v1724, %v1721
      %v1863 = vpack.c.b16 %v1728, %v1725
      %v1864 = vpack.c.b16 %v1729, %v1726
      %v1865 = vpack.c.b16 %v1730, %v1727
      %v1866 = vpack.c.b16 %v1734, %v1731
      %v1867 = vpack.c.b16 %v1735, %v1732
      %v1868 = vpack.c.b16 %v1736, %v1733
      %v1869 = vpack.c.b16 %v1740, %v1737
      %v1870 = vpack.c.b16 %v1741, %v1738
      %v1871 = vpack.c.b16 %v1742, %v1739
      %v1872 = vpack.c.b16 %v1746, %v1743
      %v1873 = vpack.c.b16 %v1747, %v1744
      %v1874 = vpack.c.b16 %v1748, %v1745
      %v1875 = vpack.c.b16 %v1752, %v1749
      %v1876 = vpack.c.b16 %v1753, %v1750
      %v1877 = vpack.c.b16 %v1754, %v1751
      %v1878 = vpack.c.b16 %v1758, %v1755
      %v1879 = vpack.c.b16 %v1759, %v1756
      %v1880 = vpack.c.b16 %v1760, %v1757
      %v1881 = vpack.c.b16 %v1764, %v1761
      %v1882 = vpack.c.b16 %v1765, %v1762
      %v1883 = vpack.c.b16 %v1766, %v1763
      %v1884 = vpack.c.b16 %v1770, %v1767
      %v1885 = vpack.c.b16 %v1771, %v1768
      %v1886 = vpack.c.b16 %v1772, %v1769
      %v1887 = vpack.c.b16 %v1776, %v1773
      %v1888 = vpack.c.b16 %v1777, %v1774
      %v1889 = vpack.c.b16 %v1778, %v1775
      %v1890 = vpack.c.b16 %v1782, %v1779
      %v1891 = vpack.c.b16 %v1783, %v1780
      %v1892 = vpack.c.b16 %v1784, %v1781
      %v1893 = vpack.c.b16 %v1788, %v1785
      %v1894 = vpack.c.b16 %v1789, %v1786
      %v1895 = vpack.c.b16 %v1790, %v1787
      %v1896 = vpack.c.b16 %v1794, %v1791
      %v1897 = vpack.c.b16 %v1795, %v1792
      %v1898 = vpack.c.b16 %v1796, %v1793
      %v1899 = vpack.c.b16 %v1800, %v1797
      %v1900 = vpack.c.b16 %v1801, %v1798
      %v1901 = vpack.c.b16 %v1802, %v1799
      %v1902 = vpack.c.b16 %v1806, %v1803
      %v1903 = vpack.c.b16 %v1807, %v1804
      %v1904 = vpack.c.b16 %v1808, %v1805
      %v1905 = vpack.c.b16 %v1812, %v1809
      %v1906 = vpack.c.b16 %v1813, %v1810
      %v1907 = vpack.c.b16 %v1814, %v1811
      %v1908 = vpack.c.b16 %v1818, %v1815
      %v1909 = vpack.c.b16 %v1819, %v1816
      %v1910 = vpack.c.b16 %v1820, %v1817
      %v1911 = vpack.c.b16 %v1824, %v1821
      %v1912 = vpack.c.b16 %v1825, %v1822
      %v1913 = vpack.c.b16 %v1826, %v1823
      %v1914 = vpack.c.b16 %v1830, %v1827
      %v1915 = vpack.c.b16 %v1831, %v1828
      %v1916 = vpack.c.b16 %v1832, %v1829
      %v1917 = vpack.c.b16 %v1836, %v1833
      %v1918 = vpack.c.b16 %v1837, %v1834
      %v1919 = vpack.c.b16 %v1838, %v1835
      %v1920 = vpack.c.b16 %v1842, %v1839
      %v1921 = vpack.c.b16 %v1843, %v1840
      %v1922 = vpack.c.b16 %v1844, %v1841
      %v1923 = vpack.c.b16 %v1848, %v1845
      %v1924 = vpack.c.b16 %v1849, %v1846
      %v1925 = vpack.c.b16 %v1850, %v1847
      %v1926 = vpack.c.b16 %v1854, %v1851
      %v1927 = vpack.c.b16 %v1855, %v1852
      %v1928 = vpack.c.b16 %v1856, %v1853
      %2001 = vmatpush.bf16.msra.mxu0 %v1878
      %2002 = vmatpush.bf16.msra.mxu0 %v1875
      %2003 = vmatpush.bf16.msra.mxu0 %v1872
      %2004 = vmatpush.bf16.msra.mxu0 %v1869
      %2005 = vmatpush.bf16.msra.mxu0 %v1866
      %2006 = vmatpush.bf16.msra.mxu0 %v1863
      %2007 = vmatpush.bf16.msra.mxu0 %v1860
      %2008 = vmatpush.bf16.msra.mxu0 %v1857
      %2009 = vmatmul.bf16.gmra.mxu0 %v471
      %v2010 = vpop.f32.mrf.mxu0
      %v2011 = vadd.f32 0.0, %v2010
      %v2012 = vpop.f32.mrf.mxu0
      %v2013 = vadd.f32 0.0, %v2012
      %2014 = vdwg.mxu0
      %2015 = vmatpush.bf16.msra.mxu0 %v1902
      %2016 = vmatpush.bf16.msra.mxu0 %v1899
      %2017 = vmatpush.bf16.msra.mxu0 %v1896
      %2018 = vmatpush.bf16.msra.mxu0 %v1893
      %2019 = vmatpush.bf16.msra.mxu0 %v1890
      %2020 = vmatpush.bf16.msra.mxu0 %v1887
      %2021 = vmatpush.bf16.msra.mxu0 %v1884
      %2022 = vmatpush.bf16.msra.mxu0 %v1881
      %2023 = vmatmul.bf16.gmra.mxu0 %v472
      %v2024 = vpop.f32.mrf.mxu0
      %v2025 = vadd.f32 %v2011, %v2024
      %v2026 = vpop.f32.mrf.mxu0
      %v2027 = vadd.f32 %v2013, %v2026
      %2028 = vdwg.mxu0
      %2029 = vmatpush.bf16.msra.mxu0 %v1926
      %2030 = vmatpush.bf16.msra.mxu0 %v1923
      %2031 = vmatpush.bf16.msra.mxu0 %v1920
      %2032 = vmatpush.bf16.msra.mxu0 %v1917
      %2033 = vmatpush.bf16.msra.mxu0 %v1914
      %2034 = vmatpush.bf16.msra.mxu0 %v1911
      %2035 = vmatpush.bf16.msra.mxu0 %v1908
      %2036 = vmatpush.bf16.msra.mxu0 %v1905
      %2037 = vmatmul.bf16.gmra.mxu0 %v473
      %v2038 = vpop.f32.mrf.mxu0
      %v2039 = vadd.f32 %v2025, %v2038
      %v2040 = vpop.f32.mrf.mxu0
      %v2041 = vadd.f32 %v2027, %v2040
      %2042 = vdwg.mxu0
      %2043 = vmatpush.bf16.msra.mxu0 %v1879
      %2044 = vmatpush.bf16.msra.mxu0 %v1876
      %2045 = vmatpush.bf16.msra.mxu0 %v1873
      %2046 = vmatpush.bf16.msra.mxu0 %v1870
      %2047 = vmatpush.bf16.msra.mxu0 %v1867
      %2048 = vmatpush.bf16.msra.mxu0 %v1864
      %2049 = vmatpush.bf16.msra.mxu0 %v1861
      %2050 = vmatpush.bf16.msra.mxu0 %v1858
      %2051 = vmatmul.bf16.gmra.mxu0 %v471
      %v2052 = vpop.f32.mrf.mxu0
      %v2053 = vadd.f32 0.0, %v2052
      %v2054 = vpop.f32.mrf.mxu0
      %v2055 = vadd.f32 0.0, %v2054
      %2056 = vdwg.mxu0
      %2057 = vmatpush.bf16.msra.mxu0 %v1903
      %2058 = vmatpush.bf16.msra.mxu0 %v1900
      %2059 = vmatpush.bf16.msra.mxu0 %v1897
      %2060 = vmatpush.bf16.msra.mxu0 %v1894
      %2061 = vmatpush.bf16.msra.mxu0 %v1891
      %2062 = vmatpush.bf16.msra.mxu0 %v1888
      %2063 = vmatpush.bf16.msra.mxu0 %v1885
      %2064 = vmatpush.bf16.msra.mxu0 %v1882
      %2065 = vmatmul.bf16.gmra.mxu0 %v472
      %v2066 = vpop.f32.mrf.mxu0
      %v2067 = vadd.f32 %v2053, %v2066
      %v2068 = vpop.f32.mrf.mxu0
      %v2069 = vadd.f32 %v2055, %v2068
      %2070 = vdwg.mxu0
      %2071 = vmatpush.bf16.msra.mxu0 %v1927
      %2072 = vmatpush.bf16.msra.mxu0 %v1924
      %2073 = vmatpush.bf16.msra.mxu0 %v1921
      %2074 = vmatpush.bf16.msra.mxu0 %v1918
      %2075 = vmatpush.bf16.msra.mxu0 %v1915
      %2076 = vmatpush.bf16.msra.mxu0 %v1912
      %2077 = vmatpush.bf16.msra.mxu0 %v1909
      %2078 = vmatpush.bf16.msra.mxu0 %v1906
      %2079 = vmatmul.bf16.gmra.mxu0 %v473
      %v2080 = vpop.f32.mrf.mxu0
      %v2081 = vadd.f32 %v2067, %v2080
      %v2082 = vpop.f32.mrf.mxu0
      %v2083 = vadd.f32 %v2069, %v2082
      %2084 = vdwg.mxu0
      %2085 = vmatpush.bf16.msra.mxu0 %v1880
      %2086 = vmatpush.bf16.msra.mxu0 %v1877
      %2087 = vmatpush.bf16.msra.mxu0 %v1874
      %2088 = vmatpush.bf16.msra.mxu0 %v1871
      %2089 = vmatpush.bf16.msra.mxu0 %v1868
      %2090 = vmatpush.bf16.msra.mxu0 %v1865
      %2091 = vmatpush.bf16.msra.mxu0 %v1862
      %2092 = vmatpush.bf16.msra.mxu0 %v1859
      %2093 = vmatmul.bf16.gmra.mxu0 %v471
      %v2094 = vpop.f32.mrf.mxu0
      %v2095 = vadd.f32 0.0, %v2094
      %v2096 = vpop.f32.mrf.mxu0
      %v2097 = vadd.f32 0.0, %v2096
      %2098 = vdwg.mxu0
      %2099 = vmatpush.bf16.msra.mxu0 %v1904
      %2100 = vmatpush.bf16.msra.mxu0 %v1901
      %2101 = vmatpush.bf16.msra.mxu0 %v1898
      %2102 = vmatpush.bf16.msra.mxu0 %v1895
      %2103 = vmatpush.bf16.msra.mxu0 %v1892
      %2104 = vmatpush.bf16.msra.mxu0 %v1889
      %2105 = vmatpush.bf16.msra.mxu0 %v1886
      %2106 = vmatpush.bf16.msra.mxu0 %v1883
      %2107 = vmatmul.bf16.gmra.mxu0 %v472
      %v2108 = vpop.f32.mrf.mxu0
      %v2109 = vadd.f32 %v2095, %v2108
      %v2110 = vpop.f32.mrf.mxu0
      %v2111 = vadd.f32 %v2097, %v2110
      %2112 = vdwg.mxu0
      %2113 = vmatpush.bf16.msra.mxu0 %v1928
      %2114 = vmatpush.bf16.msra.mxu0 %v1925
      %2115 = vmatpush.bf16.msra.mxu0 %v1922
      %2116 = vmatpush.bf16.msra.mxu0 %v1919
      %2117 = vmatpush.bf16.msra.mxu0 %v1916
      %2118 = vmatpush.bf16.msra.mxu0 %v1913
      %2119 = vmatpush.bf16.msra.mxu0 %v1910
      %2120 = vmatpush.bf16.msra.mxu0 %v1907
      %2121 = vmatmul.bf16.gmra.mxu0 %v473
      %v2122 = vpop.f32.mrf.mxu0
      %v2123 = vadd.f32 %v2109, %v2122
      %v2124 = vpop.f32.mrf.mxu0
      %v2125 = vadd.f32 %v2111, %v2124
      %2126 = vdwg.mxu0
      %v2127 = vrot.slane %v2039, 1
      %v2128 = vrot.slane %v2081, 1
      %v2129 = vrot.slane %v2123, 1
      %v2130 = vrot.slane %v2041, 1
      %v2131 = vrot.slane %v2083, 1
      %v2132 = vrot.slane %v2125, 1
      %vm2133 = vcmp.lt.s32.totalorder %v234, 7
      %v2134 = vsel %vm2133, %v2127, %v2130
      %v2135 = vsel %vm2133, %v2128, %v2131
      %v2136 = vsel %vm2133, %v2129, %v2132
      %v2137 = vsel %vm2133, %v2130, %v2127
      %v2138 = vsel %vm2133, %v2131, %v2128
      %v2139 = vsel %vm2133, %v2132, %v2129
      %v2140 = vsel %vm262, 1, 0
      %v2141 = vsel %vm263, 1, 0
      %vm2142 = vcmp.eq.s32.totalorder %v2140, 1
      %vm2143 = vcmp.eq.s32.totalorder %v2141, 1
      %v2144 = vsel %vm2142, %v2134, 0.0
      %v2145 = vsel %vm2142, %v2135, 0.0
      %v2146 = vsel %vm2142, %v2136, 0.0
      %v2147 = vsel %vm2143, %v2137, 0.0
      %v2148 = vsel %vm2143, %v2138, 0.0
      %v2149 = vsel %vm2143, %v2139, 0.0
      %v2150 = vadd.f32 %v1432, %v2144
      %v2151 = vadd.f32 %v1474, %v2145
      %v2152 = vadd.f32 %v1516, %v2146
      %v2153 = vadd.f32 %v1434, %v2147
      %v2154 = vadd.f32 %v1476, %v2148
      %v2155 = vadd.f32 %v1518, %v2149
      %v2156 = vld [vmem:[%s2] sm:$0x7]
      %v2158 = vperm.slane %v2156, 0
      %v2159 = vperm.slane %v2156, 1
      %v2160 = vperm.slane %v2156, 2
      %v2164 = vadd.f32 %v2150, %v2158
      %v2165 = vadd.f32 %v2151, %v2159
      %v2166 = vadd.f32 %v2152, %v2160
      %v2167 = vadd.f32 %v2153, %v2158
      %v2168 = vadd.f32 %v2154, %v2159
      %v2169 = vadd.f32 %v2155, %v2160
      %v2170 = vmax.f32 %v2164, 0.0
      %v2171 = vmax.f32 %v2165, 0.0
      %v2172 = vmax.f32 %v2166, 0.0
      %v2173 = vmax.f32 %v2167, 0.0
      %v2174 = vmax.f32 %v2168, 0.0
      %v2175 = vmax.f32 %v2169, 0.0
      %v2176 = vpack.c.bf16 %v2173, %v2170
      %v2177 = vpack.c.bf16 %v2174, %v2171
      %v2178 = vpack.c.bf16 %v2175, %v2172
      %s2179 = scalar_lea.vmem %s3, 576
      %v2180 = vld [vmem:[%s2179] sm:$0xff]
      %v2181 = vld [vmem:[%s2179 + $0x8] sm:$0xf]
      %v2182 = vld [vmem:[%s2179 + $0xc] sm:$0xff]
      %v2183 = vld [vmem:[%s2179 + $0x14] sm:$0xf]
      %v2184 = vld [vmem:[%s2179 + $0x18] sm:$0xff]
      %v2185 = vld [vmem:[%s2179 + $0x20] sm:$0xf]
      %v2186 = vld [vmem:[%s2179 + $0x24] sm:$0xff]
      %v2187 = vld [vmem:[%s2179 + $0x2c] sm:$0xf]
      %v2188 = vld [vmem:[%s2179 + $0x30] sm:$0xff]
      %v2189 = vld [vmem:[%s2179 + $0x38] sm:$0xf]
      %v2190 = vld [vmem:[%s2179 + $0x3c] sm:$0xff]
      %v2191 = vld [vmem:[%s2179 + $0x44] sm:$0xf]
      %v2192 = vld [vmem:[%s2179 + $0x48] sm:$0xff]
      %v2193 = vld [vmem:[%s2179 + $0x50] sm:$0xf]
      %v2194 = vld [vmem:[%s2179 + $0x54] sm:$0xff]
      %v2195 = vld [vmem:[%s2179 + $0x5c] sm:$0xf]
      %v2196 = vld [vmem:[%s2179 + $0x60] sm:$0xff]
      %v2197 = vld [vmem:[%s2179 + $0x68] sm:$0xf]
      %v2198 = vld [vmem:[%s2179 + $0x6c] sm:$0xff]
      %v2199 = vld [vmem:[%s2179 + $0x74] sm:$0xf]
      %v2200 = vld [vmem:[%s2179 + $0x78] sm:$0xff]
      %v2201 = vld [vmem:[%s2179 + $0x80] sm:$0xf]
      %v2202 = vld [vmem:[%s2179 + $0x84] sm:$0xff]
      %v2203 = vld [vmem:[%s2179 + $0x8c] sm:$0xf]
      %v2204 = vld [vmem:[%s2179 + $0x90] sm:$0xff]
      %v2205 = vld [vmem:[%s2179 + $0x98] sm:$0xf]
      %v2206 = vld [vmem:[%s2179 + $0x9c] sm:$0xff]
      %v2207 = vld [vmem:[%s2179 + $0xa4] sm:$0xf]
      %v2208 = vld [vmem:[%s2179 + $0xa8] sm:$0xff]
      %v2209 = vld [vmem:[%s2179 + $0xb0] sm:$0xf]
      %v2210 = vld [vmem:[%s2179 + $0xb4] sm:$0xff]
      %v2211 = vld [vmem:[%s2179 + $0xbc] sm:$0xf]
      %v2212 = vld [vmem:[%s2179 + $0xc0] sm:$0xff]
      %v2213 = vld [vmem:[%s2179 + $0xc8] sm:$0xf]
      %v2214 = vld [vmem:[%s2179 + $0xcc] sm:$0xff]
      %v2215 = vld [vmem:[%s2179 + $0xd4] sm:$0xf]
      %v2216 = vld [vmem:[%s2179 + $0xd8] sm:$0xff]
      %v2217 = vld [vmem:[%s2179 + $0xe0] sm:$0xf]
      %v2218 = vld [vmem:[%s2179 + $0xe4] sm:$0xff]
      %v2219 = vld [vmem:[%s2179 + $0xec] sm:$0xf]
      %v2220 = vld [vmem:[%s2179 + $0xf0] sm:$0xff]
      %v2221 = vld [vmem:[%s2179 + $0xf8] sm:$0xf]
      %v2222 = vld [vmem:[%s2179 + $0xfc] sm:$0xff]
      %v2223 = vld [vmem:[%s2179 + $0x104] sm:$0xf]
      %v2224 = vld [vmem:[%s2179 + $0x108] sm:$0xff]
      %v2225 = vld [vmem:[%s2179 + $0x110] sm:$0xf]
      %v2226 = vld [vmem:[%s2179 + $0x114] sm:$0xff]
      %v2227 = vld [vmem:[%s2179 + $0x11c] sm:$0xf]
      %v2228 = vld [vmem:[%s2179 + $0x120] sm:$0xff]
      %v2229 = vld [vmem:[%s2179 + $0x128] sm:$0xf]
      %v2230 = vld [vmem:[%s2179 + $0x12c] sm:$0xff]
      %v2231 = vld [vmem:[%s2179 + $0x134] sm:$0xf]
      %v2232 = vld [vmem:[%s2179 + $0x138] sm:$0xff]
      %v2233 = vld [vmem:[%s2179 + $0x140] sm:$0xf]
      %v2234 = vld [vmem:[%s2179 + $0x144] sm:$0xff]
      %v2235 = vld [vmem:[%s2179 + $0x14c] sm:$0xf]
      %v2236 = vld [vmem:[%s2179 + $0x150] sm:$0xff]
      %v2237 = vld [vmem:[%s2179 + $0x158] sm:$0xf]
      %v2238 = vld [vmem:[%s2179 + $0x15c] sm:$0xff]
      %v2239 = vld [vmem:[%s2179 + $0x164] sm:$0xf]
      %v2240 = vld [vmem:[%s2179 + $0x168] sm:$0xff]
      %v2241 = vld [vmem:[%s2179 + $0x170] sm:$0xf]
      %v2242 = vld [vmem:[%s2179 + $0x174] sm:$0xff]
      %v2243 = vld [vmem:[%s2179 + $0x17c] sm:$0xf]
      %v2244 = vld [vmem:[%s2179 + $0x180] sm:$0xff]
      %v2245 = vld [vmem:[%s2179 + $0x188] sm:$0xf]
      %v2246 = vld [vmem:[%s2179 + $0x18c] sm:$0xff]
      %v2247 = vld [vmem:[%s2179 + $0x194] sm:$0xf]
      %v2248 = vld [vmem:[%s2179 + $0x198] sm:$0xff]
      %v2249 = vld [vmem:[%s2179 + $0x1a0] sm:$0xf]
      %v2250 = vld [vmem:[%s2179 + $0x1a4] sm:$0xff]
      %v2251 = vld [vmem:[%s2179 + $0x1ac] sm:$0xf]
      %v2252 = vld [vmem:[%s2179 + $0x1b0] sm:$0xff]
      %v2253 = vld [vmem:[%s2179 + $0x1b8] sm:$0xf]
      %v2254 = vld [vmem:[%s2179 + $0x1bc] sm:$0xff]
      %v2255 = vld [vmem:[%s2179 + $0x1c4] sm:$0xf]
      %v2256 = vld [vmem:[%s2179 + $0x1c8] sm:$0xff]
      %v2257 = vld [vmem:[%s2179 + $0x1d0] sm:$0xf]
      %v2258 = vld [vmem:[%s2179 + $0x1d4] sm:$0xff]
      %v2259 = vld [vmem:[%s2179 + $0x1dc] sm:$0xf]
      %v2260 = vld [vmem:[%s2179 + $0x1e0] sm:$0xff]
      %v2261 = vld [vmem:[%s2179 + $0x1e8] sm:$0xf]
      %v2262 = vld [vmem:[%s2179 + $0x1ec] sm:$0xff]
      %v2263 = vld [vmem:[%s2179 + $0x1f4] sm:$0xf]
      %v2264 = vld [vmem:[%s2179 + $0x1f8] sm:$0xff]
      %v2265 = vld [vmem:[%s2179 + $0x200] sm:$0xf]
      %v2266 = vld [vmem:[%s2179 + $0x204] sm:$0xff]
      %v2267 = vld [vmem:[%s2179 + $0x20c] sm:$0xf]
      %v2268 = vld [vmem:[%s2179 + $0x210] sm:$0xff]
      %v2269 = vld [vmem:[%s2179 + $0x218] sm:$0xf]
      %v2270 = vld [vmem:[%s2179 + $0x21c] sm:$0xff]
      %v2271 = vld [vmem:[%s2179 + $0x224] sm:$0xf]
      %v2272 = vld [vmem:[%s2179 + $0x228] sm:$0xff]
      %v2273 = vld [vmem:[%s2179 + $0x230] sm:$0xf]
      %v2274 = vld [vmem:[%s2179 + $0x234] sm:$0xff]
      %v2275 = vld [vmem:[%s2179 + $0x23c] sm:$0xf]
      %v2276 = vld [vmem:[%s3] sm:$0xff]
      %v2277 = vld [vmem:[%s3 + $0x8] sm:$0xf]
      %v2278 = vld [vmem:[%s3 + $0xc] sm:$0xff]
      %v2279 = vld [vmem:[%s3 + $0x14] sm:$0xf]
      %v2280 = vld [vmem:[%s3 + $0x18] sm:$0xff]
      %v2281 = vld [vmem:[%s3 + $0x20] sm:$0xf]
      %v2282 = vld [vmem:[%s3 + $0x24] sm:$0xff]
      %v2283 = vld [vmem:[%s3 + $0x2c] sm:$0xf]
      %v2284 = vld [vmem:[%s3 + $0x30] sm:$0xff]
      %v2285 = vld [vmem:[%s3 + $0x38] sm:$0xf]
      %v2286 = vld [vmem:[%s3 + $0x3c] sm:$0xff]
      %v2287 = vld [vmem:[%s3 + $0x44] sm:$0xf]
      %v2288 = vld [vmem:[%s3 + $0x48] sm:$0xff]
      %v2289 = vld [vmem:[%s3 + $0x50] sm:$0xf]
      %v2290 = vld [vmem:[%s3 + $0x54] sm:$0xff]
      %v2291 = vld [vmem:[%s3 + $0x5c] sm:$0xf]
      %v2292 = vld [vmem:[%s3 + $0x60] sm:$0xff]
      %v2293 = vld [vmem:[%s3 + $0x68] sm:$0xf]
      %v2294 = vld [vmem:[%s3 + $0x6c] sm:$0xff]
      %v2295 = vld [vmem:[%s3 + $0x74] sm:$0xf]
      %v2296 = vld [vmem:[%s3 + $0x78] sm:$0xff]
      %v2297 = vld [vmem:[%s3 + $0x80] sm:$0xf]
      %v2298 = vld [vmem:[%s3 + $0x84] sm:$0xff]
      %v2299 = vld [vmem:[%s3 + $0x8c] sm:$0xf]
      %v2300 = vld [vmem:[%s3 + $0x90] sm:$0xff]
      %v2301 = vld [vmem:[%s3 + $0x98] sm:$0xf]
      %v2302 = vld [vmem:[%s3 + $0x9c] sm:$0xff]
      %v2303 = vld [vmem:[%s3 + $0xa4] sm:$0xf]
      %v2304 = vld [vmem:[%s3 + $0xa8] sm:$0xff]
      %v2305 = vld [vmem:[%s3 + $0xb0] sm:$0xf]
      %v2306 = vld [vmem:[%s3 + $0xb4] sm:$0xff]
      %v2307 = vld [vmem:[%s3 + $0xbc] sm:$0xf]
      %v2308 = vld [vmem:[%s3 + $0xc0] sm:$0xff]
      %v2309 = vld [vmem:[%s3 + $0xc8] sm:$0xf]
      %v2310 = vld [vmem:[%s3 + $0xcc] sm:$0xff]
      %v2311 = vld [vmem:[%s3 + $0xd4] sm:$0xf]
      %v2312 = vld [vmem:[%s3 + $0xd8] sm:$0xff]
      %v2313 = vld [vmem:[%s3 + $0xe0] sm:$0xf]
      %v2314 = vld [vmem:[%s3 + $0xe4] sm:$0xff]
      %v2315 = vld [vmem:[%s3 + $0xec] sm:$0xf]
      %v2316 = vld [vmem:[%s3 + $0xf0] sm:$0xff]
      %v2317 = vld [vmem:[%s3 + $0xf8] sm:$0xf]
      %v2318 = vld [vmem:[%s3 + $0xfc] sm:$0xff]
      %v2319 = vld [vmem:[%s3 + $0x104] sm:$0xf]
      %v2320 = vld [vmem:[%s3 + $0x108] sm:$0xff]
      %v2321 = vld [vmem:[%s3 + $0x110] sm:$0xf]
      %v2322 = vld [vmem:[%s3 + $0x114] sm:$0xff]
      %v2323 = vld [vmem:[%s3 + $0x11c] sm:$0xf]
      %v2324 = vld [vmem:[%s3 + $0x120] sm:$0xff]
      %v2325 = vld [vmem:[%s3 + $0x128] sm:$0xf]
      %v2326 = vld [vmem:[%s3 + $0x12c] sm:$0xff]
      %v2327 = vld [vmem:[%s3 + $0x134] sm:$0xf]
      %v2328 = vld [vmem:[%s3 + $0x138] sm:$0xff]
      %v2329 = vld [vmem:[%s3 + $0x140] sm:$0xf]
      %v2330 = vld [vmem:[%s3 + $0x144] sm:$0xff]
      %v2331 = vld [vmem:[%s3 + $0x14c] sm:$0xf]
      %v2332 = vld [vmem:[%s3 + $0x150] sm:$0xff]
      %v2333 = vld [vmem:[%s3 + $0x158] sm:$0xf]
      %v2334 = vld [vmem:[%s3 + $0x15c] sm:$0xff]
      %v2335 = vld [vmem:[%s3 + $0x164] sm:$0xf]
      %v2336 = vld [vmem:[%s3 + $0x168] sm:$0xff]
      %v2337 = vld [vmem:[%s3 + $0x170] sm:$0xf]
      %v2338 = vld [vmem:[%s3 + $0x174] sm:$0xff]
      %v2339 = vld [vmem:[%s3 + $0x17c] sm:$0xf]
      %v2340 = vld [vmem:[%s3 + $0x180] sm:$0xff]
      %v2341 = vld [vmem:[%s3 + $0x188] sm:$0xf]
      %v2342 = vld [vmem:[%s3 + $0x18c] sm:$0xff]
      %v2343 = vld [vmem:[%s3 + $0x194] sm:$0xf]
      %v2344 = vld [vmem:[%s3 + $0x198] sm:$0xff]
      %v2345 = vld [vmem:[%s3 + $0x1a0] sm:$0xf]
      %v2346 = vld [vmem:[%s3 + $0x1a4] sm:$0xff]
      %v2347 = vld [vmem:[%s3 + $0x1ac] sm:$0xf]
      %v2348 = vld [vmem:[%s3 + $0x1b0] sm:$0xff]
      %v2349 = vld [vmem:[%s3 + $0x1b8] sm:$0xf]
      %v2350 = vld [vmem:[%s3 + $0x1bc] sm:$0xff]
      %v2351 = vld [vmem:[%s3 + $0x1c4] sm:$0xf]
      %v2352 = vld [vmem:[%s3 + $0x1c8] sm:$0xff]
      %v2353 = vld [vmem:[%s3 + $0x1d0] sm:$0xf]
      %v2354 = vld [vmem:[%s3 + $0x1d4] sm:$0xff]
      %v2355 = vld [vmem:[%s3 + $0x1dc] sm:$0xf]
      %v2356 = vld [vmem:[%s3 + $0x1e0] sm:$0xff]
      %v2357 = vld [vmem:[%s3 + $0x1e8] sm:$0xf]
      %v2358 = vld [vmem:[%s3 + $0x1ec] sm:$0xff]
      %v2359 = vld [vmem:[%s3 + $0x1f4] sm:$0xf]
      %v2360 = vld [vmem:[%s3 + $0x1f8] sm:$0xff]
      %v2361 = vld [vmem:[%s3 + $0x200] sm:$0xf]
      %v2362 = vld [vmem:[%s3 + $0x204] sm:$0xff]
      %v2363 = vld [vmem:[%s3 + $0x20c] sm:$0xf]
      %v2364 = vld [vmem:[%s3 + $0x210] sm:$0xff]
      %v2365 = vld [vmem:[%s3 + $0x218] sm:$0xf]
      %v2366 = vld [vmem:[%s3 + $0x21c] sm:$0xff]
      %v2367 = vld [vmem:[%s3 + $0x224] sm:$0xf]
      %v2368 = vld [vmem:[%s3 + $0x228] sm:$0xff]
      %v2369 = vld [vmem:[%s3 + $0x230] sm:$0xf]
      %v2370 = vld [vmem:[%s3 + $0x234] sm:$0xff]
      %v2371 = vld [vmem:[%s3 + $0x23c] sm:$0xf]
      %v2468 = vunpack.c.l.b16 %v2276
      %v2469 = vunpack.c.h.b16 %v2276
      %v2470 = vunpack.c.l.b16 %v2277
      %v2471 = vunpack.c.l.b16 %v2278
      %v2472 = vunpack.c.h.b16 %v2278
      %v2473 = vunpack.c.l.b16 %v2279
      %v2474 = vunpack.c.l.b16 %v2280
      %v2475 = vunpack.c.h.b16 %v2280
      %v2476 = vunpack.c.l.b16 %v2281
      %v2477 = vunpack.c.l.b16 %v2282
      %v2478 = vunpack.c.h.b16 %v2282
      %v2479 = vunpack.c.l.b16 %v2283
      %v2480 = vunpack.c.l.b16 %v2284
      %v2481 = vunpack.c.h.b16 %v2284
      %v2482 = vunpack.c.l.b16 %v2285
      %v2483 = vunpack.c.l.b16 %v2286
      %v2484 = vunpack.c.h.b16 %v2286
      %v2485 = vunpack.c.l.b16 %v2287
      %v2486 = vunpack.c.l.b16 %v2288
      %v2487 = vunpack.c.h.b16 %v2288
      %v2488 = vunpack.c.l.b16 %v2289
      %v2489 = vunpack.c.l.b16 %v2290
      %v2490 = vunpack.c.h.b16 %v2290
      %v2491 = vunpack.c.l.b16 %v2291
      %v2492 = vunpack.c.l.b16 %v2292
      %v2493 = vunpack.c.h.b16 %v2292
      %v2494 = vunpack.c.l.b16 %v2293
      %v2495 = vunpack.c.l.b16 %v2294
      %v2496 = vunpack.c.h.b16 %v2294
      %v2497 = vunpack.c.l.b16 %v2295
      %v2498 = vunpack.c.l.b16 %v2296
      %v2499 = vunpack.c.h.b16 %v2296
      %v2500 = vunpack.c.l.b16 %v2297
      %v2501 = vunpack.c.l.b16 %v2298
      %v2502 = vunpack.c.h.b16 %v2298
      %v2503 = vunpack.c.l.b16 %v2299
      %v2504 = vunpack.c.l.b16 %v2300
      %v2505 = vunpack.c.h.b16 %v2300
      %v2506 = vunpack.c.l.b16 %v2301
      %v2507 = vunpack.c.l.b16 %v2302
      %v2508 = vunpack.c.h.b16 %v2302
      %v2509 = vunpack.c.l.b16 %v2303
      %v2510 = vunpack.c.l.b16 %v2304
      %v2511 = vunpack.c.h.b16 %v2304
      %v2512 = vunpack.c.l.b16 %v2305
      %v2513 = vunpack.c.l.b16 %v2306
      %v2514 = vunpack.c.h.b16 %v2306
      %v2515 = vunpack.c.l.b16 %v2307
      %v2516 = vunpack.c.l.b16 %v2308
      %v2517 = vunpack.c.h.b16 %v2308
      %v2518 = vunpack.c.l.b16 %v2309
      %v2519 = vunpack.c.l.b16 %v2310
      %v2520 = vunpack.c.h.b16 %v2310
      %v2521 = vunpack.c.l.b16 %v2311
      %v2522 = vunpack.c.l.b16 %v2312
      %v2523 = vunpack.c.h.b16 %v2312
      %v2524 = vunpack.c.l.b16 %v2313
      %v2525 = vunpack.c.l.b16 %v2314
      %v2526 = vunpack.c.h.b16 %v2314
      %v2527 = vunpack.c.l.b16 %v2315
      %v2528 = vunpack.c.l.b16 %v2316
      %v2529 = vunpack.c.h.b16 %v2316
      %v2530 = vunpack.c.l.b16 %v2317
      %v2531 = vunpack.c.l.b16 %v2318
      %v2532 = vunpack.c.h.b16 %v2318
      %v2533 = vunpack.c.l.b16 %v2319
      %v2534 = vunpack.c.l.b16 %v2320
      %v2535 = vunpack.c.h.b16 %v2320
      %v2536 = vunpack.c.l.b16 %v2321
      %v2537 = vunpack.c.l.b16 %v2322
      %v2538 = vunpack.c.h.b16 %v2322
      %v2539 = vunpack.c.l.b16 %v2323
      %v2540 = vunpack.c.l.b16 %v2324
      %v2541 = vunpack.c.h.b16 %v2324
      %v2542 = vunpack.c.l.b16 %v2325
      %v2543 = vunpack.c.l.b16 %v2326
      %v2544 = vunpack.c.h.b16 %v2326
      %v2545 = vunpack.c.l.b16 %v2327
      %v2546 = vunpack.c.l.b16 %v2328
      %v2547 = vunpack.c.h.b16 %v2328
      %v2548 = vunpack.c.l.b16 %v2329
      %v2549 = vunpack.c.l.b16 %v2330
      %v2550 = vunpack.c.h.b16 %v2330
      %v2551 = vunpack.c.l.b16 %v2331
      %v2552 = vunpack.c.l.b16 %v2332
      %v2553 = vunpack.c.h.b16 %v2332
      %v2554 = vunpack.c.l.b16 %v2333
      %v2555 = vunpack.c.l.b16 %v2334
      %v2556 = vunpack.c.h.b16 %v2334
      %v2557 = vunpack.c.l.b16 %v2335
      %v2558 = vunpack.c.l.b16 %v2336
      %v2559 = vunpack.c.h.b16 %v2336
      %v2560 = vunpack.c.l.b16 %v2337
      %v2561 = vunpack.c.l.b16 %v2338
      %v2562 = vunpack.c.h.b16 %v2338
      %v2563 = vunpack.c.l.b16 %v2339
      %v2564 = vunpack.c.l.b16 %v2340
      %v2565 = vunpack.c.h.b16 %v2340
      %v2566 = vunpack.c.l.b16 %v2341
      %v2567 = vunpack.c.l.b16 %v2342
      %v2568 = vunpack.c.h.b16 %v2342
      %v2569 = vunpack.c.l.b16 %v2343
      %v2570 = vunpack.c.l.b16 %v2344
      %v2571 = vunpack.c.h.b16 %v2344
      %v2572 = vunpack.c.l.b16 %v2345
      %v2573 = vunpack.c.l.b16 %v2346
      %v2574 = vunpack.c.h.b16 %v2346
      %v2575 = vunpack.c.l.b16 %v2347
      %v2576 = vunpack.c.l.b16 %v2348
      %v2577 = vunpack.c.h.b16 %v2348
      %v2578 = vunpack.c.l.b16 %v2349
      %v2579 = vunpack.c.l.b16 %v2350
      %v2580 = vunpack.c.h.b16 %v2350
      %v2581 = vunpack.c.l.b16 %v2351
      %v2582 = vunpack.c.l.b16 %v2352
      %v2583 = vunpack.c.h.b16 %v2352
      %v2584 = vunpack.c.l.b16 %v2353
      %v2585 = vunpack.c.l.b16 %v2354
      %v2586 = vunpack.c.h.b16 %v2354
      %v2587 = vunpack.c.l.b16 %v2355
      %v2588 = vunpack.c.l.b16 %v2356
      %v2589 = vunpack.c.h.b16 %v2356
      %v2590 = vunpack.c.l.b16 %v2357
      %v2591 = vunpack.c.l.b16 %v2358
      %v2592 = vunpack.c.h.b16 %v2358
      %v2593 = vunpack.c.l.b16 %v2359
      %v2594 = vunpack.c.l.b16 %v2360
      %v2595 = vunpack.c.h.b16 %v2360
      %v2596 = vunpack.c.l.b16 %v2361
      %v2597 = vunpack.c.l.b16 %v2362
      %v2598 = vunpack.c.h.b16 %v2362
      %v2599 = vunpack.c.l.b16 %v2363
      %v2600 = vunpack.c.l.b16 %v2364
      %v2601 = vunpack.c.h.b16 %v2364
      %v2602 = vunpack.c.l.b16 %v2365
      %v2603 = vunpack.c.l.b16 %v2366
      %v2604 = vunpack.c.h.b16 %v2366
      %v2605 = vunpack.c.l.b16 %v2367
      %v2606 = vunpack.c.l.b16 %v2368
      %v2607 = vunpack.c.h.b16 %v2368
      %v2608 = vunpack.c.l.b16 %v2369
      %v2609 = vunpack.c.l.b16 %v2370
      %v2610 = vunpack.c.h.b16 %v2370
      %v2611 = vunpack.c.l.b16 %v2371
      %v2612 = vpack.c.b16 %v2471, %v2468
      %v2613 = vpack.c.b16 %v2472, %v2469
      %v2614 = vpack.c.b16 %v2473, %v2470
      %v2615 = vpack.c.b16 %v2477, %v2474
      %v2616 = vpack.c.b16 %v2478, %v2475
      %v2617 = vpack.c.b16 %v2479, %v2476
      %v2618 = vpack.c.b16 %v2483, %v2480
      %v2619 = vpack.c.b16 %v2484, %v2481
      %v2620 = vpack.c.b16 %v2485, %v2482
      %v2621 = vpack.c.b16 %v2489, %v2486
      %v2622 = vpack.c.b16 %v2490, %v2487
      %v2623 = vpack.c.b16 %v2491, %v2488
      %v2624 = vpack.c.b16 %v2495, %v2492
      %v2625 = vpack.c.b16 %v2496, %v2493
      %v2626 = vpack.c.b16 %v2497, %v2494
      %v2627 = vpack.c.b16 %v2501, %v2498
      %v2628 = vpack.c.b16 %v2502, %v2499
      %v2629 = vpack.c.b16 %v2503, %v2500
      %v2630 = vpack.c.b16 %v2507, %v2504
      %v2631 = vpack.c.b16 %v2508, %v2505
      %v2632 = vpack.c.b16 %v2509, %v2506
      %v2633 = vpack.c.b16 %v2513, %v2510
      %v2634 = vpack.c.b16 %v2514, %v2511
      %v2635 = vpack.c.b16 %v2515, %v2512
      %v2636 = vpack.c.b16 %v2519, %v2516
      %v2637 = vpack.c.b16 %v2520, %v2517
      %v2638 = vpack.c.b16 %v2521, %v2518
      %v2639 = vpack.c.b16 %v2525, %v2522
      %v2640 = vpack.c.b16 %v2526, %v2523
      %v2641 = vpack.c.b16 %v2527, %v2524
      %v2642 = vpack.c.b16 %v2531, %v2528
      %v2643 = vpack.c.b16 %v2532, %v2529
      %v2644 = vpack.c.b16 %v2533, %v2530
      %v2645 = vpack.c.b16 %v2537, %v2534
      %v2646 = vpack.c.b16 %v2538, %v2535
      %v2647 = vpack.c.b16 %v2539, %v2536
      %v2648 = vpack.c.b16 %v2543, %v2540
      %v2649 = vpack.c.b16 %v2544, %v2541
      %v2650 = vpack.c.b16 %v2545, %v2542
      %v2651 = vpack.c.b16 %v2549, %v2546
      %v2652 = vpack.c.b16 %v2550, %v2547
      %v2653 = vpack.c.b16 %v2551, %v2548
      %v2654 = vpack.c.b16 %v2555, %v2552
      %v2655 = vpack.c.b16 %v2556, %v2553
      %v2656 = vpack.c.b16 %v2557, %v2554
      %v2657 = vpack.c.b16 %v2561, %v2558
      %v2658 = vpack.c.b16 %v2562, %v2559
      %v2659 = vpack.c.b16 %v2563, %v2560
      %v2660 = vpack.c.b16 %v2567, %v2564
      %v2661 = vpack.c.b16 %v2568, %v2565
      %v2662 = vpack.c.b16 %v2569, %v2566
      %v2663 = vpack.c.b16 %v2573, %v2570
      %v2664 = vpack.c.b16 %v2574, %v2571
      %v2665 = vpack.c.b16 %v2575, %v2572
      %v2666 = vpack.c.b16 %v2579, %v2576
      %v2667 = vpack.c.b16 %v2580, %v2577
      %v2668 = vpack.c.b16 %v2581, %v2578
      %v2669 = vpack.c.b16 %v2585, %v2582
      %v2670 = vpack.c.b16 %v2586, %v2583
      %v2671 = vpack.c.b16 %v2587, %v2584
      %v2672 = vpack.c.b16 %v2591, %v2588
      %v2673 = vpack.c.b16 %v2592, %v2589
      %v2674 = vpack.c.b16 %v2593, %v2590
      %v2675 = vpack.c.b16 %v2597, %v2594
      %v2676 = vpack.c.b16 %v2598, %v2595
      %v2677 = vpack.c.b16 %v2599, %v2596
      %v2678 = vpack.c.b16 %v2603, %v2600
      %v2679 = vpack.c.b16 %v2604, %v2601
      %v2680 = vpack.c.b16 %v2605, %v2602
      %v2681 = vpack.c.b16 %v2609, %v2606
      %v2682 = vpack.c.b16 %v2610, %v2607
      %v2683 = vpack.c.b16 %v2611, %v2608
      %2756 = vmatpush.bf16.msra.mxu0 %v2633
      %2757 = vmatpush.bf16.msra.mxu0 %v2630
      %2758 = vmatpush.bf16.msra.mxu0 %v2627
      %2759 = vmatpush.bf16.msra.mxu0 %v2624
      %2760 = vmatpush.bf16.msra.mxu0 %v2621
      %2761 = vmatpush.bf16.msra.mxu0 %v2618
      %2762 = vmatpush.bf16.msra.mxu0 %v2615
      %2763 = vmatpush.bf16.msra.mxu0 %v2612
      %2764 = vmatmul.bf16.gmra.mxu0 %v2176
      %v2765 = vpop.f32.mrf.mxu0
      %v2766 = vadd.f32 0.0, %v2765
      %v2767 = vpop.f32.mrf.mxu0
      %v2768 = vadd.f32 0.0, %v2767
      %2769 = vdwg.mxu0
      %2770 = vmatpush.bf16.msra.mxu0 %v2657
      %2771 = vmatpush.bf16.msra.mxu0 %v2654
      %2772 = vmatpush.bf16.msra.mxu0 %v2651
      %2773 = vmatpush.bf16.msra.mxu0 %v2648
      %2774 = vmatpush.bf16.msra.mxu0 %v2645
      %2775 = vmatpush.bf16.msra.mxu0 %v2642
      %2776 = vmatpush.bf16.msra.mxu0 %v2639
      %2777 = vmatpush.bf16.msra.mxu0 %v2636
      %2778 = vmatmul.bf16.gmra.mxu0 %v2177
      %v2779 = vpop.f32.mrf.mxu0
      %v2780 = vadd.f32 %v2766, %v2779
      %v2781 = vpop.f32.mrf.mxu0
      %v2782 = vadd.f32 %v2768, %v2781
      %2783 = vdwg.mxu0
      %2784 = vmatpush.bf16.msra.mxu0 %v2681
      %2785 = vmatpush.bf16.msra.mxu0 %v2678
      %2786 = vmatpush.bf16.msra.mxu0 %v2675
      %2787 = vmatpush.bf16.msra.mxu0 %v2672
      %2788 = vmatpush.bf16.msra.mxu0 %v2669
      %2789 = vmatpush.bf16.msra.mxu0 %v2666
      %2790 = vmatpush.bf16.msra.mxu0 %v2663
      %2791 = vmatpush.bf16.msra.mxu0 %v2660
      %2792 = vmatmul.bf16.gmra.mxu0 %v2178
      %v2793 = vpop.f32.mrf.mxu0
      %v2794 = vadd.f32 %v2780, %v2793
      %v2795 = vpop.f32.mrf.mxu0
      %v2796 = vadd.f32 %v2782, %v2795
      %2797 = vdwg.mxu0
      %2798 = vmatpush.bf16.msra.mxu0 %v2634
      %2799 = vmatpush.bf16.msra.mxu0 %v2631
      %2800 = vmatpush.bf16.msra.mxu0 %v2628
      %2801 = vmatpush.bf16.msra.mxu0 %v2625
      %2802 = vmatpush.bf16.msra.mxu0 %v2622
      %2803 = vmatpush.bf16.msra.mxu0 %v2619
      %2804 = vmatpush.bf16.msra.mxu0 %v2616
      %2805 = vmatpush.bf16.msra.mxu0 %v2613
      %2806 = vmatmul.bf16.gmra.mxu0 %v2176
      %v2807 = vpop.f32.mrf.mxu0
      %v2808 = vadd.f32 0.0, %v2807
      %v2809 = vpop.f32.mrf.mxu0
      %v2810 = vadd.f32 0.0, %v2809
      %2811 = vdwg.mxu0
      %2812 = vmatpush.bf16.msra.mxu0 %v2658
      %2813 = vmatpush.bf16.msra.mxu0 %v2655
      %2814 = vmatpush.bf16.msra.mxu0 %v2652
      %2815 = vmatpush.bf16.msra.mxu0 %v2649
      %2816 = vmatpush.bf16.msra.mxu0 %v2646
      %2817 = vmatpush.bf16.msra.mxu0 %v2643
      %2818 = vmatpush.bf16.msra.mxu0 %v2640
      %2819 = vmatpush.bf16.msra.mxu0 %v2637
      %2820 = vmatmul.bf16.gmra.mxu0 %v2177
      %v2821 = vpop.f32.mrf.mxu0
      %v2822 = vadd.f32 %v2808, %v2821
      %v2823 = vpop.f32.mrf.mxu0
      %v2824 = vadd.f32 %v2810, %v2823
      %2825 = vdwg.mxu0
      %2826 = vmatpush.bf16.msra.mxu0 %v2682
      %2827 = vmatpush.bf16.msra.mxu0 %v2679
      %2828 = vmatpush.bf16.msra.mxu0 %v2676
      %2829 = vmatpush.bf16.msra.mxu0 %v2673
      %2830 = vmatpush.bf16.msra.mxu0 %v2670
      %2831 = vmatpush.bf16.msra.mxu0 %v2667
      %2832 = vmatpush.bf16.msra.mxu0 %v2664
      %2833 = vmatpush.bf16.msra.mxu0 %v2661
      %2834 = vmatmul.bf16.gmra.mxu0 %v2178
      %v2835 = vpop.f32.mrf.mxu0
      %v2836 = vadd.f32 %v2822, %v2835
      %v2837 = vpop.f32.mrf.mxu0
      %v2838 = vadd.f32 %v2824, %v2837
      %2839 = vdwg.mxu0
      %2840 = vmatpush.bf16.msra.mxu0 %v2635
      %2841 = vmatpush.bf16.msra.mxu0 %v2632
      %2842 = vmatpush.bf16.msra.mxu0 %v2629
      %2843 = vmatpush.bf16.msra.mxu0 %v2626
      %2844 = vmatpush.bf16.msra.mxu0 %v2623
      %2845 = vmatpush.bf16.msra.mxu0 %v2620
      %2846 = vmatpush.bf16.msra.mxu0 %v2617
      %2847 = vmatpush.bf16.msra.mxu0 %v2614
      %2848 = vmatmul.bf16.gmra.mxu0 %v2176
      %v2849 = vpop.f32.mrf.mxu0
      %v2850 = vadd.f32 0.0, %v2849
      %v2851 = vpop.f32.mrf.mxu0
      %v2852 = vadd.f32 0.0, %v2851
      %2853 = vdwg.mxu0
      %2854 = vmatpush.bf16.msra.mxu0 %v2659
      %2855 = vmatpush.bf16.msra.mxu0 %v2656
      %2856 = vmatpush.bf16.msra.mxu0 %v2653
      %2857 = vmatpush.bf16.msra.mxu0 %v2650
      %2858 = vmatpush.bf16.msra.mxu0 %v2647
      %2859 = vmatpush.bf16.msra.mxu0 %v2644
      %2860 = vmatpush.bf16.msra.mxu0 %v2641
      %2861 = vmatpush.bf16.msra.mxu0 %v2638
      %2862 = vmatmul.bf16.gmra.mxu0 %v2177
      %v2863 = vpop.f32.mrf.mxu0
      %v2864 = vadd.f32 %v2850, %v2863
      %v2865 = vpop.f32.mrf.mxu0
      %v2866 = vadd.f32 %v2852, %v2865
      %2867 = vdwg.mxu0
      %2868 = vmatpush.bf16.msra.mxu0 %v2683
      %2869 = vmatpush.bf16.msra.mxu0 %v2680
      %2870 = vmatpush.bf16.msra.mxu0 %v2677
      %2871 = vmatpush.bf16.msra.mxu0 %v2674
      %2872 = vmatpush.bf16.msra.mxu0 %v2671
      %2873 = vmatpush.bf16.msra.mxu0 %v2668
      %2874 = vmatpush.bf16.msra.mxu0 %v2665
      %2875 = vmatpush.bf16.msra.mxu0 %v2662
      %2876 = vmatmul.bf16.gmra.mxu0 %v2178
      %v2877 = vpop.f32.mrf.mxu0
      %v2878 = vadd.f32 %v2864, %v2877
      %v2879 = vpop.f32.mrf.mxu0
      %v2880 = vadd.f32 %v2866, %v2879
      %2881 = vdwg.mxu0
      %v2882 = vrot.slane %v2794, 7
      %v2883 = vrot.slane %v2836, 7
      %v2884 = vrot.slane %v2878, 7
      %v2885 = vrot.slane %v2796, 7
      %v2886 = vrot.slane %v2838, 7
      %v2887 = vrot.slane %v2880, 7
      %v2888 = vsel %vm993, %v2882, %v2885
      %v2889 = vsel %vm993, %v2883, %v2886
      %v2890 = vsel %vm993, %v2884, %v2887
      %v2891 = vsel %vm993, %v2885, %v2882
      %v2892 = vsel %vm993, %v2886, %v2883
      %v2893 = vsel %vm993, %v2887, %v2884
      %v2894 = vsel %vm1002, %v2891, 0.0
      %v2895 = vsel %vm1002, %v2892, 0.0
      %v2896 = vsel %vm1002, %v2893, 0.0
      %v2897 = vsel %vm1003, %v2888, 0.0
      %v2898 = vsel %vm1003, %v2889, 0.0
      %v2899 = vsel %vm1003, %v2890, 0.0
      %v2996 = vunpack.c.l.b16 %v2180
      %v2997 = vunpack.c.h.b16 %v2180
      %v2998 = vunpack.c.l.b16 %v2181
      %v2999 = vunpack.c.l.b16 %v2182
      %v3000 = vunpack.c.h.b16 %v2182
      %v3001 = vunpack.c.l.b16 %v2183
      %v3002 = vunpack.c.l.b16 %v2184
      %v3003 = vunpack.c.h.b16 %v2184
      %v3004 = vunpack.c.l.b16 %v2185
      %v3005 = vunpack.c.l.b16 %v2186
      %v3006 = vunpack.c.h.b16 %v2186
      %v3007 = vunpack.c.l.b16 %v2187
      %v3008 = vunpack.c.l.b16 %v2188
      %v3009 = vunpack.c.h.b16 %v2188
      %v3010 = vunpack.c.l.b16 %v2189
      %v3011 = vunpack.c.l.b16 %v2190
      %v3012 = vunpack.c.h.b16 %v2190
      %v3013 = vunpack.c.l.b16 %v2191
      %v3014 = vunpack.c.l.b16 %v2192
      %v3015 = vunpack.c.h.b16 %v2192
      %v3016 = vunpack.c.l.b16 %v2193
      %v3017 = vunpack.c.l.b16 %v2194
      %v3018 = vunpack.c.h.b16 %v2194
      %v3019 = vunpack.c.l.b16 %v2195
      %v3020 = vunpack.c.l.b16 %v2196
      %v3021 = vunpack.c.h.b16 %v2196
      %v3022 = vunpack.c.l.b16 %v2197
      %v3023 = vunpack.c.l.b16 %v2198
      %v3024 = vunpack.c.h.b16 %v2198
      %v3025 = vunpack.c.l.b16 %v2199
      %v3026 = vunpack.c.l.b16 %v2200
      %v3027 = vunpack.c.h.b16 %v2200
      %v3028 = vunpack.c.l.b16 %v2201
      %v3029 = vunpack.c.l.b16 %v2202
      %v3030 = vunpack.c.h.b16 %v2202
      %v3031 = vunpack.c.l.b16 %v2203
      %v3032 = vunpack.c.l.b16 %v2204
      %v3033 = vunpack.c.h.b16 %v2204
      %v3034 = vunpack.c.l.b16 %v2205
      %v3035 = vunpack.c.l.b16 %v2206
      %v3036 = vunpack.c.h.b16 %v2206
      %v3037 = vunpack.c.l.b16 %v2207
      %v3038 = vunpack.c.l.b16 %v2208
      %v3039 = vunpack.c.h.b16 %v2208
      %v3040 = vunpack.c.l.b16 %v2209
      %v3041 = vunpack.c.l.b16 %v2210
      %v3042 = vunpack.c.h.b16 %v2210
      %v3043 = vunpack.c.l.b16 %v2211
      %v3044 = vunpack.c.l.b16 %v2212
      %v3045 = vunpack.c.h.b16 %v2212
      %v3046 = vunpack.c.l.b16 %v2213
      %v3047 = vunpack.c.l.b16 %v2214
      %v3048 = vunpack.c.h.b16 %v2214
      %v3049 = vunpack.c.l.b16 %v2215
      %v3050 = vunpack.c.l.b16 %v2216
      %v3051 = vunpack.c.h.b16 %v2216
      %v3052 = vunpack.c.l.b16 %v2217
      %v3053 = vunpack.c.l.b16 %v2218
      %v3054 = vunpack.c.h.b16 %v2218
      %v3055 = vunpack.c.l.b16 %v2219
      %v3056 = vunpack.c.l.b16 %v2220
      %v3057 = vunpack.c.h.b16 %v2220
      %v3058 = vunpack.c.l.b16 %v2221
      %v3059 = vunpack.c.l.b16 %v2222
      %v3060 = vunpack.c.h.b16 %v2222
      %v3061 = vunpack.c.l.b16 %v2223
      %v3062 = vunpack.c.l.b16 %v2224
      %v3063 = vunpack.c.h.b16 %v2224
      %v3064 = vunpack.c.l.b16 %v2225
      %v3065 = vunpack.c.l.b16 %v2226
      %v3066 = vunpack.c.h.b16 %v2226
      %v3067 = vunpack.c.l.b16 %v2227
      %v3068 = vunpack.c.l.b16 %v2228
      %v3069 = vunpack.c.h.b16 %v2228
      %v3070 = vunpack.c.l.b16 %v2229
      %v3071 = vunpack.c.l.b16 %v2230
      %v3072 = vunpack.c.h.b16 %v2230
      %v3073 = vunpack.c.l.b16 %v2231
      %v3074 = vunpack.c.l.b16 %v2232
      %v3075 = vunpack.c.h.b16 %v2232
      %v3076 = vunpack.c.l.b16 %v2233
      %v3077 = vunpack.c.l.b16 %v2234
      %v3078 = vunpack.c.h.b16 %v2234
      %v3079 = vunpack.c.l.b16 %v2235
      %v3080 = vunpack.c.l.b16 %v2236
      %v3081 = vunpack.c.h.b16 %v2236
      %v3082 = vunpack.c.l.b16 %v2237
      %v3083 = vunpack.c.l.b16 %v2238
      %v3084 = vunpack.c.h.b16 %v2238
      %v3085 = vunpack.c.l.b16 %v2239
      %v3086 = vunpack.c.l.b16 %v2240
      %v3087 = vunpack.c.h.b16 %v2240
      %v3088 = vunpack.c.l.b16 %v2241
      %v3089 = vunpack.c.l.b16 %v2242
      %v3090 = vunpack.c.h.b16 %v2242
      %v3091 = vunpack.c.l.b16 %v2243
      %v3092 = vunpack.c.l.b16 %v2244
      %v3093 = vunpack.c.h.b16 %v2244
      %v3094 = vunpack.c.l.b16 %v2245
      %v3095 = vunpack.c.l.b16 %v2246
      %v3096 = vunpack.c.h.b16 %v2246
      %v3097 = vunpack.c.l.b16 %v2247
      %v3098 = vunpack.c.l.b16 %v2248
      %v3099 = vunpack.c.h.b16 %v2248
      %v3100 = vunpack.c.l.b16 %v2249
      %v3101 = vunpack.c.l.b16 %v2250
      %v3102 = vunpack.c.h.b16 %v2250
      %v3103 = vunpack.c.l.b16 %v2251
      %v3104 = vunpack.c.l.b16 %v2252
      %v3105 = vunpack.c.h.b16 %v2252
      %v3106 = vunpack.c.l.b16 %v2253
      %v3107 = vunpack.c.l.b16 %v2254
      %v3108 = vunpack.c.h.b16 %v2254
      %v3109 = vunpack.c.l.b16 %v2255
      %v3110 = vunpack.c.l.b16 %v2256
      %v3111 = vunpack.c.h.b16 %v2256
      %v3112 = vunpack.c.l.b16 %v2257
      %v3113 = vunpack.c.l.b16 %v2258
      %v3114 = vunpack.c.h.b16 %v2258
      %v3115 = vunpack.c.l.b16 %v2259
      %v3116 = vunpack.c.l.b16 %v2260
      %v3117 = vunpack.c.h.b16 %v2260
      %v3118 = vunpack.c.l.b16 %v2261
      %v3119 = vunpack.c.l.b16 %v2262
      %v3120 = vunpack.c.h.b16 %v2262
      %v3121 = vunpack.c.l.b16 %v2263
      %v3122 = vunpack.c.l.b16 %v2264
      %v3123 = vunpack.c.h.b16 %v2264
      %v3124 = vunpack.c.l.b16 %v2265
      %v3125 = vunpack.c.l.b16 %v2266
      %v3126 = vunpack.c.h.b16 %v2266
      %v3127 = vunpack.c.l.b16 %v2267
      %v3128 = vunpack.c.l.b16 %v2268
      %v3129 = vunpack.c.h.b16 %v2268
      %v3130 = vunpack.c.l.b16 %v2269
      %v3131 = vunpack.c.l.b16 %v2270
      %v3132 = vunpack.c.h.b16 %v2270
      %v3133 = vunpack.c.l.b16 %v2271
      %v3134 = vunpack.c.l.b16 %v2272
      %v3135 = vunpack.c.h.b16 %v2272
      %v3136 = vunpack.c.l.b16 %v2273
      %v3137 = vunpack.c.l.b16 %v2274
      %v3138 = vunpack.c.h.b16 %v2274
      %v3139 = vunpack.c.l.b16 %v2275
      %v3140 = vpack.c.b16 %v2999, %v2996
      %v3141 = vpack.c.b16 %v3000, %v2997
      %v3142 = vpack.c.b16 %v3001, %v2998
      %v3143 = vpack.c.b16 %v3005, %v3002
      %v3144 = vpack.c.b16 %v3006, %v3003
      %v3145 = vpack.c.b16 %v3007, %v3004
      %v3146 = vpack.c.b16 %v3011, %v3008
      %v3147 = vpack.c.b16 %v3012, %v3009
      %v3148 = vpack.c.b16 %v3013, %v3010
      %v3149 = vpack.c.b16 %v3017, %v3014
      %v3150 = vpack.c.b16 %v3018, %v3015
      %v3151 = vpack.c.b16 %v3019, %v3016
      %v3152 = vpack.c.b16 %v3023, %v3020
      %v3153 = vpack.c.b16 %v3024, %v3021
      %v3154 = vpack.c.b16 %v3025, %v3022
      %v3155 = vpack.c.b16 %v3029, %v3026
      %v3156 = vpack.c.b16 %v3030, %v3027
      %v3157 = vpack.c.b16 %v3031, %v3028
      %v3158 = vpack.c.b16 %v3035, %v3032
      %v3159 = vpack.c.b16 %v3036, %v3033
      %v3160 = vpack.c.b16 %v3037, %v3034
      %v3161 = vpack.c.b16 %v3041, %v3038
      %v3162 = vpack.c.b16 %v3042, %v3039
      %v3163 = vpack.c.b16 %v3043, %v3040
      %v3164 = vpack.c.b16 %v3047, %v3044
      %v3165 = vpack.c.b16 %v3048, %v3045
      %v3166 = vpack.c.b16 %v3049, %v3046
      %v3167 = vpack.c.b16 %v3053, %v3050
      %v3168 = vpack.c.b16 %v3054, %v3051
      %v3169 = vpack.c.b16 %v3055, %v3052
      %v3170 = vpack.c.b16 %v3059, %v3056
      %v3171 = vpack.c.b16 %v3060, %v3057
      %v3172 = vpack.c.b16 %v3061, %v3058
      %v3173 = vpack.c.b16 %v3065, %v3062
      %v3174 = vpack.c.b16 %v3066, %v3063
      %v3175 = vpack.c.b16 %v3067, %v3064
      %v3176 = vpack.c.b16 %v3071, %v3068
      %v3177 = vpack.c.b16 %v3072, %v3069
      %v3178 = vpack.c.b16 %v3073, %v3070
      %v3179 = vpack.c.b16 %v3077, %v3074
      %v3180 = vpack.c.b16 %v3078, %v3075
      %v3181 = vpack.c.b16 %v3079, %v3076
      %v3182 = vpack.c.b16 %v3083, %v3080
      %v3183 = vpack.c.b16 %v3084, %v3081
      %v3184 = vpack.c.b16 %v3085, %v3082
      %v3185 = vpack.c.b16 %v3089, %v3086
      %v3186 = vpack.c.b16 %v3090, %v3087
      %v3187 = vpack.c.b16 %v3091, %v3088
      %v3188 = vpack.c.b16 %v3095, %v3092
      %v3189 = vpack.c.b16 %v3096, %v3093
      %v3190 = vpack.c.b16 %v3097, %v3094
      %v3191 = vpack.c.b16 %v3101, %v3098
      %v3192 = vpack.c.b16 %v3102, %v3099
      %v3193 = vpack.c.b16 %v3103, %v3100
      %v3194 = vpack.c.b16 %v3107, %v3104
      %v3195 = vpack.c.b16 %v3108, %v3105
      %v3196 = vpack.c.b16 %v3109, %v3106
      %v3197 = vpack.c.b16 %v3113, %v3110
      %v3198 = vpack.c.b16 %v3114, %v3111
      %v3199 = vpack.c.b16 %v3115, %v3112
      %v3200 = vpack.c.b16 %v3119, %v3116
      %v3201 = vpack.c.b16 %v3120, %v3117
      %v3202 = vpack.c.b16 %v3121, %v3118
      %v3203 = vpack.c.b16 %v3125, %v3122
      %v3204 = vpack.c.b16 %v3126, %v3123
      %v3205 = vpack.c.b16 %v3127, %v3124
      %v3206 = vpack.c.b16 %v3131, %v3128
      %v3207 = vpack.c.b16 %v3132, %v3129
      %v3208 = vpack.c.b16 %v3133, %v3130
      %v3209 = vpack.c.b16 %v3137, %v3134
      %v3210 = vpack.c.b16 %v3138, %v3135
      %v3211 = vpack.c.b16 %v3139, %v3136
      %3284 = vmatpush.bf16.msra.mxu0 %v3161
      %3285 = vmatpush.bf16.msra.mxu0 %v3158
      %3286 = vmatpush.bf16.msra.mxu0 %v3155
      %3287 = vmatpush.bf16.msra.mxu0 %v3152
      %3288 = vmatpush.bf16.msra.mxu0 %v3149
      %3289 = vmatpush.bf16.msra.mxu0 %v3146
      %3290 = vmatpush.bf16.msra.mxu0 %v3143
      %3291 = vmatpush.bf16.msra.mxu0 %v3140
      %3292 = vmatmul.bf16.gmra.mxu0 %v2176
      %v3293 = vpop.f32.mrf.mxu0
      %v3294 = vadd.f32 %v2894, %v3293
      %v3295 = vpop.f32.mrf.mxu0
      %v3296 = vadd.f32 %v2897, %v3295
      %3297 = vdwg.mxu0
      %3298 = vmatpush.bf16.msra.mxu0 %v3185
      %3299 = vmatpush.bf16.msra.mxu0 %v3182
      %3300 = vmatpush.bf16.msra.mxu0 %v3179
      %3301 = vmatpush.bf16.msra.mxu0 %v3176
      %3302 = vmatpush.bf16.msra.mxu0 %v3173
      %3303 = vmatpush.bf16.msra.mxu0 %v3170
      %3304 = vmatpush.bf16.msra.mxu0 %v3167
      %3305 = vmatpush.bf16.msra.mxu0 %v3164
      %3306 = vmatmul.bf16.gmra.mxu0 %v2177
      %v3307 = vpop.f32.mrf.mxu0
      %v3308 = vadd.f32 %v3294, %v3307
      %v3309 = vpop.f32.mrf.mxu0
      %v3310 = vadd.f32 %v3296, %v3309
      %3311 = vdwg.mxu0
      %3312 = vmatpush.bf16.msra.mxu0 %v3209
      %3313 = vmatpush.bf16.msra.mxu0 %v3206
      %3314 = vmatpush.bf16.msra.mxu0 %v3203
      %3315 = vmatpush.bf16.msra.mxu0 %v3200
      %3316 = vmatpush.bf16.msra.mxu0 %v3197
      %3317 = vmatpush.bf16.msra.mxu0 %v3194
      %3318 = vmatpush.bf16.msra.mxu0 %v3191
      %3319 = vmatpush.bf16.msra.mxu0 %v3188
      %3320 = vmatmul.bf16.gmra.mxu0 %v2178
      %v3321 = vpop.f32.mrf.mxu0
      %v3322 = vadd.f32 %v3308, %v3321
      %v3323 = vpop.f32.mrf.mxu0
      %v3324 = vadd.f32 %v3310, %v3323
      %3325 = vdwg.mxu0
      %3326 = vmatpush.bf16.msra.mxu0 %v3162
      %3327 = vmatpush.bf16.msra.mxu0 %v3159
      %3328 = vmatpush.bf16.msra.mxu0 %v3156
      %3329 = vmatpush.bf16.msra.mxu0 %v3153
      %3330 = vmatpush.bf16.msra.mxu0 %v3150
      %3331 = vmatpush.bf16.msra.mxu0 %v3147
      %3332 = vmatpush.bf16.msra.mxu0 %v3144
      %3333 = vmatpush.bf16.msra.mxu0 %v3141
      %3334 = vmatmul.bf16.gmra.mxu0 %v2176
      %v3335 = vpop.f32.mrf.mxu0
      %v3336 = vadd.f32 %v2895, %v3335
      %v3337 = vpop.f32.mrf.mxu0
      %v3338 = vadd.f32 %v2898, %v3337
      %3339 = vdwg.mxu0
      %3340 = vmatpush.bf16.msra.mxu0 %v3186
      %3341 = vmatpush.bf16.msra.mxu0 %v3183
      %3342 = vmatpush.bf16.msra.mxu0 %v3180
      %3343 = vmatpush.bf16.msra.mxu0 %v3177
      %3344 = vmatpush.bf16.msra.mxu0 %v3174
      %3345 = vmatpush.bf16.msra.mxu0 %v3171
      %3346 = vmatpush.bf16.msra.mxu0 %v3168
      %3347 = vmatpush.bf16.msra.mxu0 %v3165
      %3348 = vmatmul.bf16.gmra.mxu0 %v2177
      %v3349 = vpop.f32.mrf.mxu0
      %v3350 = vadd.f32 %v3336, %v3349
      %v3351 = vpop.f32.mrf.mxu0
      %v3352 = vadd.f32 %v3338, %v3351
      %3353 = vdwg.mxu0
      %3354 = vmatpush.bf16.msra.mxu0 %v3210
      %3355 = vmatpush.bf16.msra.mxu0 %v3207
      %3356 = vmatpush.bf16.msra.mxu0 %v3204
      %3357 = vmatpush.bf16.msra.mxu0 %v3201
      %3358 = vmatpush.bf16.msra.mxu0 %v3198
      %3359 = vmatpush.bf16.msra.mxu0 %v3195
      %3360 = vmatpush.bf16.msra.mxu0 %v3192
      %3361 = vmatpush.bf16.msra.mxu0 %v3189
      %3362 = vmatmul.bf16.gmra.mxu0 %v2178
      %v3363 = vpop.f32.mrf.mxu0
      %v3364 = vadd.f32 %v3350, %v3363
      %v3365 = vpop.f32.mrf.mxu0
      %v3366 = vadd.f32 %v3352, %v3365
      %3367 = vdwg.mxu0
      %3368 = vmatpush.bf16.msra.mxu0 %v3163
      %3369 = vmatpush.bf16.msra.mxu0 %v3160
      %3370 = vmatpush.bf16.msra.mxu0 %v3157
      %3371 = vmatpush.bf16.msra.mxu0 %v3154
      %3372 = vmatpush.bf16.msra.mxu0 %v3151
      %3373 = vmatpush.bf16.msra.mxu0 %v3148
      %3374 = vmatpush.bf16.msra.mxu0 %v3145
      %3375 = vmatpush.bf16.msra.mxu0 %v3142
      %3376 = vmatmul.bf16.gmra.mxu0 %v2176
      %v3377 = vpop.f32.mrf.mxu0
      %v3378 = vadd.f32 %v2896, %v3377
      %v3379 = vpop.f32.mrf.mxu0
      %v3380 = vadd.f32 %v2899, %v3379
      %3381 = vdwg.mxu0
      %3382 = vmatpush.bf16.msra.mxu0 %v3187
      %3383 = vmatpush.bf16.msra.mxu0 %v3184
      %3384 = vmatpush.bf16.msra.mxu0 %v3181
      %3385 = vmatpush.bf16.msra.mxu0 %v3178
      %3386 = vmatpush.bf16.msra.mxu0 %v3175
      %3387 = vmatpush.bf16.msra.mxu0 %v3172
      %3388 = vmatpush.bf16.msra.mxu0 %v3169
      %3389 = vmatpush.bf16.msra.mxu0 %v3166
      %3390 = vmatmul.bf16.gmra.mxu0 %v2177
      %v3391 = vpop.f32.mrf.mxu0
      %v3392 = vadd.f32 %v3378, %v3391
      %v3393 = vpop.f32.mrf.mxu0
      %v3394 = vadd.f32 %v3380, %v3393
      %3395 = vdwg.mxu0
      %3396 = vmatpush.bf16.msra.mxu0 %v3211
      %3397 = vmatpush.bf16.msra.mxu0 %v3208
      %3398 = vmatpush.bf16.msra.mxu0 %v3205
      %3399 = vmatpush.bf16.msra.mxu0 %v3202
      %3400 = vmatpush.bf16.msra.mxu0 %v3199
      %3401 = vmatpush.bf16.msra.mxu0 %v3196
      %3402 = vmatpush.bf16.msra.mxu0 %v3193
      %3403 = vmatpush.bf16.msra.mxu0 %v3190
      %3404 = vmatmul.bf16.gmra.mxu0 %v2178
      %v3405 = vpop.f32.mrf.mxu0
      %v3406 = vadd.f32 %v3392, %v3405
      %v3407 = vpop.f32.mrf.mxu0
      %v3408 = vadd.f32 %v3394, %v3407
      %3409 = vdwg.mxu0
      %s3410 = scalar_lea.vmem %s3, 1152
      %v3411 = vld [vmem:[%s3410] sm:$0xff]
      %v3412 = vld [vmem:[%s3410 + $0x8] sm:$0xf]
      %v3413 = vld [vmem:[%s3410 + $0xc] sm:$0xff]
      %v3414 = vld [vmem:[%s3410 + $0x14] sm:$0xf]
      %v3415 = vld [vmem:[%s3410 + $0x18] sm:$0xff]
      %v3416 = vld [vmem:[%s3410 + $0x20] sm:$0xf]
      %v3417 = vld [vmem:[%s3410 + $0x24] sm:$0xff]
      %v3418 = vld [vmem:[%s3410 + $0x2c] sm:$0xf]
      %v3419 = vld [vmem:[%s3410 + $0x30] sm:$0xff]
      %v3420 = vld [vmem:[%s3410 + $0x38] sm:$0xf]
      %v3421 = vld [vmem:[%s3410 + $0x3c] sm:$0xff]
      %v3422 = vld [vmem:[%s3410 + $0x44] sm:$0xf]
      %v3423 = vld [vmem:[%s3410 + $0x48] sm:$0xff]
      %v3424 = vld [vmem:[%s3410 + $0x50] sm:$0xf]
      %v3425 = vld [vmem:[%s3410 + $0x54] sm:$0xff]
      %v3426 = vld [vmem:[%s3410 + $0x5c] sm:$0xf]
      %v3427 = vld [vmem:[%s3410 + $0x60] sm:$0xff]
      %v3428 = vld [vmem:[%s3410 + $0x68] sm:$0xf]
      %v3429 = vld [vmem:[%s3410 + $0x6c] sm:$0xff]
      %v3430 = vld [vmem:[%s3410 + $0x74] sm:$0xf]
      %v3431 = vld [vmem:[%s3410 + $0x78] sm:$0xff]
      %v3432 = vld [vmem:[%s3410 + $0x80] sm:$0xf]
      %v3433 = vld [vmem:[%s3410 + $0x84] sm:$0xff]
      %v3434 = vld [vmem:[%s3410 + $0x8c] sm:$0xf]
      %v3435 = vld [vmem:[%s3410 + $0x90] sm:$0xff]
      %v3436 = vld [vmem:[%s3410 + $0x98] sm:$0xf]
      %v3437 = vld [vmem:[%s3410 + $0x9c] sm:$0xff]
      %v3438 = vld [vmem:[%s3410 + $0xa4] sm:$0xf]
      %v3439 = vld [vmem:[%s3410 + $0xa8] sm:$0xff]
      %v3440 = vld [vmem:[%s3410 + $0xb0] sm:$0xf]
      %v3441 = vld [vmem:[%s3410 + $0xb4] sm:$0xff]
      %v3442 = vld [vmem:[%s3410 + $0xbc] sm:$0xf]
      %v3443 = vld [vmem:[%s3410 + $0xc0] sm:$0xff]
      %v3444 = vld [vmem:[%s3410 + $0xc8] sm:$0xf]
      %v3445 = vld [vmem:[%s3410 + $0xcc] sm:$0xff]
      %v3446 = vld [vmem:[%s3410 + $0xd4] sm:$0xf]
      %v3447 = vld [vmem:[%s3410 + $0xd8] sm:$0xff]
      %v3448 = vld [vmem:[%s3410 + $0xe0] sm:$0xf]
      %v3449 = vld [vmem:[%s3410 + $0xe4] sm:$0xff]
      %v3450 = vld [vmem:[%s3410 + $0xec] sm:$0xf]
      %v3451 = vld [vmem:[%s3410 + $0xf0] sm:$0xff]
      %v3452 = vld [vmem:[%s3410 + $0xf8] sm:$0xf]
      %v3453 = vld [vmem:[%s3410 + $0xfc] sm:$0xff]
      %v3454 = vld [vmem:[%s3410 + $0x104] sm:$0xf]
      %v3455 = vld [vmem:[%s3410 + $0x108] sm:$0xff]
      %v3456 = vld [vmem:[%s3410 + $0x110] sm:$0xf]
      %v3457 = vld [vmem:[%s3410 + $0x114] sm:$0xff]
      %v3458 = vld [vmem:[%s3410 + $0x11c] sm:$0xf]
      %v3459 = vld [vmem:[%s3410 + $0x120] sm:$0xff]
      %v3460 = vld [vmem:[%s3410 + $0x128] sm:$0xf]
      %v3461 = vld [vmem:[%s3410 + $0x12c] sm:$0xff]
      %v3462 = vld [vmem:[%s3410 + $0x134] sm:$0xf]
      %v3463 = vld [vmem:[%s3410 + $0x138] sm:$0xff]
      %v3464 = vld [vmem:[%s3410 + $0x140] sm:$0xf]
      %v3465 = vld [vmem:[%s3410 + $0x144] sm:$0xff]
      %v3466 = vld [vmem:[%s3410 + $0x14c] sm:$0xf]
      %v3467 = vld [vmem:[%s3410 + $0x150] sm:$0xff]
      %v3468 = vld [vmem:[%s3410 + $0x158] sm:$0xf]
      %v3469 = vld [vmem:[%s3410 + $0x15c] sm:$0xff]
      %v3470 = vld [vmem:[%s3410 + $0x164] sm:$0xf]
      %v3471 = vld [vmem:[%s3410 + $0x168] sm:$0xff]
      %v3472 = vld [vmem:[%s3410 + $0x170] sm:$0xf]
      %v3473 = vld [vmem:[%s3410 + $0x174] sm:$0xff]
      %v3474 = vld [vmem:[%s3410 + $0x17c] sm:$0xf]
      %v3475 = vld [vmem:[%s3410 + $0x180] sm:$0xff]
      %v3476 = vld [vmem:[%s3410 + $0x188] sm:$0xf]
      %v3477 = vld [vmem:[%s3410 + $0x18c] sm:$0xff]
      %v3478 = vld [vmem:[%s3410 + $0x194] sm:$0xf]
      %v3479 = vld [vmem:[%s3410 + $0x198] sm:$0xff]
      %v3480 = vld [vmem:[%s3410 + $0x1a0] sm:$0xf]
      %v3481 = vld [vmem:[%s3410 + $0x1a4] sm:$0xff]
      %v3482 = vld [vmem:[%s3410 + $0x1ac] sm:$0xf]
      %v3483 = vld [vmem:[%s3410 + $0x1b0] sm:$0xff]
      %v3484 = vld [vmem:[%s3410 + $0x1b8] sm:$0xf]
      %v3485 = vld [vmem:[%s3410 + $0x1bc] sm:$0xff]
      %v3486 = vld [vmem:[%s3410 + $0x1c4] sm:$0xf]
      %v3487 = vld [vmem:[%s3410 + $0x1c8] sm:$0xff]
      %v3488 = vld [vmem:[%s3410 + $0x1d0] sm:$0xf]
      %v3489 = vld [vmem:[%s3410 + $0x1d4] sm:$0xff]
      %v3490 = vld [vmem:[%s3410 + $0x1dc] sm:$0xf]
      %v3491 = vld [vmem:[%s3410 + $0x1e0] sm:$0xff]
      %v3492 = vld [vmem:[%s3410 + $0x1e8] sm:$0xf]
      %v3493 = vld [vmem:[%s3410 + $0x1ec] sm:$0xff]
      %v3494 = vld [vmem:[%s3410 + $0x1f4] sm:$0xf]
      %v3495 = vld [vmem:[%s3410 + $0x1f8] sm:$0xff]
      %v3496 = vld [vmem:[%s3410 + $0x200] sm:$0xf]
      %v3497 = vld [vmem:[%s3410 + $0x204] sm:$0xff]
      %v3498 = vld [vmem:[%s3410 + $0x20c] sm:$0xf]
      %v3499 = vld [vmem:[%s3410 + $0x210] sm:$0xff]
      %v3500 = vld [vmem:[%s3410 + $0x218] sm:$0xf]
      %v3501 = vld [vmem:[%s3410 + $0x21c] sm:$0xff]
      %v3502 = vld [vmem:[%s3410 + $0x224] sm:$0xf]
      %v3503 = vld [vmem:[%s3410 + $0x228] sm:$0xff]
      %v3504 = vld [vmem:[%s3410 + $0x230] sm:$0xf]
      %v3505 = vld [vmem:[%s3410 + $0x234] sm:$0xff]
      %v3506 = vld [vmem:[%s3410 + $0x23c] sm:$0xf]
      %v3603 = vunpack.c.l.b16 %v3411
      %v3604 = vunpack.c.h.b16 %v3411
      %v3605 = vunpack.c.l.b16 %v3412
      %v3606 = vunpack.c.l.b16 %v3413
      %v3607 = vunpack.c.h.b16 %v3413
      %v3608 = vunpack.c.l.b16 %v3414
      %v3609 = vunpack.c.l.b16 %v3415
      %v3610 = vunpack.c.h.b16 %v3415
      %v3611 = vunpack.c.l.b16 %v3416
      %v3612 = vunpack.c.l.b16 %v3417
      %v3613 = vunpack.c.h.b16 %v3417
      %v3614 = vunpack.c.l.b16 %v3418
      %v3615 = vunpack.c.l.b16 %v3419
      %v3616 = vunpack.c.h.b16 %v3419
      %v3617 = vunpack.c.l.b16 %v3420
      %v3618 = vunpack.c.l.b16 %v3421
      %v3619 = vunpack.c.h.b16 %v3421
      %v3620 = vunpack.c.l.b16 %v3422
      %v3621 = vunpack.c.l.b16 %v3423
      %v3622 = vunpack.c.h.b16 %v3423
      %v3623 = vunpack.c.l.b16 %v3424
      %v3624 = vunpack.c.l.b16 %v3425
      %v3625 = vunpack.c.h.b16 %v3425
      %v3626 = vunpack.c.l.b16 %v3426
      %v3627 = vunpack.c.l.b16 %v3427
      %v3628 = vunpack.c.h.b16 %v3427
      %v3629 = vunpack.c.l.b16 %v3428
      %v3630 = vunpack.c.l.b16 %v3429
      %v3631 = vunpack.c.h.b16 %v3429
      %v3632 = vunpack.c.l.b16 %v3430
      %v3633 = vunpack.c.l.b16 %v3431
      %v3634 = vunpack.c.h.b16 %v3431
      %v3635 = vunpack.c.l.b16 %v3432
      %v3636 = vunpack.c.l.b16 %v3433
      %v3637 = vunpack.c.h.b16 %v3433
      %v3638 = vunpack.c.l.b16 %v3434
      %v3639 = vunpack.c.l.b16 %v3435
      %v3640 = vunpack.c.h.b16 %v3435
      %v3641 = vunpack.c.l.b16 %v3436
      %v3642 = vunpack.c.l.b16 %v3437
      %v3643 = vunpack.c.h.b16 %v3437
      %v3644 = vunpack.c.l.b16 %v3438
      %v3645 = vunpack.c.l.b16 %v3439
      %v3646 = vunpack.c.h.b16 %v3439
      %v3647 = vunpack.c.l.b16 %v3440
      %v3648 = vunpack.c.l.b16 %v3441
      %v3649 = vunpack.c.h.b16 %v3441
      %v3650 = vunpack.c.l.b16 %v3442
      %v3651 = vunpack.c.l.b16 %v3443
      %v3652 = vunpack.c.h.b16 %v3443
      %v3653 = vunpack.c.l.b16 %v3444
      %v3654 = vunpack.c.l.b16 %v3445
      %v3655 = vunpack.c.h.b16 %v3445
      %v3656 = vunpack.c.l.b16 %v3446
      %v3657 = vunpack.c.l.b16 %v3447
      %v3658 = vunpack.c.h.b16 %v3447
      %v3659 = vunpack.c.l.b16 %v3448
      %v3660 = vunpack.c.l.b16 %v3449
      %v3661 = vunpack.c.h.b16 %v3449
      %v3662 = vunpack.c.l.b16 %v3450
      %v3663 = vunpack.c.l.b16 %v3451
      %v3664 = vunpack.c.h.b16 %v3451
      %v3665 = vunpack.c.l.b16 %v3452
      %v3666 = vunpack.c.l.b16 %v3453
      %v3667 = vunpack.c.h.b16 %v3453
      %v3668 = vunpack.c.l.b16 %v3454
      %v3669 = vunpack.c.l.b16 %v3455
      %v3670 = vunpack.c.h.b16 %v3455
      %v3671 = vunpack.c.l.b16 %v3456
      %v3672 = vunpack.c.l.b16 %v3457
      %v3673 = vunpack.c.h.b16 %v3457
      %v3674 = vunpack.c.l.b16 %v3458
      %v3675 = vunpack.c.l.b16 %v3459
      %v3676 = vunpack.c.h.b16 %v3459
      %v3677 = vunpack.c.l.b16 %v3460
      %v3678 = vunpack.c.l.b16 %v3461
      %v3679 = vunpack.c.h.b16 %v3461
      %v3680 = vunpack.c.l.b16 %v3462
      %v3681 = vunpack.c.l.b16 %v3463
      %v3682 = vunpack.c.h.b16 %v3463
      %v3683 = vunpack.c.l.b16 %v3464
      %v3684 = vunpack.c.l.b16 %v3465
      %v3685 = vunpack.c.h.b16 %v3465
      %v3686 = vunpack.c.l.b16 %v3466
      %v3687 = vunpack.c.l.b16 %v3467
      %v3688 = vunpack.c.h.b16 %v3467
      %v3689 = vunpack.c.l.b16 %v3468
      %v3690 = vunpack.c.l.b16 %v3469
      %v3691 = vunpack.c.h.b16 %v3469
      %v3692 = vunpack.c.l.b16 %v3470
      %v3693 = vunpack.c.l.b16 %v3471
      %v3694 = vunpack.c.h.b16 %v3471
      %v3695 = vunpack.c.l.b16 %v3472
      %v3696 = vunpack.c.l.b16 %v3473
      %v3697 = vunpack.c.h.b16 %v3473
      %v3698 = vunpack.c.l.b16 %v3474
      %v3699 = vunpack.c.l.b16 %v3475
      %v3700 = vunpack.c.h.b16 %v3475
      %v3701 = vunpack.c.l.b16 %v3476
      %v3702 = vunpack.c.l.b16 %v3477
      %v3703 = vunpack.c.h.b16 %v3477
      %v3704 = vunpack.c.l.b16 %v3478
      %v3705 = vunpack.c.l.b16 %v3479
      %v3706 = vunpack.c.h.b16 %v3479
      %v3707 = vunpack.c.l.b16 %v3480
      %v3708 = vunpack.c.l.b16 %v3481
      %v3709 = vunpack.c.h.b16 %v3481
      %v3710 = vunpack.c.l.b16 %v3482
      %v3711 = vunpack.c.l.b16 %v3483
      %v3712 = vunpack.c.h.b16 %v3483
      %v3713 = vunpack.c.l.b16 %v3484
      %v3714 = vunpack.c.l.b16 %v3485
      %v3715 = vunpack.c.h.b16 %v3485
      %v3716 = vunpack.c.l.b16 %v3486
      %v3717 = vunpack.c.l.b16 %v3487
      %v3718 = vunpack.c.h.b16 %v3487
      %v3719 = vunpack.c.l.b16 %v3488
      %v3720 = vunpack.c.l.b16 %v3489
      %v3721 = vunpack.c.h.b16 %v3489
      %v3722 = vunpack.c.l.b16 %v3490
      %v3723 = vunpack.c.l.b16 %v3491
      %v3724 = vunpack.c.h.b16 %v3491
      %v3725 = vunpack.c.l.b16 %v3492
      %v3726 = vunpack.c.l.b16 %v3493
      %v3727 = vunpack.c.h.b16 %v3493
      %v3728 = vunpack.c.l.b16 %v3494
      %v3729 = vunpack.c.l.b16 %v3495
      %v3730 = vunpack.c.h.b16 %v3495
      %v3731 = vunpack.c.l.b16 %v3496
      %v3732 = vunpack.c.l.b16 %v3497
      %v3733 = vunpack.c.h.b16 %v3497
      %v3734 = vunpack.c.l.b16 %v3498
      %v3735 = vunpack.c.l.b16 %v3499
      %v3736 = vunpack.c.h.b16 %v3499
      %v3737 = vunpack.c.l.b16 %v3500
      %v3738 = vunpack.c.l.b16 %v3501
      %v3739 = vunpack.c.h.b16 %v3501
      %v3740 = vunpack.c.l.b16 %v3502
      %v3741 = vunpack.c.l.b16 %v3503
      %v3742 = vunpack.c.h.b16 %v3503
      %v3743 = vunpack.c.l.b16 %v3504
      %v3744 = vunpack.c.l.b16 %v3505
      %v3745 = vunpack.c.h.b16 %v3505
      %v3746 = vunpack.c.l.b16 %v3506
      %v3747 = vpack.c.b16 %v3606, %v3603
      %v3748 = vpack.c.b16 %v3607, %v3604
      %v3749 = vpack.c.b16 %v3608, %v3605
      %v3750 = vpack.c.b16 %v3612, %v3609
      %v3751 = vpack.c.b16 %v3613, %v3610
      %v3752 = vpack.c.b16 %v3614, %v3611
      %v3753 = vpack.c.b16 %v3618, %v3615
      %v3754 = vpack.c.b16 %v3619, %v3616
      %v3755 = vpack.c.b16 %v3620, %v3617
      %v3756 = vpack.c.b16 %v3624, %v3621
      %v3757 = vpack.c.b16 %v3625, %v3622
      %v3758 = vpack.c.b16 %v3626, %v3623
      %v3759 = vpack.c.b16 %v3630, %v3627
      %v3760 = vpack.c.b16 %v3631, %v3628
      %v3761 = vpack.c.b16 %v3632, %v3629
      %v3762 = vpack.c.b16 %v3636, %v3633
      %v3763 = vpack.c.b16 %v3637, %v3634
      %v3764 = vpack.c.b16 %v3638, %v3635
      %v3765 = vpack.c.b16 %v3642, %v3639
      %v3766 = vpack.c.b16 %v3643, %v3640
      %v3767 = vpack.c.b16 %v3644, %v3641
      %v3768 = vpack.c.b16 %v3648, %v3645
      %v3769 = vpack.c.b16 %v3649, %v3646
      %v3770 = vpack.c.b16 %v3650, %v3647
      %v3771 = vpack.c.b16 %v3654, %v3651
      %v3772 = vpack.c.b16 %v3655, %v3652
      %v3773 = vpack.c.b16 %v3656, %v3653
      %v3774 = vpack.c.b16 %v3660, %v3657
      %v3775 = vpack.c.b16 %v3661, %v3658
      %v3776 = vpack.c.b16 %v3662, %v3659
      %v3777 = vpack.c.b16 %v3666, %v3663
      %v3778 = vpack.c.b16 %v3667, %v3664
      %v3779 = vpack.c.b16 %v3668, %v3665
      %v3780 = vpack.c.b16 %v3672, %v3669
      %v3781 = vpack.c.b16 %v3673, %v3670
      %v3782 = vpack.c.b16 %v3674, %v3671
      %v3783 = vpack.c.b16 %v3678, %v3675
      %v3784 = vpack.c.b16 %v3679, %v3676
      %v3785 = vpack.c.b16 %v3680, %v3677
      %v3786 = vpack.c.b16 %v3684, %v3681
      %v3787 = vpack.c.b16 %v3685, %v3682
      %v3788 = vpack.c.b16 %v3686, %v3683
      %v3789 = vpack.c.b16 %v3690, %v3687
      %v3790 = vpack.c.b16 %v3691, %v3688
      %v3791 = vpack.c.b16 %v3692, %v3689
      %v3792 = vpack.c.b16 %v3696, %v3693
      %v3793 = vpack.c.b16 %v3697, %v3694
      %v3794 = vpack.c.b16 %v3698, %v3695
      %v3795 = vpack.c.b16 %v3702, %v3699
      %v3796 = vpack.c.b16 %v3703, %v3700
      %v3797 = vpack.c.b16 %v3704, %v3701
      %v3798 = vpack.c.b16 %v3708, %v3705
      %v3799 = vpack.c.b16 %v3709, %v3706
      %v3800 = vpack.c.b16 %v3710, %v3707
      %v3801 = vpack.c.b16 %v3714, %v3711
      %v3802 = vpack.c.b16 %v3715, %v3712
      %v3803 = vpack.c.b16 %v3716, %v3713
      %v3804 = vpack.c.b16 %v3720, %v3717
      %v3805 = vpack.c.b16 %v3721, %v3718
      %v3806 = vpack.c.b16 %v3722, %v3719
      %v3807 = vpack.c.b16 %v3726, %v3723
      %v3808 = vpack.c.b16 %v3727, %v3724
      %v3809 = vpack.c.b16 %v3728, %v3725
      %v3810 = vpack.c.b16 %v3732, %v3729
      %v3811 = vpack.c.b16 %v3733, %v3730
      %v3812 = vpack.c.b16 %v3734, %v3731
      %v3813 = vpack.c.b16 %v3738, %v3735
      %v3814 = vpack.c.b16 %v3739, %v3736
      %v3815 = vpack.c.b16 %v3740, %v3737
      %v3816 = vpack.c.b16 %v3744, %v3741
      %v3817 = vpack.c.b16 %v3745, %v3742
      %v3818 = vpack.c.b16 %v3746, %v3743
      %3891 = vmatpush.bf16.msra.mxu0 %v3768
      %3892 = vmatpush.bf16.msra.mxu0 %v3765
      %3893 = vmatpush.bf16.msra.mxu0 %v3762
      %3894 = vmatpush.bf16.msra.mxu0 %v3759
      %3895 = vmatpush.bf16.msra.mxu0 %v3756
      %3896 = vmatpush.bf16.msra.mxu0 %v3753
      %3897 = vmatpush.bf16.msra.mxu0 %v3750
      %3898 = vmatpush.bf16.msra.mxu0 %v3747
      %3899 = vmatmul.bf16.gmra.mxu0 %v2176
      %v3900 = vpop.f32.mrf.mxu0
      %v3901 = vadd.f32 0.0, %v3900
      %v3902 = vpop.f32.mrf.mxu0
      %v3903 = vadd.f32 0.0, %v3902
      %3904 = vdwg.mxu0
      %3905 = vmatpush.bf16.msra.mxu0 %v3792
      %3906 = vmatpush.bf16.msra.mxu0 %v3789
      %3907 = vmatpush.bf16.msra.mxu0 %v3786
      %3908 = vmatpush.bf16.msra.mxu0 %v3783
      %3909 = vmatpush.bf16.msra.mxu0 %v3780
      %3910 = vmatpush.bf16.msra.mxu0 %v3777
      %3911 = vmatpush.bf16.msra.mxu0 %v3774
      %3912 = vmatpush.bf16.msra.mxu0 %v3771
      %3913 = vmatmul.bf16.gmra.mxu0 %v2177
      %v3914 = vpop.f32.mrf.mxu0
      %v3915 = vadd.f32 %v3901, %v3914
      %v3916 = vpop.f32.mrf.mxu0
      %v3917 = vadd.f32 %v3903, %v3916
      %3918 = vdwg.mxu0
      %3919 = vmatpush.bf16.msra.mxu0 %v3816
      %3920 = vmatpush.bf16.msra.mxu0 %v3813
      %3921 = vmatpush.bf16.msra.mxu0 %v3810
      %3922 = vmatpush.bf16.msra.mxu0 %v3807
      %3923 = vmatpush.bf16.msra.mxu0 %v3804
      %3924 = vmatpush.bf16.msra.mxu0 %v3801
      %3925 = vmatpush.bf16.msra.mxu0 %v3798
      %3926 = vmatpush.bf16.msra.mxu0 %v3795
      %3927 = vmatmul.bf16.gmra.mxu0 %v2178
      %v3928 = vpop.f32.mrf.mxu0
      %v3929 = vadd.f32 %v3915, %v3928
      %v3930 = vpop.f32.mrf.mxu0
      %v3931 = vadd.f32 %v3917, %v3930
      %3932 = vdwg.mxu0
      %3933 = vmatpush.bf16.msra.mxu0 %v3769
      %3934 = vmatpush.bf16.msra.mxu0 %v3766
      %3935 = vmatpush.bf16.msra.mxu0 %v3763
      %3936 = vmatpush.bf16.msra.mxu0 %v3760
      %3937 = vmatpush.bf16.msra.mxu0 %v3757
      %3938 = vmatpush.bf16.msra.mxu0 %v3754
      %3939 = vmatpush.bf16.msra.mxu0 %v3751
      %3940 = vmatpush.bf16.msra.mxu0 %v3748
      %3941 = vmatmul.bf16.gmra.mxu0 %v2176
      %v3942 = vpop.f32.mrf.mxu0
      %v3943 = vadd.f32 0.0, %v3942
      %v3944 = vpop.f32.mrf.mxu0
      %v3945 = vadd.f32 0.0, %v3944
      %3946 = vdwg.mxu0
      %3947 = vmatpush.bf16.msra.mxu0 %v3793
      %3948 = vmatpush.bf16.msra.mxu0 %v3790
      %3949 = vmatpush.bf16.msra.mxu0 %v3787
      %3950 = vmatpush.bf16.msra.mxu0 %v3784
      %3951 = vmatpush.bf16.msra.mxu0 %v3781
      %3952 = vmatpush.bf16.msra.mxu0 %v3778
      %3953 = vmatpush.bf16.msra.mxu0 %v3775
      %3954 = vmatpush.bf16.msra.mxu0 %v3772
      %3955 = vmatmul.bf16.gmra.mxu0 %v2177
      %v3956 = vpop.f32.mrf.mxu0
      %v3957 = vadd.f32 %v3943, %v3956
      %v3958 = vpop.f32.mrf.mxu0
      %v3959 = vadd.f32 %v3945, %v3958
      %3960 = vdwg.mxu0
      %3961 = vmatpush.bf16.msra.mxu0 %v3817
      %3962 = vmatpush.bf16.msra.mxu0 %v3814
      %3963 = vmatpush.bf16.msra.mxu0 %v3811
      %3964 = vmatpush.bf16.msra.mxu0 %v3808
      %3965 = vmatpush.bf16.msra.mxu0 %v3805
      %3966 = vmatpush.bf16.msra.mxu0 %v3802
      %3967 = vmatpush.bf16.msra.mxu0 %v3799
      %3968 = vmatpush.bf16.msra.mxu0 %v3796
      %3969 = vmatmul.bf16.gmra.mxu0 %v2178
      %v3970 = vpop.f32.mrf.mxu0
      %v3971 = vadd.f32 %v3957, %v3970
      %v3972 = vpop.f32.mrf.mxu0
      %v3973 = vadd.f32 %v3959, %v3972
      %3974 = vdwg.mxu0
      %3975 = vmatpush.bf16.msra.mxu0 %v3770
      %3976 = vmatpush.bf16.msra.mxu0 %v3767
      %3977 = vmatpush.bf16.msra.mxu0 %v3764
      %3978 = vmatpush.bf16.msra.mxu0 %v3761
      %3979 = vmatpush.bf16.msra.mxu0 %v3758
      %3980 = vmatpush.bf16.msra.mxu0 %v3755
      %3981 = vmatpush.bf16.msra.mxu0 %v3752
      %3982 = vmatpush.bf16.msra.mxu0 %v3749
      %3983 = vmatmul.bf16.gmra.mxu0 %v2176
      %v3984 = vpop.f32.mrf.mxu0
      %v3985 = vadd.f32 0.0, %v3984
      %v3986 = vpop.f32.mrf.mxu0
      %v3987 = vadd.f32 0.0, %v3986
      %3988 = vdwg.mxu0
      %3989 = vmatpush.bf16.msra.mxu0 %v3794
      %3990 = vmatpush.bf16.msra.mxu0 %v3791
      %3991 = vmatpush.bf16.msra.mxu0 %v3788
      %3992 = vmatpush.bf16.msra.mxu0 %v3785
      %3993 = vmatpush.bf16.msra.mxu0 %v3782
      %3994 = vmatpush.bf16.msra.mxu0 %v3779
      %3995 = vmatpush.bf16.msra.mxu0 %v3776
      %3996 = vmatpush.bf16.msra.mxu0 %v3773
      %3997 = vmatmul.bf16.gmra.mxu0 %v2177
      %v3998 = vpop.f32.mrf.mxu0
      %v3999 = vadd.f32 %v3985, %v3998
      %v4000 = vpop.f32.mrf.mxu0
      %v4001 = vadd.f32 %v3987, %v4000
      %4002 = vdwg.mxu0
      %4003 = vmatpush.bf16.msra.mxu0 %v3818
      %4004 = vmatpush.bf16.msra.mxu0 %v3815
      %4005 = vmatpush.bf16.msra.mxu0 %v3812
      %4006 = vmatpush.bf16.msra.mxu0 %v3809
      %4007 = vmatpush.bf16.msra.mxu0 %v3806
      %4008 = vmatpush.bf16.msra.mxu0 %v3803
      %4009 = vmatpush.bf16.msra.mxu0 %v3800
      %4010 = vmatpush.bf16.msra.mxu0 %v3797
      %4011 = vmatmul.bf16.gmra.mxu0 %v2178
      %v4012 = vpop.f32.mrf.mxu0
      %v4013 = vadd.f32 %v3999, %v4012
      %v4014 = vpop.f32.mrf.mxu0
      %v4015 = vadd.f32 %v4001, %v4014
      %4016 = vdwg.mxu0
      %v4017 = vrot.slane %v3929, 1
      %v4018 = vrot.slane %v3971, 1
      %v4019 = vrot.slane %v4013, 1
      %v4020 = vrot.slane %v3931, 1
      %v4021 = vrot.slane %v3973, 1
      %v4022 = vrot.slane %v4015, 1
      %v4023 = vsel %vm2133, %v4017, %v4020
      %v4024 = vsel %vm2133, %v4018, %v4021
      %v4025 = vsel %vm2133, %v4019, %v4022
      %v4026 = vsel %vm2133, %v4020, %v4017
      %v4027 = vsel %vm2133, %v4021, %v4018
      %v4028 = vsel %vm2133, %v4022, %v4019
      %v4029 = vsel %vm2142, %v4023, 0.0
      %v4030 = vsel %vm2142, %v4024, 0.0
      %v4031 = vsel %vm2142, %v4025, 0.0
      %v4032 = vsel %vm2143, %v4026, 0.0
      %v4033 = vsel %vm2143, %v4027, 0.0
      %v4034 = vsel %vm2143, %v4028, 0.0
      %v4035 = vadd.f32 %v3322, %v4029
      %v4036 = vadd.f32 %v3364, %v4030
      %v4037 = vadd.f32 %v3406, %v4031
      %v4038 = vadd.f32 %v3324, %v4032
      %v4039 = vadd.f32 %v3366, %v4033
      %v4040 = vadd.f32 %v3408, %v4034
      %v4041 = vld [vmem:[%s4] sm:$0x7]
      %v4043 = vperm.slane %v4041, 0
      %v4044 = vperm.slane %v4041, 1
      %v4045 = vperm.slane %v4041, 2
      %v4049 = vadd.f32 %v4035, %v4043
      %v4050 = vadd.f32 %v4036, %v4044
      %v4051 = vadd.f32 %v4037, %v4045
      %v4052 = vadd.f32 %v4038, %v4043
      %v4053 = vadd.f32 %v4039, %v4044
      %v4054 = vadd.f32 %v4040, %v4045
      %v4055 = vmax.f32 %v4049, 0.0
      %v4056 = vmax.f32 %v4050, 0.0
      %v4057 = vmax.f32 %v4051, 0.0
      %v4058 = vmax.f32 %v4052, 0.0
      %v4059 = vmax.f32 %v4053, 0.0
      %v4060 = vmax.f32 %v4054, 0.0
      %v4061 = vpack.c.bf16 %v4056, %v4055
      %v4062 = vpack.c.bf16 %v4057, %v4057
      %v4063 = vpack.c.bf16 %v4059, %v4058
      %v4064 = vpack.c.bf16 %v4060, %v4060
      %4065 = vst [vmem:[%s231] sm:$0xff] %v4061
      %4066 = vst [vmem:[%s231 + $0x8] sm:$0xf] %v4062
      %4067 = vst [vmem:[%s231 + $0xc] sm:$0xff] %v4063
      %4068 = vst [vmem:[%s231 + $0x14] sm:$0xf] %v4064
      %s4069 = smul.u32 2, %s16
      %p4070 = scmp.lt.s32.totalorder %s4069, 3
      %s4071 = scalar_select %p4070, %s4069, 3
      %s4072 = smul.addr %s4071, 3
      %s4073 = smul.addr %s4072, 4
      %s4074 = scalar_lea.vmem %s5, %s4073
      // Predicated region
      $region41: #{denoising_autoencoder_pallas.1} parent=39 // pred_check
        %p4075 = pneg %p144
      $region42: #{denoising_autoencoder_pallas.1} parent=39 // pred_check_branch
        %4077 = sbr.rel (%p4075) target = $region44
      $region43: #{denoising_autoencoder_pallas.1} parent=39 // pred_region
        %s4078 = smul.u32 2, %s16
      $region44: #{denoising_autoencoder_pallas.1} parent=39 // pred_fallthru
        _
    $region40: #{denoising_autoencoder_pallas.1} parent=5 // pred_fallthru
      _
    %p4079 = scmp.le.s32.totalorder 2, %s11
    // Predicated region
    $region45: #{denoising_autoencoder_pallas.1} parent=5 // pred_check
      %p4080 = pneg %p4079
    $region46: #{denoising_autoencoder_pallas.1} parent=5 // pred_check_branch
      %4082 = sbr.rel (%p4080) target = $region48
    $region47: #{denoising_autoencoder_pallas.1} parent=5 // pred_region
      %s4083 = ssub.s32 %s11, 2
      // Predicated region
      $region49: #{denoising_autoencoder_pallas.1} parent=47 // pred_check
        %p4084 = pneg %p150
      $region50: #{denoising_autoencoder_pallas.1} parent=47 // pred_check_branch
        %4086 = sbr.rel (%p4084) target = $region52
      $region51: #{denoising_autoencoder_pallas.1} parent=47 // pred_region
        %s4087 = smul.u32 2, %s17
        %p4088 = scmp.lt.s32.totalorder %s4087, 3
        %s4089 = scalar_select %p4088, %s4087, 3
        %s4090 = smul.addr %s4089, 3
        %s4091 = smul.addr %s4090, 4
        %s4092 = scalar_lea.vmem %s5, %s4091
      $region52: #{denoising_autoencoder_pallas.1} parent=47 // pred_fallthru
        _
    $region48: #{denoising_autoencoder_pallas.1} parent=5 // pred_fallthru
      _
  $region6: #{denoising_autoencoder_pallas.1} parent=0 // loop_footer
    %s15 = sadd.s32 1, %s11
  $region7: #{denoising_autoencoder_pallas.1} parent=0 // loop_footer_branch
    %10 = sbr.rel target = $region3
  $region8: #{denoising_autoencoder_pallas.1} parent=0 // loop_exit
    _

</llo_original>
